<compile_context>
chip_gen: v7x
topology: tpu7x:2x2x1
jax: 0.10.0
libtpu: 0.0.40
codegen_flags: <defaults>
</compile_context>

<pallas_src>
import jax
import jax.numpy as jnp
from jax import lax
from jax.experimental import pallas as pl
from jax.experimental.pallas import tpu as pltpu

T = 10            # sequence length (hard-coded by pack_padded_sequence([10]))
IN_DIM = 13       # per-step input features
SELF_DIM = 6      # self-state features (state[:, 0, :6])
HIDDEN = 50       # LSTM hidden size
OUT_DIM = 150     # final mlp output size

GP = 128          # per-gate lane padding (one vreg lane block)
GW = 4 * GP       # 512: fused gate width, block order (i, f, o, g)
SIGW = 3 * GP     # 384: sigmoid lanes (i, f, o)
OUT_PAD = 256     # lane-dense padded output width (sliced to 150 in wrapper)

# --- packed weight slabs -----------------------------------------------------
# slab M (bf16, width 150): mlp1 weights/biases; row offsets multiples of 16
# (bf16 sublane-packing tile), columns kept compact to minimize weight bytes.
M_COLS = 150
M_W1, M_B1 = 0, 16
M_W2, M_B2 = 32, 192
M_W3, M_B3 = 208, 320
M_ROWS = 336
# Wx_fused (bf16): (50, 512), separate operand (different width from slab M).
# slab R (f32, width 512): recurrent weights + fused gate bias (8-aligned rows)
R_WH, R_BG = 0, 56
R_ROWS = 64
# slab C (f32, width 256): final mlp (output lane-padded 150 -> 256)
C_WS, C_BF, C_WHR = 0, 8, 16
C_ROWS = 72


def lstm_model_kernel(x_ref, self_ref, m_ref, xw_ref, r_ref, c_ref, out_ref, pre_ref):
    f32 = jnp.float32
    bf16 = jnp.bfloat16
    BB = self_ref.shape[0]                      # batch rows handled this step

    # ---------- mlp1 on all (T*BB) rows: bf16 operands, f32 accumulation ----
    # x block is time-major (T, BB, 13); BB is a multiple of 8 so the reshape
    # to (T*BB, 13) is a free sublane-tile stack.
    x = x_ref[...].reshape(T * BB, IN_DIM).astype(bf16)
    h1 = jnp.maximum(
        jnp.dot(x, m_ref[M_W1:M_W1 + IN_DIM, :], preferred_element_type=f32)
        + m_ref[M_B1:M_B1 + 1, :].astype(f32), 0.0)
    h2 = jnp.maximum(
        jnp.dot(h1.astype(bf16), m_ref[M_W2:M_W2 + 150, 0:100],
                preferred_element_type=f32)
        + m_ref[M_B2:M_B2 + 1, 0:100].astype(f32), 0.0)
    h3 = (jnp.dot(h2.astype(bf16), m_ref[M_W3:M_W3 + 100, 0:HIDDEN],
                  preferred_element_type=f32)
          + m_ref[M_B3:M_B3 + 1, 0:HIDDEN].astype(f32))            # (T*BB, 50)

    # ---------- input-side gate pre-activations for ALL (t, b) --------------
    # one (T*BB, 512) matmul hoisted out of the recurrence; bias (b_ih + b_hh)
    # folded in (f32).  Stored in VMEM scratch (40 vregs at BB=8 -> too big to
    # keep live in registers across the unrolled loop).
    pre_ref[...] = (jnp.dot(h3.astype(bf16), xw_ref[...],
                            preferred_element_type=f32)
                    + r_ref[R_BG:R_BG + 1, :])                      # (T*BB, 512)

    # ---------- LSTM recurrence, T steps, statically unrolled, f32 ----------
    h = jnp.zeros((BB, HIDDEN), f32)
    c = jnp.zeros((BB, HIDDEN), f32)
    for t in range(T):                          # T is a compile-time constant
        # Wh read per step (loop-invariant VMEM load, off the h->z chain);
        # avoids pinning 28 vregs across the unroll (review item 5).
        z = (jnp.dot(h, r_ref[R_WH:R_WH + HIDDEN, :], preferred_element_type=f32)
             + pre_ref[t * BB:(t + 1) * BB, :])
        s = jax.nn.sigmoid(z[:, :SIGW])                  # i, f, o in one pass
        g = jnp.tanh(z[:, SIGW:SIGW + HIDDEN])           # g gate
        i_g = s[:, 0:HIDDEN]                             # lane-aligned slices
        f_g = s[:, GP:GP + HIDDEN]
        o_g = s[:, 2 * GP:2 * GP + HIDDEN]
        c = f_g * c + i_g * g
        h = o_g * jnp.tanh(c)

    # ---------- final mlp on cat([self_state, h_T], dim=1), f32 -------------
    # concat folded into a split matmul: [s, h] @ Wf == s @ Wf[:6] + h @ Wf[6:]
    val = (jnp.dot(self_ref[...], c_ref[C_WS:C_WS + SELF_DIM, :],
                   preferred_element_type=f32)
           + jnp.dot(h, c_ref[C_WHR:C_WHR + HIDDEN, :],
                     preferred_element_type=f32)
           + c_ref[C_BF:C_BF + 1, :])
    out_ref[...] = jnp.maximum(val, 0.0)        # last_relu=True, lane-dense (BB,256)


def init_params(key):
    ks = jax.random.split(key, 8)

    def linear(k, fan_in, fan_out):
        kw, kb = jax.random.split(k)
        bound = 1.0 / jnp.sqrt(jnp.float32(fan_in))
        w = jax.random.uniform(kw, (fan_in, fan_out), jnp.float32, -bound, bound)
        b = jax.random.uniform(kb, (1, fan_out), jnp.float32, -bound, bound)
        return w, b

    w1, b1 = linear(ks[0], IN_DIM, 150)
    w2, b2 = linear(ks[1], 150, 100)
    w3, b3 = linear(ks[2], 100, HIDDEN)

    bound = 1.0 / jnp.sqrt(jnp.float32(HIDDEN))
    w_ih = jax.random.uniform(ks[3], (4 * HIDDEN, HIDDEN), jnp.float32, -bound, bound)
    w_hh = jax.random.uniform(ks[4], (4 * HIDDEN, HIDDEN), jnp.float32, -bound, bound)
    b_ih = jax.random.uniform(ks[5], (4 * HIDDEN,), jnp.float32, -bound, bound)
    b_hh = jax.random.uniform(ks[6], (4 * HIDDEN,), jnp.float32, -bound, bound)
    # per-gate (i, f, g, o) pre-transposed weights: (4, 50, 50)
    wx = jnp.stack([w_ih[g * HIDDEN:(g + 1) * HIDDEN].T for g in range(4)])
    wh = jnp.stack([w_hh[g * HIDDEN:(g + 1) * HIDDEN].T for g in range(4)])
    bg = (b_ih + b_hh).reshape(4, 1, HIDDEN)

    wf, bf = linear(ks[7], SELF_DIM + HIDDEN, OUT_DIM)
    return dict(w1=w1, b1=b1, w2=w2, b2=b2, w3=w3, b3=b3,
                wx=wx, wh=wh, bg=bg,
                wfs=wf[:SELF_DIM], wfh=wf[SELF_DIM:], bf=bf)


def pack_params(p):
    """Pack weights into 4 slabs: mlp1 (bf16), Wx_fused (bf16), LSTM-recurrent
    (f32), final-mlp (f32)."""
    m = jnp.zeros((M_ROWS, M_COLS), jnp.float32)
    m = m.at[M_W1:M_W1 + IN_DIM, 0:150].set(p["w1"])
    m = m.at[M_B1, 0:150].set(p["b1"][0])
    m = m.at[M_W2:M_W2 + 150, 0:100].set(p["w2"])
    m = m.at[M_B2, 0:100].set(p["b2"][0])
    m = m.at[M_W3:M_W3 + 100, 0:HIDDEN].set(p["w3"])
    m = m.at[M_B3, 0:HIDDEN].set(p["b3"][0])
    m = m.astype(jnp.bfloat16)

    # fused gates, block order (i, f, o, g); each gate lane-padded to 128.
    order = (0, 1, 3, 2)   # PyTorch gate index (i, f, g, o) -> block (i, f, o, g)
    xw = jnp.zeros((HIDDEN, GW), jnp.float32)
    r = jnp.zeros((R_ROWS, GW), jnp.float32)
    for blk, gate in enumerate(order):
        c0 = blk * GP
        xw = xw.at[:, c0:c0 + HIDDEN].set(p["wx"][gate])
        r = r.at[R_BG, c0:c0 + HIDDEN].set(p["bg"][gate, 0])
        r = r.at[R_WH:R_WH + HIDDEN, c0:c0 + HIDDEN].set(p["wh"][gate])
    xw = xw.astype(jnp.bfloat16)

    c = jnp.zeros((C_ROWS, OUT_PAD), jnp.float32)
    c = c.at[C_WS:C_WS + SELF_DIM, 0:OUT_DIM].set(p["wfs"])
    c = c.at[C_BF, 0:OUT_DIM].set(p["bf"][0])
    c = c.at[C_WHR:C_WHR + HIDDEN, 0:OUT_DIM].set(p["wfh"])
    return m, xw, r, c


def lstm_model_forward(state, packed, *, block_b=8):
    """state: (B, T, 13). Each sequence is processed exactly as the PyTorch
    module does at batch=1; batching is the perf-review generalization."""
    m_slab, xw_slab, r_slab, c_slab = packed
    B, N, F = state.shape
    assert N == T and F == IN_DIM

    # pad batch up to a multiple of the per-step block (8-sublane aligned)
    bp = ((B + block_b - 1) // block_b) * block_b
    if bp != B:
        state = jnp.pad(state, ((0, bp - B), (0, 0), (0, 0)))
    x_tm = jnp.transpose(state, (1, 0, 2))       # time-major (T, Bp, 13)  [glue]
    self_state = state[:, 0, :SELF_DIM]          # (Bp, 6)                 [glue]

    grid = (bp // block_b,)
    out = pl.pallas_call(
        lstm_model_kernel,
        out_shape=jax.ShapeDtypeStruct((bp, OUT_PAD), jnp.float32),
        grid=grid,
        in_specs=[
            pl.BlockSpec((T, block_b, IN_DIM), lambda i: (0, i, 0)),
            pl.BlockSpec((block_b, SELF_DIM), lambda i: (i, 0)),
            # weight slabs: constant block index -> DMA'd once, reused across grid
            pl.BlockSpec(m_slab.shape, lambda i: (0, 0)),
            pl.BlockSpec(xw_slab.shape, lambda i: (0, 0)),
            pl.BlockSpec(r_slab.shape, lambda i: (0, 0)),
            pl.BlockSpec(c_slab.shape, lambda i: (0, 0)),
        ],
        out_specs=pl.BlockSpec((block_b, OUT_PAD), lambda i: (i, 0)),
        scratch_shapes=[pltpu.VMEM((T * block_b, GW), jnp.float32)],
        compiler_params=pltpu.CompilerParams(
            dimension_semantics=("parallel",)),   # second TC on v7x
    )(x_tm, self_state, m_slab, xw_slab, r_slab, c_slab)
    return out[:B, :OUT_DIM]


def lstm_model_reference(state, p):
    """Pure-JAX f32 reference mirroring the PyTorch forward semantics."""
    B, N, F = state.shape
    self_state = state[:, 0, :SELF_DIM]
    x = state.reshape(B * N, F)
    h1 = jnp.maximum(x @ p["w1"] + p["b1"], 0.0)
    h2 = jnp.maximum(h1 @ p["w2"] + p["b2"], 0.0)
    h3 = (h2 @ p["w3"] + p["b3"]).reshape(B, N, HIDDEN)

    def one_seq(seq):                       # seq: (T, 50)
        def step(carry, x_t):
            h, c = carry
            x_t = x_t[None, :]
            gates = [x_t @ p["wx"][g] + h @ p["wh"][g] + p["bg"][g] for g in range(4)]
            i_g = jax.nn.sigmoid(gates[0])
            f_g = jax.nn.sigmoid(gates[1])
            g_g = jnp.tanh(gates[2])
            o_g = jax.nn.sigmoid(gates[3])
            c = f_g * c + i_g * g_g
            h = o_g * jnp.tanh(c)
            return (h, c), None
        (hn, _), _ = lax.scan(step, (jnp.zeros((1, HIDDEN)), jnp.zeros((1, HIDDEN))), seq)
        return hn[0]

    hn = jax.vmap(one_seq)(h3)              # (B, 50)
    val = self_state @ p["wfs"] + hn @ p["wfh"] + p["bf"]
    return jnp.maximum(val, 0.0)


if __name__ == "__main__":
    key = jax.random.PRNGKey(0)
    k_state, k_params = jax.random.split(key)
    B = 16                                   # batched states (review item 1)
    state = jax.random.normal(k_state, (B, T, IN_DIM), jnp.float32)
    params = init_params(k_params)
    packed = pack_params(params)

    out = jax.block_until_ready(lstm_model_forward(state, packed, block_b=8))
    ref = jax.block_until_ready(lstm_model_reference(state, params))

    assert out.shape == (B, OUT_DIM)
    assert bool(jnp.all(jnp.isfinite(out)))
    # Non-recurrent matmuls use bf16 MXU inputs (f32 accumulation), so compare
    # against the pure-f32 reference with a deliberately loosened tolerance.
    assert bool(jnp.allclose(out, ref, rtol=2e-2, atol=2e-2))
    print("KERNEL_OK")
</pallas_src>

<mosaic_0001>
module attributes {stable_mosaic.version = 11 : i64} {
  func.func @lstm_model_kernel(%arg0: i32, %arg1: memref<10x8x13xf32, #tpu.memory_space<vmem>>, %arg2: memref<8x6xf32, #tpu.memory_space<vmem>>, %arg3: memref<336x150xbf16, #tpu.memory_space<vmem>>, %arg4: memref<50x512xbf16, #tpu.memory_space<vmem>>, %arg5: memref<64x512xf32, #tpu.memory_space<vmem>>, %arg6: memref<72x256xf32, #tpu.memory_space<vmem>>, %arg7: memref<8x256xf32, #tpu.memory_space<vmem>>, %arg8: memref<80x512xf32, #tpu.memory_space<vmem>>) attributes {dimension_semantics = [#tpu.dimension_semantics<parallel>], iteration_bounds = array<i64: 2>, scalar_prefetch = 0 : i64, scratch_operands = 1 : i64, tpu.core_type = #tpu.core_type<tc>, window_params = [{transform_indices = @transform_0, window_bounds = array<i64: 10, 8, 13>}, {transform_indices = @transform_1, window_bounds = array<i64: 8, 6>}, {pipeline_mode = #tpu.pipeline_mode<synchronous>, transform_indices = @transform_2, window_bounds = array<i64: 336, 150>}, {pipeline_mode = #tpu.pipeline_mode<synchronous>, transform_indices = @transform_3, window_bounds = array<i64: 50, 512>}, {pipeline_mode = #tpu.pipeline_mode<synchronous>, transform_indices = @transform_4, window_bounds = array<i64: 64, 512>}, {pipeline_mode = #tpu.pipeline_mode<synchronous>, transform_indices = @transform_5, window_bounds = array<i64: 72, 256>}, {transform_indices = @transform_6, window_bounds = array<i64: 8, 256>}]} {
    %c0 = arith.constant 0 : index
    %c0_0 = arith.constant 0 : index
    %c0_1 = arith.constant 0 : index
    %0 = vector.load %arg1[%c0, %c0_0, %c0_1] : memref<10x8x13xf32, #tpu.memory_space<vmem>>, vector<10x8x13xf32>
    %1 = vector.shape_cast %0 : vector<10x8x13xf32> to vector<80x13xf32>
    %2 = arith.truncf %1 : vector<80x13xf32> to vector<80x13xbf16>
    %c0_2 = arith.constant 0 : index
    %c0_3 = arith.constant 0 : index
    %3 = vector.load %arg3[%c0_2, %c0_3] : memref<336x150xbf16, #tpu.memory_space<vmem>>, vector<13x150xbf16>
    %cst = arith.constant dense<0.000000e+00> : vector<80x150xf32>
    %4 = tpu.matmul %2, %3, %cst {dimension_numbers = #tpu.dot_dimension_numbers<[1], [0], [0], [1], [0, 0, 1, 1], [], []>} : vector<80x13xbf16>, vector<13x150xbf16>, vector<80x150xf32> -> vector<80x150xf32>
    %c16 = arith.constant 16 : index
    %c0_4 = arith.constant 0 : index
    %5 = vector.load %arg3[%c16, %c0_4] : memref<336x150xbf16, #tpu.memory_space<vmem>>, vector<1x150xbf16>
    %6 = arith.extf %5 : vector<1x150xbf16> to vector<1x150xf32>
    %7 = vector.broadcast %6 : vector<1x150xf32> to vector<80x150xf32>
    %8 = arith.addf %4, %7 : vector<80x150xf32>
    %cst_5 = arith.constant 0.000000e+00 : f32
    %9 = vector.broadcast %cst_5 : f32 to vector<80x150xf32>
    %10 = arith.maximumf %8, %9 : vector<80x150xf32>
    %11 = arith.truncf %10 : vector<80x150xf32> to vector<80x150xbf16>
    %c32 = arith.constant 32 : index
    %c0_6 = arith.constant 0 : index
    %12 = vector.load %arg3[%c32, %c0_6] : memref<336x150xbf16, #tpu.memory_space<vmem>>, vector<150x100xbf16>
    %cst_7 = arith.constant dense<0.000000e+00> : vector<80x100xf32>
    %13 = tpu.matmul %11, %12, %cst_7 {dimension_numbers = #tpu.dot_dimension_numbers<[1], [0], [0], [1], [0, 0, 1, 1], [], []>} : vector<80x150xbf16>, vector<150x100xbf16>, vector<80x100xf32> -> vector<80x100xf32>
    %c192 = arith.constant 192 : index
    %c0_8 = arith.constant 0 : index
    %14 = vector.load %arg3[%c192, %c0_8] : memref<336x150xbf16, #tpu.memory_space<vmem>>, vector<1x100xbf16>
    %15 = arith.extf %14 : vector<1x100xbf16> to vector<1x100xf32>
    %16 = vector.broadcast %15 : vector<1x100xf32> to vector<80x100xf32>
    %17 = arith.addf %13, %16 : vector<80x100xf32>
    %cst_9 = arith.constant 0.000000e+00 : f32
    %18 = vector.broadcast %cst_9 : f32 to vector<80x100xf32>
    %19 = arith.maximumf %17, %18 : vector<80x100xf32>
    %20 = arith.truncf %19 : vector<80x100xf32> to vector<80x100xbf16>
    %c208 = arith.constant 208 : index
    %c0_10 = arith.constant 0 : index
    %21 = vector.load %arg3[%c208, %c0_10] : memref<336x150xbf16, #tpu.memory_space<vmem>>, vector<100x50xbf16>
    %cst_11 = arith.constant dense<0.000000e+00> : vector<80x50xf32>
    %22 = tpu.matmul %20, %21, %cst_11 {dimension_numbers = #tpu.dot_dimension_numbers<[1], [0], [0], [1], [0, 0, 1, 1], [], []>} : vector<80x100xbf16>, vector<100x50xbf16>, vector<80x50xf32> -> vector<80x50xf32>
    %c320 = arith.constant 320 : index
    %c0_12 = arith.constant 0 : index
    %23 = vector.load %arg3[%c320, %c0_12] : memref<336x150xbf16, #tpu.memory_space<vmem>>, vector<1x50xbf16>
    %24 = arith.extf %23 : vector<1x50xbf16> to vector<1x50xf32>
    %25 = vector.broadcast %24 : vector<1x50xf32> to vector<80x50xf32>
    %26 = arith.addf %22, %25 : vector<80x50xf32>
    %27 = arith.truncf %26 : vector<80x50xf32> to vector<80x50xbf16>
    %c0_13 = arith.constant 0 : index
    %c0_14 = arith.constant 0 : index
    %28 = vector.load %arg4[%c0_13, %c0_14] : memref<50x512xbf16, #tpu.memory_space<vmem>>, vector<50x512xbf16>
    %cst_15 = arith.constant dense<0.000000e+00> : vector<80x512xf32>
    %29 = tpu.matmul %27, %28, %cst_15 {dimension_numbers = #tpu.dot_dimension_numbers<[1], [0], [0], [1], [0, 0, 1, 1], [], []>} : vector<80x50xbf16>, vector<50x512xbf16>, vector<80x512xf32> -> vector<80x512xf32>
    %c56 = arith.constant 56 : index
    %c0_16 = arith.constant 0 : index
    %30 = vector.load %arg5[%c56, %c0_16] : memref<64x512xf32, #tpu.memory_space<vmem>>, vector<1x512xf32>
    %31 = vector.broadcast %30 : vector<1x512xf32> to vector<80x512xf32>
    %32 = arith.addf %29, %31 : vector<80x512xf32>
    %c0_17 = arith.constant 0 : index
    %c0_18 = arith.constant 0 : index
    %33 = vector.load %arg8[%c0_17, %c0_18] : memref<80x512xf32, #tpu.memory_space<vmem>>, vector<80x512xf32>
    tpu.vector_store %arg8[%c0_17, %c0_18], %32 {strides = array<i32>} : memref<80x512xf32, #tpu.memory_space<vmem>>, vector<80x512xf32>,
    %cst_19 = arith.constant 0.000000e+00 : f32
    %34 = vector.broadcast %cst_19 : f32 to vector<8x50xf32>
    %cst_20 = arith.constant 0.000000e+00 : f32
    %35 = vector.broadcast %cst_20 : f32 to vector<8x50xf32>
    %c0_21 = arith.constant 0 : index
    %c0_22 = arith.constant 0 : index
    %36 = vector.load %arg5[%c0_21, %c0_22] : memref<64x512xf32, #tpu.memory_space<vmem>>, vector<50x512xf32>
    %cst_23 = arith.constant dense<0.000000e+00> : vector<8x512xf32>
    %37 = tpu.matmul %34, %36, %cst_23 {dimension_numbers = #tpu.dot_dimension_numbers<[1], [0], [0], [1], [0, 0, 1, 1], [], []>} : vector<8x50xf32>, vector<50x512xf32>, vector<8x512xf32> -> vector<8x512xf32>
    %c0_24 = arith.constant 0 : index
    %c0_25 = arith.constant 0 : index
    %38 = vector.load %arg8[%c0_24, %c0_25] : memref<80x512xf32, #tpu.memory_space<vmem>>, vector<8x512xf32>
    %39 = arith.addf %37, %38 : vector<8x512xf32>
    %40 = vector.extract_strided_slice %39 {offsets = [0, 0], sizes = [8, 384], strides = [1, 1]} : vector<8x512xf32> to vector<8x384xf32>
    %41 = arith.negf %40 : vector<8x384xf32>
    %42 = math.exp %41 : vector<8x384xf32>
    %cst_26 = arith.constant 1.000000e+00 : f32
    %43 = vector.broadcast %cst_26 : f32 to vector<8x384xf32>
    %44 = arith.addf %43, %42 : vector<8x384xf32>
    %45 = arith.divf %43, %44 : vector<8x384xf32>
    %46 = vector.extract_strided_slice %39 {offsets = [0, 384], sizes = [8, 50], strides = [1, 1]} : vector<8x512xf32> to vector<8x50xf32>
    %47 = math.tanh %46 : vector<8x50xf32>
    %48 = vector.extract_strided_slice %45 {offsets = [0, 0], sizes = [8, 50], strides = [1, 1]} : vector<8x384xf32> to vector<8x50xf32>
    %49 = vector.extract_strided_slice %45 {offsets = [0, 128], sizes = [8, 50], strides = [1, 1]} : vector<8x384xf32> to vector<8x50xf32>
    %50 = vector.extract_strided_slice %45 {offsets = [0, 256], sizes = [8, 50], strides = [1, 1]} : vector<8x384xf32> to vector<8x50xf32>
    %51 = arith.mulf %49, %35 : vector<8x50xf32>
    %52 = arith.mulf %48, %47 : vector<8x50xf32>
    %53 = arith.addf %51, %52 : vector<8x50xf32>
    %54 = math.tanh %53 : vector<8x50xf32>
    %55 = arith.mulf %50, %54 : vector<8x50xf32>
    %c0_27 = arith.constant 0 : index
    %c0_28 = arith.constant 0 : index
    %56 = vector.load %arg5[%c0_27, %c0_28] : memref<64x512xf32, #tpu.memory_space<vmem>>, vector<50x512xf32>
    %cst_29 = arith.constant dense<0.000000e+00> : vector<8x512xf32>
    %57 = tpu.matmul %55, %56, %cst_29 {dimension_numbers = #tpu.dot_dimension_numbers<[1], [0], [0], [1], [0, 0, 1, 1], [], []>} : vector<8x50xf32>, vector<50x512xf32>, vector<8x512xf32> -> vector<8x512xf32>
    %c8 = arith.constant 8 : index
    %c0_30 = arith.constant 0 : index
    %58 = vector.load %arg8[%c8, %c0_30] : memref<80x512xf32, #tpu.memory_space<vmem>>, vector<8x512xf32>
    %59 = arith.addf %57, %58 : vector<8x512xf32>
    %60 = vector.extract_strided_slice %59 {offsets = [0, 0], sizes = [8, 384], strides = [1, 1]} : vector<8x512xf32> to vector<8x384xf32>
    %61 = arith.negf %60 : vector<8x384xf32>
    %62 = math.exp %61 : vector<8x384xf32>
    %cst_31 = arith.constant 1.000000e+00 : f32
    %63 = vector.broadcast %cst_31 : f32 to vector<8x384xf32>
    %64 = arith.addf %63, %62 : vector<8x384xf32>
    %65 = arith.divf %63, %64 : vector<8x384xf32>
    %66 = vector.extract_strided_slice %59 {offsets = [0, 384], sizes = [8, 50], strides = [1, 1]} : vector<8x512xf32> to vector<8x50xf32>
    %67 = math.tanh %66 : vector<8x50xf32>
    %68 = vector.extract_strided_slice %65 {offsets = [0, 0], sizes = [8, 50], strides = [1, 1]} : vector<8x384xf32> to vector<8x50xf32>
    %69 = vector.extract_strided_slice %65 {offsets = [0, 128], sizes = [8, 50], strides = [1, 1]} : vector<8x384xf32> to vector<8x50xf32>
    %70 = vector.extract_strided_slice %65 {offsets = [0, 256], sizes = [8, 50], strides = [1, 1]} : vector<8x384xf32> to vector<8x50xf32>
    %71 = arith.mulf %69, %53 : vector<8x50xf32>
    %72 = arith.mulf %68, %67 : vector<8x50xf32>
    %73 = arith.addf %71, %72 : vector<8x50xf32>
    %74 = math.tanh %73 : vector<8x50xf32>
    %75 = arith.mulf %70, %74 : vector<8x50xf32>
    %c0_32 = arith.constant 0 : index
    %c0_33 = arith.constant 0 : index
    %76 = vector.load %arg5[%c0_32, %c0_33] : memref<64x512xf32, #tpu.memory_space<vmem>>, vector<50x512xf32>
    %cst_34 = arith.constant dense<0.000000e+00> : vector<8x512xf32>
    %77 = tpu.matmul %75, %76, %cst_34 {dimension_numbers = #tpu.dot_dimension_numbers<[1], [0], [0], [1], [0, 0, 1, 1], [], []>} : vector<8x50xf32>, vector<50x512xf32>, vector<8x512xf32> -> vector<8x512xf32>
    %c16_35 = arith.constant 16 : index
    %c0_36 = arith.constant 0 : index
    %78 = vector.load %arg8[%c16_35, %c0_36] : memref<80x512xf32, #tpu.memory_space<vmem>>, vector<8x512xf32>
    %79 = arith.addf %77, %78 : vector<8x512xf32>
    %80 = vector.extract_strided_slice %79 {offsets = [0, 0], sizes = [8, 384], strides = [1, 1]} : vector<8x512xf32> to vector<8x384xf32>
    %81 = arith.negf %80 : vector<8x384xf32>
    %82 = math.exp %81 : vector<8x384xf32>
    %cst_37 = arith.constant 1.000000e+00 : f32
    %83 = vector.broadcast %cst_37 : f32 to vector<8x384xf32>
    %84 = arith.addf %83, %82 : vector<8x384xf32>
    %85 = arith.divf %83, %84 : vector<8x384xf32>
    %86 = vector.extract_strided_slice %79 {offsets = [0, 384], sizes = [8, 50], strides = [1, 1]} : vector<8x512xf32> to vector<8x50xf32>
    %87 = math.tanh %86 : vector<8x50xf32>
    %88 = vector.extract_strided_slice %85 {offsets = [0, 0], sizes = [8, 50], strides = [1, 1]} : vector<8x384xf32> to vector<8x50xf32>
    %89 = vector.extract_strided_slice %85 {offsets = [0, 128], sizes = [8, 50], strides = [1, 1]} : vector<8x384xf32> to vector<8x50xf32>
    %90 = vector.extract_strided_slice %85 {offsets = [0, 256], sizes = [8, 50], strides = [1, 1]} : vector<8x384xf32> to vector<8x50xf32>
    %91 = arith.mulf %89, %73 : vector<8x50xf32>
    %92 = arith.mulf %88, %87 : vector<8x50xf32>
    %93 = arith.addf %91, %92 : vector<8x50xf32>
    %94 = math.tanh %93 : vector<8x50xf32>
    %95 = arith.mulf %90, %94 : vector<8x50xf32>
    %c0_38 = arith.constant 0 : index
    %c0_39 = arith.constant 0 : index
    %96 = vector.load %arg5[%c0_38, %c0_39] : memref<64x512xf32, #tpu.memory_space<vmem>>, vector<50x512xf32>
    %cst_40 = arith.constant dense<0.000000e+00> : vector<8x512xf32>
    %97 = tpu.matmul %95, %96, %cst_40 {dimension_numbers = #tpu.dot_dimension_numbers<[1], [0], [0], [1], [0, 0, 1, 1], [], []>} : vector<8x50xf32>, vector<50x512xf32>, vector<8x512xf32> -> vector<8x512xf32>
    %c24 = arith.constant 24 : index
    %c0_41 = arith.constant 0 : index
    %98 = vector.load %arg8[%c24, %c0_41] : memref<80x512xf32, #tpu.memory_space<vmem>>, vector<8x512xf32>
    %99 = arith.addf %97, %98 : vector<8x512xf32>
    %100 = vector.extract_strided_slice %99 {offsets = [0, 0], sizes = [8, 384], strides = [1, 1]} : vector<8x512xf32> to vector<8x384xf32>
    %101 = arith.negf %100 : vector<8x384xf32>
    %102 = math.exp %101 : vector<8x384xf32>
    %cst_42 = arith.constant 1.000000e+00 : f32
    %103 = vector.broadcast %cst_42 : f32 to vector<8x384xf32>
    %104 = arith.addf %103, %102 : vector<8x384xf32>
    %105 = arith.divf %103, %104 : vector<8x384xf32>
    %106 = vector.extract_strided_slice %99 {offsets = [0, 384], sizes = [8, 50], strides = [1, 1]} : vector<8x512xf32> to vector<8x50xf32>
    %107 = math.tanh %106 : vector<8x50xf32>
    %108 = vector.extract_strided_slice %105 {offsets = [0, 0], sizes = [8, 50], strides = [1, 1]} : vector<8x384xf32> to vector<8x50xf32>
    %109 = vector.extract_strided_slice %105 {offsets = [0, 128], sizes = [8, 50], strides = [1, 1]} : vector<8x384xf32> to vector<8x50xf32>
    %110 = vector.extract_strided_slice %105 {offsets = [0, 256], sizes = [8, 50], strides = [1, 1]} : vector<8x384xf32> to vector<8x50xf32>
    %111 = arith.mulf %109, %93 : vector<8x50xf32>
    %112 = arith.mulf %108, %107 : vector<8x50xf32>
    %113 = arith.addf %111, %112 : vector<8x50xf32>
    %114 = math.tanh %113 : vector<8x50xf32>
    %115 = arith.mulf %110, %114 : vector<8x50xf32>
    %c0_43 = arith.constant 0 : index
    %c0_44 = arith.constant 0 : index
    %116 = vector.load %arg5[%c0_43, %c0_44] : memref<64x512xf32, #tpu.memory_space<vmem>>, vector<50x512xf32>
    %cst_45 = arith.constant dense<0.000000e+00> : vector<8x512xf32>
    %117 = tpu.matmul %115, %116, %cst_45 {dimension_numbers = #tpu.dot_dimension_numbers<[1], [0], [0], [1], [0, 0, 1, 1], [], []>} : vector<8x50xf32>, vector<50x512xf32>, vector<8x512xf32> -> vector<8x512xf32>
    %c32_46 = arith.constant 32 : index
    %c0_47 = arith.constant 0 : index
    %118 = vector.load %arg8[%c32_46, %c0_47] : memref<80x512xf32, #tpu.memory_space<vmem>>, vector<8x512xf32>
    %119 = arith.addf %117, %118 : vector<8x512xf32>
    %120 = vector.extract_strided_slice %119 {offsets = [0, 0], sizes = [8, 384], strides = [1, 1]} : vector<8x512xf32> to vector<8x384xf32>
    %121 = arith.negf %120 : vector<8x384xf32>
    %122 = math.exp %121 : vector<8x384xf32>
    %cst_48 = arith.constant 1.000000e+00 : f32
    %123 = vector.broadcast %cst_48 : f32 to vector<8x384xf32>
    %124 = arith.addf %123, %122 : vector<8x384xf32>
    %125 = arith.divf %123, %124 : vector<8x384xf32>
    %126 = vector.extract_strided_slice %119 {offsets = [0, 384], sizes = [8, 50], strides = [1, 1]} : vector<8x512xf32> to vector<8x50xf32>
    %127 = math.tanh %126 : vector<8x50xf32>
    %128 = vector.extract_strided_slice %125 {offsets = [0, 0], sizes = [8, 50], strides = [1, 1]} : vector<8x384xf32> to vector<8x50xf32>
    %129 = vector.extract_strided_slice %125 {offsets = [0, 128], sizes = [8, 50], strides = [1, 1]} : vector<8x384xf32> to vector<8x50xf32>
    %130 = vector.extract_strided_slice %125 {offsets = [0, 256], sizes = [8, 50], strides = [1, 1]} : vector<8x384xf32> to vector<8x50xf32>
    %131 = arith.mulf %129, %113 : vector<8x50xf32>
    %132 = arith.mulf %128, %127 : vector<8x50xf32>
    %133 = arith.addf %131, %132 : vector<8x50xf32>
    %134 = math.tanh %133 : vector<8x50xf32>
    %135 = arith.mulf %130, %134 : vector<8x50xf32>
    %c0_49 = arith.constant 0 : index
    %c0_50 = arith.constant 0 : index
    %136 = vector.load %arg5[%c0_49, %c0_50] : memref<64x512xf32, #tpu.memory_space<vmem>>, vector<50x512xf32>
    %cst_51 = arith.constant dense<0.000000e+00> : vector<8x512xf32>
    %137 = tpu.matmul %135, %136, %cst_51 {dimension_numbers = #tpu.dot_dimension_numbers<[1], [0], [0], [1], [0, 0, 1, 1], [], []>} : vector<8x50xf32>, vector<50x512xf32>, vector<8x512xf32> -> vector<8x512xf32>
    %c40 = arith.constant 40 : index
    %c0_52 = arith.constant 0 : index
    %138 = vector.load %arg8[%c40, %c0_52] : memref<80x512xf32, #tpu.memory_space<vmem>>, vector<8x512xf32>
    %139 = arith.addf %137, %138 : vector<8x512xf32>
    %140 = vector.extract_strided_slice %139 {offsets = [0, 0], sizes = [8, 384], strides = [1, 1]} : vector<8x512xf32> to vector<8x384xf32>
    %141 = arith.negf %140 : vector<8x384xf32>
    %142 = math.exp %141 : vector<8x384xf32>
    %cst_53 = arith.constant 1.000000e+00 : f32
    %143 = vector.broadcast %cst_53 : f32 to vector<8x384xf32>
    %144 = arith.addf %143, %142 : vector<8x384xf32>
    %145 = arith.divf %143, %144 : vector<8x384xf32>
    %146 = vector.extract_strided_slice %139 {offsets = [0, 384], sizes = [8, 50], strides = [1, 1]} : vector<8x512xf32> to vector<8x50xf32>
    %147 = math.tanh %146 : vector<8x50xf32>
    %148 = vector.extract_strided_slice %145 {offsets = [0, 0], sizes = [8, 50], strides = [1, 1]} : vector<8x384xf32> to vector<8x50xf32>
    %149 = vector.extract_strided_slice %145 {offsets = [0, 128], sizes = [8, 50], strides = [1, 1]} : vector<8x384xf32> to vector<8x50xf32>
    %150 = vector.extract_strided_slice %145 {offsets = [0, 256], sizes = [8, 50], strides = [1, 1]} : vector<8x384xf32> to vector<8x50xf32>
    %151 = arith.mulf %149, %133 : vector<8x50xf32>
    %152 = arith.mulf %148, %147 : vector<8x50xf32>
    %153 = arith.addf %151, %152 : vector<8x50xf32>
    %154 = math.tanh %153 : vector<8x50xf32>
    %155 = arith.mulf %150, %154 : vector<8x50xf32>
    %c0_54 = arith.constant 0 : index
    %c0_55 = arith.constant 0 : index
    %156 = vector.load %arg5[%c0_54, %c0_55] : memref<64x512xf32, #tpu.memory_space<vmem>>, vector<50x512xf32>
    %cst_56 = arith.constant dense<0.000000e+00> : vector<8x512xf32>
    %157 = tpu.matmul %155, %156, %cst_56 {dimension_numbers = #tpu.dot_dimension_numbers<[1], [0], [0], [1], [0, 0, 1, 1], [], []>} : vector<8x50xf32>, vector<50x512xf32>, vector<8x512xf32> -> vector<8x512xf32>
    %c48 = arith.constant 48 : index
    %c0_57 = arith.constant 0 : index
    %158 = vector.load %arg8[%c48, %c0_57] : memref<80x512xf32, #tpu.memory_space<vmem>>, vector<8x512xf32>
    %159 = arith.addf %157, %158 : vector<8x512xf32>
    %160 = vector.extract_strided_slice %159 {offsets = [0, 0], sizes = [8, 384], strides = [1, 1]} : vector<8x512xf32> to vector<8x384xf32>
    %161 = arith.negf %160 : vector<8x384xf32>
    %162 = math.exp %161 : vector<8x384xf32>
    %cst_58 = arith.constant 1.000000e+00 : f32
    %163 = vector.broadcast %cst_58 : f32 to vector<8x384xf32>
    %164 = arith.addf %163, %162 : vector<8x384xf32>
    %165 = arith.divf %163, %164 : vector<8x384xf32>
    %166 = vector.extract_strided_slice %159 {offsets = [0, 384], sizes = [8, 50], strides = [1, 1]} : vector<8x512xf32> to vector<8x50xf32>
    %167 = math.tanh %166 : vector<8x50xf32>
    %168 = vector.extract_strided_slice %165 {offsets = [0, 0], sizes = [8, 50], strides = [1, 1]} : vector<8x384xf32> to vector<8x50xf32>
    %169 = vector.extract_strided_slice %165 {offsets = [0, 128], sizes = [8, 50], strides = [1, 1]} : vector<8x384xf32> to vector<8x50xf32>
    %170 = vector.extract_strided_slice %165 {offsets = [0, 256], sizes = [8, 50], strides = [1, 1]} : vector<8x384xf32> to vector<8x50xf32>
    %171 = arith.mulf %169, %153 : vector<8x50xf32>
    %172 = arith.mulf %168, %167 : vector<8x50xf32>
    %173 = arith.addf %171, %172 : vector<8x50xf32>
    %174 = math.tanh %173 : vector<8x50xf32>
    %175 = arith.mulf %170, %174 : vector<8x50xf32>
    %c0_59 = arith.constant 0 : index
    %c0_60 = arith.constant 0 : index
    %176 = vector.load %arg5[%c0_59, %c0_60] : memref<64x512xf32, #tpu.memory_space<vmem>>, vector<50x512xf32>
    %cst_61 = arith.constant dense<0.000000e+00> : vector<8x512xf32>
    %177 = tpu.matmul %175, %176, %cst_61 {dimension_numbers = #tpu.dot_dimension_numbers<[1], [0], [0], [1], [0, 0, 1, 1], [], []>} : vector<8x50xf32>, vector<50x512xf32>, vector<8x512xf32> -> vector<8x512xf32>
    %c56_62 = arith.constant 56 : index
    %c0_63 = arith.constant 0 : index
    %178 = vector.load %arg8[%c56_62, %c0_63] : memref<80x512xf32, #tpu.memory_space<vmem>>, vector<8x512xf32>
    %179 = arith.addf %177, %178 : vector<8x512xf32>
    %180 = vector.extract_strided_slice %179 {offsets = [0, 0], sizes = [8, 384], strides = [1, 1]} : vector<8x512xf32> to vector<8x384xf32>
    %181 = arith.negf %180 : vector<8x384xf32>
    %182 = math.exp %181 : vector<8x384xf32>
    %cst_64 = arith.constant 1.000000e+00 : f32
    %183 = vector.broadcast %cst_64 : f32 to vector<8x384xf32>
    %184 = arith.addf %183, %182 : vector<8x384xf32>
    %185 = arith.divf %183, %184 : vector<8x384xf32>
    %186 = vector.extract_strided_slice %179 {offsets = [0, 384], sizes = [8, 50], strides = [1, 1]} : vector<8x512xf32> to vector<8x50xf32>
    %187 = math.tanh %186 : vector<8x50xf32>
    %188 = vector.extract_strided_slice %185 {offsets = [0, 0], sizes = [8, 50], strides = [1, 1]} : vector<8x384xf32> to vector<8x50xf32>
    %189 = vector.extract_strided_slice %185 {offsets = [0, 128], sizes = [8, 50], strides = [1, 1]} : vector<8x384xf32> to vector<8x50xf32>
    %190 = vector.extract_strided_slice %185 {offsets = [0, 256], sizes = [8, 50], strides = [1, 1]} : vector<8x384xf32> to vector<8x50xf32>
    %191 = arith.mulf %189, %173 : vector<8x50xf32>
    %192 = arith.mulf %188, %187 : vector<8x50xf32>
    %193 = arith.addf %191, %192 : vector<8x50xf32>
    %194 = math.tanh %193 : vector<8x50xf32>
    %195 = arith.mulf %190, %194 : vector<8x50xf32>
    %c0_65 = arith.constant 0 : index
    %c0_66 = arith.constant 0 : index
    %196 = vector.load %arg5[%c0_65, %c0_66] : memref<64x512xf32, #tpu.memory_space<vmem>>, vector<50x512xf32>
    %cst_67 = arith.constant dense<0.000000e+00> : vector<8x512xf32>
    %197 = tpu.matmul %195, %196, %cst_67 {dimension_numbers = #tpu.dot_dimension_numbers<[1], [0], [0], [1], [0, 0, 1, 1], [], []>} : vector<8x50xf32>, vector<50x512xf32>, vector<8x512xf32> -> vector<8x512xf32>
    %c64 = arith.constant 64 : index
    %c0_68 = arith.constant 0 : index
    %198 = vector.load %arg8[%c64, %c0_68] : memref<80x512xf32, #tpu.memory_space<vmem>>, vector<8x512xf32>
    %199 = arith.addf %197, %198 : vector<8x512xf32>
    %200 = vector.extract_strided_slice %199 {offsets = [0, 0], sizes = [8, 384], strides = [1, 1]} : vector<8x512xf32> to vector<8x384xf32>
    %201 = arith.negf %200 : vector<8x384xf32>
    %202 = math.exp %201 : vector<8x384xf32>
    %cst_69 = arith.constant 1.000000e+00 : f32
    %203 = vector.broadcast %cst_69 : f32 to vector<8x384xf32>
    %204 = arith.addf %203, %202 : vector<8x384xf32>
    %205 = arith.divf %203, %204 : vector<8x384xf32>
    %206 = vector.extract_strided_slice %199 {offsets = [0, 384], sizes = [8, 50], strides = [1, 1]} : vector<8x512xf32> to vector<8x50xf32>
    %207 = math.tanh %206 : vector<8x50xf32>
    %208 = vector.extract_strided_slice %205 {offsets = [0, 0], sizes = [8, 50], strides = [1, 1]} : vector<8x384xf32> to vector<8x50xf32>
    %209 = vector.extract_strided_slice %205 {offsets = [0, 128], sizes = [8, 50], strides = [1, 1]} : vector<8x384xf32> to vector<8x50xf32>
    %210 = vector.extract_strided_slice %205 {offsets = [0, 256], sizes = [8, 50], strides = [1, 1]} : vector<8x384xf32> to vector<8x50xf32>
    %211 = arith.mulf %209, %193 : vector<8x50xf32>
    %212 = arith.mulf %208, %207 : vector<8x50xf32>
    %213 = arith.addf %211, %212 : vector<8x50xf32>
    %214 = math.tanh %213 : vector<8x50xf32>
    %215 = arith.mulf %210, %214 : vector<8x50xf32>
    %c0_70 = arith.constant 0 : index
    %c0_71 = arith.constant 0 : index
    %216 = vector.load %arg5[%c0_70, %c0_71] : memref<64x512xf32, #tpu.memory_space<vmem>>, vector<50x512xf32>
    %cst_72 = arith.constant dense<0.000000e+00> : vector<8x512xf32>
    %217 = tpu.matmul %215, %216, %cst_72 {dimension_numbers = #tpu.dot_dimension_numbers<[1], [0], [0], [1], [0, 0, 1, 1], [], []>} : vector<8x50xf32>, vector<50x512xf32>, vector<8x512xf32> -> vector<8x512xf32>
    %c72 = arith.constant 72 : index
    %c0_73 = arith.constant 0 : index
    %218 = vector.load %arg8[%c72, %c0_73] : memref<80x512xf32, #tpu.memory_space<vmem>>, vector<8x512xf32>
    %219 = arith.addf %217, %218 : vector<8x512xf32>
    %220 = vector.extract_strided_slice %219 {offsets = [0, 0], sizes = [8, 384], strides = [1, 1]} : vector<8x512xf32> to vector<8x384xf32>
    %221 = arith.negf %220 : vector<8x384xf32>
    %222 = math.exp %221 : vector<8x384xf32>
    %cst_74 = arith.constant 1.000000e+00 : f32
    %223 = vector.broadcast %cst_74 : f32 to vector<8x384xf32>
    %224 = arith.addf %223, %222 : vector<8x384xf32>
    %225 = arith.divf %223, %224 : vector<8x384xf32>
    %226 = vector.extract_strided_slice %219 {offsets = [0, 384], sizes = [8, 50], strides = [1, 1]} : vector<8x512xf32> to vector<8x50xf32>
    %227 = math.tanh %226 : vector<8x50xf32>
    %228 = vector.extract_strided_slice %225 {offsets = [0, 0], sizes = [8, 50], strides = [1, 1]} : vector<8x384xf32> to vector<8x50xf32>
    %229 = vector.extract_strided_slice %225 {offsets = [0, 128], sizes = [8, 50], strides = [1, 1]} : vector<8x384xf32> to vector<8x50xf32>
    %230 = vector.extract_strided_slice %225 {offsets = [0, 256], sizes = [8, 50], strides = [1, 1]} : vector<8x384xf32> to vector<8x50xf32>
    %231 = arith.mulf %229, %213 : vector<8x50xf32>
    %232 = arith.mulf %228, %227 : vector<8x50xf32>
    %233 = arith.addf %231, %232 : vector<8x50xf32>
    %234 = math.tanh %233 : vector<8x50xf32>
    %235 = arith.mulf %230, %234 : vector<8x50xf32>
    %c0_75 = arith.constant 0 : index
    %c0_76 = arith.constant 0 : index
    %236 = vector.load %arg2[%c0_75, %c0_76] : memref<8x6xf32, #tpu.memory_space<vmem>>, vector<8x6xf32>
    %c0_77 = arith.constant 0 : index
    %c0_78 = arith.constant 0 : index
    %237 = vector.load %arg6[%c0_77, %c0_78] : memref<72x256xf32, #tpu.memory_space<vmem>>, vector<6x256xf32>
    %cst_79 = arith.constant dense<0.000000e+00> : vector<8x256xf32>
    %238 = tpu.matmul %236, %237, %cst_79 {dimension_numbers = #tpu.dot_dimension_numbers<[1], [0], [0], [1], [0, 0, 1, 1], [], []>} : vector<8x6xf32>, vector<6x256xf32>, vector<8x256xf32> -> vector<8x256xf32>
    %c16_80 = arith.constant 16 : index
    %c0_81 = arith.constant 0 : index
    %239 = vector.load %arg6[%c16_80, %c0_81] : memref<72x256xf32, #tpu.memory_space<vmem>>, vector<50x256xf32>
    %cst_82 = arith.constant dense<0.000000e+00> : vector<8x256xf32>
    %240 = tpu.matmul %235, %239, %cst_82 {dimension_numbers = #tpu.dot_dimension_numbers<[1], [0], [0], [1], [0, 0, 1, 1], [], []>} : vector<8x50xf32>, vector<50x256xf32>, vector<8x256xf32> -> vector<8x256xf32>
    %241 = arith.addf %238, %240 : vector<8x256xf32>
    %c8_83 = arith.constant 8 : index
    %c0_84 = arith.constant 0 : index
    %242 = vector.load %arg6[%c8_83, %c0_84] : memref<72x256xf32, #tpu.memory_space<vmem>>, vector<1x256xf32>
    %243 = vector.broadcast %242 : vector<1x256xf32> to vector<8x256xf32>
    %244 = arith.addf %241, %243 : vector<8x256xf32>
    %cst_85 = arith.constant 0.000000e+00 : f32
    %245 = vector.broadcast %cst_85 : f32 to vector<8x256xf32>
    %246 = arith.maximumf %244, %245 : vector<8x256xf32>
    %c0_86 = arith.constant 0 : index
    %c0_87 = arith.constant 0 : index
    %247 = vector.load %arg7[%c0_86, %c0_87] : memref<8x256xf32, #tpu.memory_space<vmem>>, vector<8x256xf32>
    tpu.vector_store %arg7[%c0_86, %c0_87], %246 {strides = array<i32>} : memref<8x256xf32, #tpu.memory_space<vmem>>, vector<8x256xf32>,
    return
  }
  func.func @transform_0(%arg0: i32) -> (i32, i32, i32) {
    %c0_i32 = arith.constant 0 : i32
    %c0_i32_0 = arith.constant 0 : i32
    %c0_i32_1 = arith.constant 0 : i32
    return %c0_i32, %arg0, %c0_i32_0 : i32, i32, i32
  }
  func.func @transform_1(%arg0: i32) -> (i32, i32) {
    %c0_i32 = arith.constant 0 : i32
    %c0_i32_0 = arith.constant 0 : i32
    return %arg0, %c0_i32 : i32, i32
  }
  func.func @transform_2(%arg0: i32) -> (i32, i32) {
    %c0_i32 = arith.constant 0 : i32
    %c0_i32_0 = arith.constant 0 : i32
    %c0_i32_1 = arith.constant 0 : i32
    return %c0_i32, %c0_i32_0 : i32, i32
  }
  func.func @transform_3(%arg0: i32) -> (i32, i32) {
    %c0_i32 = arith.constant 0 : i32
    %c0_i32_0 = arith.constant 0 : i32
    %c0_i32_1 = arith.constant 0 : i32
    return %c0_i32, %c0_i32_0 : i32, i32
  }
  func.func @transform_4(%arg0: i32) -> (i32, i32) {
    %c0_i32 = arith.constant 0 : i32
    %c0_i32_0 = arith.constant 0 : i32
    %c0_i32_1 = arith.constant 0 : i32
    return %c0_i32, %c0_i32_0 : i32, i32
  }
  func.func @transform_5(%arg0: i32) -> (i32, i32) {
    %c0_i32 = arith.constant 0 : i32
    %c0_i32_0 = arith.constant 0 : i32
    %c0_i32_1 = arith.constant 0 : i32
    return %c0_i32, %c0_i32_0 : i32, i32
  }
  func.func @transform_6(%arg0: i32) -> (i32, i32) {
    %c0_i32 = arith.constant 0 : i32
    %c0_i32_0 = arith.constant 0 : i32
    return %arg0, %c0_i32 : i32, i32
  }
}

</mosaic_0001>

<llo_original>
// kernel: tpu_custom_call.1
$region0: #{tpu_custom_call.1}
  #allocation0 [shape = 'u32[]', space=smem, size = 0x4, offset = 0x4, fixed_abs, tag = 'smem constant byte address 0x4 - core index']
  #allocation1 [shape = 'u32[144,128]{1,0:T(1,128)}', space=vmem, size = 0x12000, scoped, tag = 'internal scratch']
  #allocation2 [shape = 'f32[80,512]{1,0:T(8,128)}', space=vmem, size = 0x28000, scoped, tag = 'scratch operand']
  %s0 = inlined_call_operand.vmem [shape: f32[10,16,13], index: 0, kind: input, shape index: {}]
  %s1 = inlined_call_operand.vmem [shape: f32[16,6], index: 1, kind: input, shape index: {}]
  %s2 = inlined_call_operand.vmem [shape: bf16[336,150], index: 2, kind: input, shape index: {}]
  %s3 = inlined_call_operand.hbm [shape: bf16[50,512], index: 3, kind: input, shape index: {}]
  %s4 = inlined_call_operand.vmem [shape: f32[64,512], index: 4, kind: input, shape index: {}]
  %s5 = inlined_call_operand.vmem [shape: f32[72,256], index: 5, kind: input, shape index: {}]
  %s6 = inlined_call_operand.hbm [shape: f32[16,256], index: 6, kind: output, shape index: {}]
  %s7 = sld [smem:[#allocation0]]
  $region99: #{tpu_custom_call.1} parent=0
    _
  %s9 = ssub.s32 1, %s7
  %s10 = scalar_select 0, %s9, %s7
  $region1: #{tpu_custom_call.1} parent=0
    #allocation3 [shape = 'u8[81920]{0}', space=vmem, size = 0x14000, scoped, tag = 'input window, operand 0']
    #allocation4 [shape = 'u8[57344]{0}', space=vmem, size = 0xe000, scoped, tag = 'input window, operand 3, single buffered']
    #allocation5 [shape = 's32[2]{0}', space=sflag, size = 0x8, scoped, tag = 'scoped memory for tpu_custom_call.1']
    #allocation6 [shape = 's32[2]{0}', space=sflag, size = 0x8, scoped, tag = 'scoped memory for tpu_custom_call.1']
    #allocation7 [shape = 'u8[16384]{0}', space=vmem, size = 0x4000, scoped, tag = 'output window, operand 0']
    %11 = vsyncpa [#allocation5], 0
    %12 = vsyncpa [#allocation6], 0
    %s13 = scalar_lea.sflag [#allocation6], 1
    %14 = vsyncpa %s13, 0
    loop: start=0, step=1, limit=4
    $region2: #{tpu_custom_call.1} parent=1 // loop_pre_header
      _
    $region3: #{tpu_custom_call.1} parent=1 // loop_header
      %s16 = sphi 0, %s20
      %p17 = scmp.ge.s32.totalorder %s16, 4
      %s26 = sphi 0, %s28
      %s29 = sphi 0, %s26
      %s30 = sphi 0, %s29
      %s46 = sphi 0, %s30
      %s52 = sphi 0, %s54
      %s55 = sphi 0, %s52
      %s56 = sphi 0, %s55
      %s72 = sphi 0, %s56
      %s76 = sphi 0, %s76
      %s78 = sphi 0, %s76
      %s79 = sphi 0, %s78
      %s93 = sphi 0, %s79
      %s97 = sphi 0, %s97
      %s99 = sphi 0, %s97
      %s100 = sphi 0, %s99
      %s114 = sphi 0, %s100
      %s118 = sphi 0, %s118
      %s120 = sphi 0, %s118
      %s121 = sphi 0, %s120
      %s135 = sphi 0, %s121
      %s139 = sphi 0, %s139
      %s141 = sphi 0, %s139
      %s142 = sphi 0, %s141
      %s156 = sphi 0, %s142
      %s162 = sphi 0, %s164
      %s165 = sphi 0, %s162
      %s166 = sphi 0, %s165
      %s182 = sphi 0, %s166
    $region4: #{tpu_custom_call.1} parent=1 // loop_header_branch
      %19 = sbr.rel (%p17) target = $region8
    $region5: #{tpu_custom_call.1} parent=1 // loop_body
      %s21 = ssub.s32 %s16, 1
      %s22 = ssub.s32 %s16, 2
      %s23 = sadd.s32 %s16, 1
      %s24 = ssub.s32 %s16, %s23
      %p25 = scmp.eq.s32.totalorder %s24, 0
      %s27 = sadd.s32 %s26, 1
      %s28 = scalar_select %p25, %s26, %s27
      %p31 = pneg %p25
      %p32 = scmp.eq.s32.totalorder %s16, 1
      %p33 = por %p31, %p32
      %p34 = scmp.ne.s32.totalorder %s26, %s29
      %p35 = scmp.eq.s32.totalorder %s16, 0
      %p36 = por %p34, %p35
      %p37 = scmp.ne.s32.totalorder %s26, %s29
      %p38 = scmp.eq.s32.totalorder %s21, 1
      %p39 = por %p37, %p38
      %p40 = scmp.ne.s32.totalorder %s29, %s30
      %p41 = scmp.eq.s32.totalorder %s21, 0
      %p42 = por %p40, %p41
      %p43 = scmp.ne.s32.totalorder %s29, %s30
      %p44 = scmp.eq.s32.totalorder %s22, 1
      %p45 = por %p43, %p44
      %p47 = scmp.ne.s32.totalorder %s30, %s46
      %p48 = scmp.eq.s32.totalorder %s22, 0
      %p49 = por %p47, %p48
      %s50 = ssub.s32 %s16, %s23
      %p51 = scmp.eq.s32.totalorder %s50, 0
      %s53 = sadd.s32 %s52, 1
      %s54 = scalar_select %p51, %s52, %s53
      %p57 = pneg %p51
      %p58 = scmp.eq.s32.totalorder %s16, 1
      %p59 = por %p57, %p58
      %p60 = scmp.ne.s32.totalorder %s52, %s55
      %p61 = scmp.eq.s32.totalorder %s16, 0
      %p62 = por %p60, %p61
      %p63 = scmp.ne.s32.totalorder %s52, %s55
      %p64 = scmp.eq.s32.totalorder %s21, 1
      %p65 = por %p63, %p64
      %p66 = scmp.ne.s32.totalorder %s55, %s56
      %p67 = scmp.eq.s32.totalorder %s21, 0
      %p68 = por %p66, %p67
      %p69 = scmp.ne.s32.totalorder %s55, %s56
      %p70 = scmp.eq.s32.totalorder %s22, 1
      %p71 = por %p69, %p70
      %p73 = scmp.ne.s32.totalorder %s56, %s72
      %p74 = scmp.eq.s32.totalorder %s22, 0
      %p75 = por %p73, %p74
      %s77 = sadd.s32 %s76, 1
      %p80 = scmp.eq.s32.totalorder %s16, 1
      %p81 = scmp.ne.s32.totalorder %s76, %s78
      %p82 = scmp.eq.s32.totalorder %s16, 0
      %p83 = por %p81, %p82
      %p84 = scmp.ne.s32.totalorder %s76, %s78
      %p85 = scmp.eq.s32.totalorder %s21, 1
      %p86 = por %p84, %p85
      %p87 = scmp.ne.s32.totalorder %s78, %s79
      %p88 = scmp.eq.s32.totalorder %s21, 0
      %p89 = por %p87, %p88
      %p90 = scmp.ne.s32.totalorder %s78, %s79
      %p91 = scmp.eq.s32.totalorder %s22, 1
      %p92 = por %p90, %p91
      %p94 = scmp.ne.s32.totalorder %s79, %s93
      %p95 = scmp.eq.s32.totalorder %s22, 0
      %p96 = por %p94, %p95
      %s98 = sadd.s32 %s97, 1
      %p101 = scmp.eq.s32.totalorder %s16, 1
      %p102 = scmp.ne.s32.totalorder %s97, %s99
      %p103 = scmp.eq.s32.totalorder %s16, 0
      %p104 = por %p102, %p103
      %p105 = scmp.ne.s32.totalorder %s97, %s99
      %p106 = scmp.eq.s32.totalorder %s21, 1
      %p107 = por %p105, %p106
      %p108 = scmp.ne.s32.totalorder %s99, %s100
      %p109 = scmp.eq.s32.totalorder %s21, 0
      %p110 = por %p108, %p109
      %p111 = scmp.ne.s32.totalorder %s99, %s100
      %p112 = scmp.eq.s32.totalorder %s22, 1
      %p113 = por %p111, %p112
      %p115 = scmp.ne.s32.totalorder %s100, %s114
      %p116 = scmp.eq.s32.totalorder %s22, 0
      %p117 = por %p115, %p116
      %s119 = sadd.s32 %s118, 1
      %p122 = scmp.eq.s32.totalorder %s16, 1
      %p123 = scmp.ne.s32.totalorder %s118, %s120
      %p124 = scmp.eq.s32.totalorder %s16, 0
      %p125 = por %p123, %p124
      %p126 = scmp.ne.s32.totalorder %s118, %s120
      %p127 = scmp.eq.s32.totalorder %s21, 1
      %p128 = por %p126, %p127
      %p129 = scmp.ne.s32.totalorder %s120, %s121
      %p130 = scmp.eq.s32.totalorder %s21, 0
      %p131 = por %p129, %p130
      %p132 = scmp.ne.s32.totalorder %s120, %s121
      %p133 = scmp.eq.s32.totalorder %s22, 1
      %p134 = por %p132, %p133
      %p136 = scmp.ne.s32.totalorder %s121, %s135
      %p137 = scmp.eq.s32.totalorder %s22, 0
      %p138 = por %p136, %p137
      %s140 = sadd.s32 %s139, 1
      %p143 = scmp.eq.s32.totalorder %s16, 1
      %p144 = scmp.ne.s32.totalorder %s139, %s141
      %p145 = scmp.eq.s32.totalorder %s16, 0
      %p146 = por %p144, %p145
      %p147 = scmp.ne.s32.totalorder %s139, %s141
      %p148 = scmp.eq.s32.totalorder %s21, 1
      %p149 = por %p147, %p148
      %p150 = scmp.ne.s32.totalorder %s141, %s142
      %p151 = scmp.eq.s32.totalorder %s21, 0
      %p152 = por %p150, %p151
      %p153 = scmp.ne.s32.totalorder %s141, %s142
      %p154 = scmp.eq.s32.totalorder %s22, 1
      %p155 = por %p153, %p154
      %p157 = scmp.ne.s32.totalorder %s142, %s156
      %p158 = scmp.eq.s32.totalorder %s22, 0
      %p159 = por %p157, %p158
      %s160 = ssub.s32 %s16, %s23
      %p161 = scmp.eq.s32.totalorder %s160, 0
      %s163 = sadd.s32 %s162, 1
      %s164 = scalar_select %p161, %s162, %s163
      %p167 = pneg %p161
      %p168 = scmp.eq.s32.totalorder %s16, 1
      %p169 = por %p167, %p168
      %p170 = scmp.ne.s32.totalorder %s162, %s165
      %p171 = scmp.eq.s32.totalorder %s16, 0
      %p172 = por %p170, %p171
      %p173 = scmp.ne.s32.totalorder %s162, %s165
      %p174 = scmp.eq.s32.totalorder %s21, 1
      %p175 = por %p173, %p174
      %p176 = scmp.ne.s32.totalorder %s165, %s166
      %p177 = scmp.eq.s32.totalorder %s21, 0
      %p178 = por %p176, %p177
      %p179 = scmp.ne.s32.totalorder %s165, %s166
      %p180 = scmp.eq.s32.totalorder %s22, 1
      %p181 = por %p179, %p180
      %p183 = scmp.ne.s32.totalorder %s166, %s182
      %p184 = scmp.eq.s32.totalorder %s22, 0
      %p185 = por %p183, %p184
      %p186 = scmp.le.s32.totalorder 1, %s16
      %p187 = scmp.lt.s32.totalorder %s16, 3
      %p188 = pnand %p186, %p187
      %p189 = pneg %p188
      // Predicated region
      $region9: #{tpu_custom_call.1} parent=5 // pred_check
        _
      $region10: #{tpu_custom_call.1} parent=5 // pred_check_branch
        %191 = sbr.rel (%p188) target = $region12
      $region11: #{tpu_custom_call.1} parent=5 // pred_region
        %s192 = ssub.s32 %s16, 1
        // Predicated region
        $region13: #{tpu_custom_call.1} parent=11 // pred_check
          %p193 = pneg %p89
        $region14: #{tpu_custom_call.1} parent=11 // pred_check_branch
          %195 = sbr.rel (%p193) target = $region16
        $region15: #{tpu_custom_call.1} parent=11 // pred_region
          _
        $region16: #{tpu_custom_call.1} parent=11 // pred_fallthru
          _
        // Predicated region
        $region17: #{tpu_custom_call.1} parent=11 // pred_check
          %p196 = pneg %p110
        $region18: #{tpu_custom_call.1} parent=11 // pred_check_branch
          %198 = sbr.rel (%p196) target = $region20
        $region19: #{tpu_custom_call.1} parent=11 // pred_region
          %s200 = ssub.s32 1792, 1792
          %201 = vsyncadd [#allocation5], %s200
          %s202 = sshll.u32 [#allocation4], 4
          %s203 = int_to_ptr.vmem [resolvable:$true] %s202
          %208 = dma.hbm_to_vmem [thread:$0]  %s3, 1792, %s203, [#allocation5], 256, 256, 16
        $region20: #{tpu_custom_call.1} parent=11 // pred_fallthru
          _
        // Predicated region
        $region21: #{tpu_custom_call.1} parent=11 // pred_check
          %p209 = pneg %p131
        $region22: #{tpu_custom_call.1} parent=11 // pred_check_branch
          %211 = sbr.rel (%p209) target = $region24
        $region23: #{tpu_custom_call.1} parent=11 // pred_region
          _
        $region24: #{tpu_custom_call.1} parent=11 // pred_fallthru
          _
        // Predicated region
        $region25: #{tpu_custom_call.1} parent=11 // pred_check
          %p212 = pneg %p152
        $region26: #{tpu_custom_call.1} parent=11 // pred_check_branch
          %214 = sbr.rel (%p212) target = $region28
        $region27: #{tpu_custom_call.1} parent=11 // pred_region
          _
        $region28: #{tpu_custom_call.1} parent=11 // pred_fallthru
          _
      $region12: #{tpu_custom_call.1} parent=5 // pred_fallthru
        _
      %p215 = scmp.lt.s32.totalorder %s16, 2
      // Predicated region
      $region29: #{tpu_custom_call.1} parent=5 // pred_check
        %p216 = pneg %p215
      $region30: #{tpu_custom_call.1} parent=5 // pred_check_branch
        %218 = sbr.rel (%p216) target = $region32
      $region31: #{tpu_custom_call.1} parent=5 // pred_region
        // Predicated region
        $region33: #{tpu_custom_call.1} parent=31 // pred_check
          %p219 = pneg %p36
        $region34: #{tpu_custom_call.1} parent=31 // pred_check_branch
          %221 = sbr.rel (%p219) target = $region36
        $region35: #{tpu_custom_call.1} parent=31 // pred_region
          %s222 = sand.u32 %s26, 1
          %s223 = sand.u32 %s26, 1
          %s224 = smul.addr %s223, 80
          %s225 = scalar_lea.vmem [#allocation3], %s224
          %s226 = smul.addr %s16, 8
          %s227 = scalar_lea.vmem %s0, %s226
          // Predicated region
          $region37: #{tpu_custom_call.1} parent=35 // pred_check
            _
          $region38: #{tpu_custom_call.1} parent=35 // pred_check_branch
            %229 = sbr.rel (0) target = $region40
          $region39: #{tpu_custom_call.1} parent=35 // pred_region
            // Predicated region
            $region41: #{tpu_custom_call.1} parent=39 // pred_check
              _
            $region42: #{tpu_custom_call.1} parent=39 // pred_check_branch
              %231 = sbr.rel (0) target = $region44
            $region43: #{tpu_custom_call.1} parent=39 // pred_region
              // Predicated region
              $region56: #{tpu_custom_call.1} parent=43 // pred_check
                _
              $region57: #{tpu_custom_call.1} parent=43 // pred_check_branch
                %264 = sbr.rel (0) target = $region59
              $region58: #{tpu_custom_call.1} parent=43 // pred_region
                loop: start=0, step=1, limit=1
                $region60: #{tpu_custom_call.1} parent=58 // loop_pre_header
                  _
                $region61: #{tpu_custom_call.1} parent=58 // loop_header
                  %s266 = sphi 0, %s270
                  %p267 = scmp.ge.s32.totalorder %s266, 1
                  %s271 = sphi %s227, %s227
                  %s272 = sphi %s225, %s225
                $region62: #{tpu_custom_call.1} parent=58 // loop_header_branch
                  %269 = sbr.rel (%p267) target = $region66
                $region63: #{tpu_custom_call.1} parent=58 // loop_body
                  %v273 = vld [vmem:[%s271] sm:$0xff]
                  %274 = vst [vmem:[%s272] sm:$0xff] %v273
                  %v275 = vld [vmem:[%s271 + $0x10] sm:$0xff]
                  %276 = vst [vmem:[%s272 + $0x8] sm:$0xff] %v275
                  %v277 = vld [vmem:[%s271 + $0x20] sm:$0xff]
                  %278 = vst [vmem:[%s272 + $0x10] sm:$0xff] %v277
                  %v279 = vld [vmem:[%s271 + $0x30] sm:$0xff]
                  %280 = vst [vmem:[%s272 + $0x18] sm:$0xff] %v279
                  %v281 = vld [vmem:[%s271 + $0x40] sm:$0xff]
                  %282 = vst [vmem:[%s272 + $0x20] sm:$0xff] %v281
                  %v283 = vld [vmem:[%s271 + $0x50] sm:$0xff]
                  %284 = vst [vmem:[%s272 + $0x28] sm:$0xff] %v283
                  %v285 = vld [vmem:[%s271 + $0x60] sm:$0xff]
                  %286 = vst [vmem:[%s272 + $0x30] sm:$0xff] %v285
                  %v287 = vld [vmem:[%s271 + $0x70] sm:$0xff]
                  %288 = vst [vmem:[%s272 + $0x38] sm:$0xff] %v287
                  %v289 = vld [vmem:[%s271 + $0x80] sm:$0xff]
                  %290 = vst [vmem:[%s272 + $0x40] sm:$0xff] %v289
                  %v291 = vld [vmem:[%s271 + $0x90] sm:$0xff]
                  %292 = vst [vmem:[%s272 + $0x48] sm:$0xff] %v291
                $region64: #{tpu_custom_call.1} parent=58 // loop_footer
                  %s270 = sadd.s32 1, %s266
                $region65: #{tpu_custom_call.1} parent=58 // loop_footer_branch
                  %265 = sbr.rel target = $region61
                $region66: #{tpu_custom_call.1} parent=58 // loop_exit
                  _
              $region59: #{tpu_custom_call.1} parent=43 // pred_fallthru
                _
              // Predicated region
              $region67: #{tpu_custom_call.1} parent=43 // pred_check
                _
              $region68: #{tpu_custom_call.1} parent=43 // pred_check_branch
                %294 = sbr.rel target = $region70
              $region69: #{tpu_custom_call.1} parent=43 // pred_region
                _
              $region70: #{tpu_custom_call.1} parent=43 // pred_fallthru
                _
            $region44: #{tpu_custom_call.1} parent=39 // pred_fallthru
              _
            // Predicated region
            $region45: #{tpu_custom_call.1} parent=39 // pred_check
              _
            $region46: #{tpu_custom_call.1} parent=39 // pred_check_branch
              %233 = sbr.rel target = $region48
            $region47: #{tpu_custom_call.1} parent=39 // pred_region
              loop: start=0, step=1, limit=1
              $region49: #{tpu_custom_call.1} parent=47 // loop_pre_header
                _
              $region50: #{tpu_custom_call.1} parent=47 // loop_header
                %s236 = sphi 0, %s240
                %p237 = scmp.ge.s32.totalorder %s236, 1
                %s241 = sphi %s227, %s227
                %s242 = sphi %s225, %s225
              $region51: #{tpu_custom_call.1} parent=47 // loop_header_branch
                %239 = sbr.rel (%p237) target = $region55
              $region52: #{tpu_custom_call.1} parent=47 // loop_body
                %v243 = vld [vmem:[%s241] sm:$0xff]
                %244 = vst [vmem:[%s242] sm:$0xff] %v243
                %v245 = vld [vmem:[%s241 + $0x10] sm:$0xff]
                %246 = vst [vmem:[%s242 + $0x8] sm:$0xff] %v245
                %v247 = vld [vmem:[%s241 + $0x20] sm:$0xff]
                %248 = vst [vmem:[%s242 + $0x10] sm:$0xff] %v247
                %v249 = vld [vmem:[%s241 + $0x30] sm:$0xff]
                %250 = vst [vmem:[%s242 + $0x18] sm:$0xff] %v249
                %v251 = vld [vmem:[%s241 + $0x40] sm:$0xff]
                %252 = vst [vmem:[%s242 + $0x20] sm:$0xff] %v251
                %v253 = vld [vmem:[%s241 + $0x50] sm:$0xff]
                %254 = vst [vmem:[%s242 + $0x28] sm:$0xff] %v253
                %v255 = vld [vmem:[%s241 + $0x60] sm:$0xff]
                %256 = vst [vmem:[%s242 + $0x30] sm:$0xff] %v255
                %v257 = vld [vmem:[%s241 + $0x70] sm:$0xff]
                %258 = vst [vmem:[%s242 + $0x38] sm:$0xff] %v257
                %v259 = vld [vmem:[%s241 + $0x80] sm:$0xff]
                %260 = vst [vmem:[%s242 + $0x40] sm:$0xff] %v259
                %v261 = vld [vmem:[%s241 + $0x90] sm:$0xff]
                %262 = vst [vmem:[%s242 + $0x48] sm:$0xff] %v261
              $region53: #{tpu_custom_call.1} parent=47 // loop_footer
                %s240 = sadd.s32 1, %s236
              $region54: #{tpu_custom_call.1} parent=47 // loop_footer_branch
                %235 = sbr.rel target = $region50
              $region55: #{tpu_custom_call.1} parent=47 // loop_exit
                _
            $region48: #{tpu_custom_call.1} parent=39 // pred_fallthru
              _
          $region40: #{tpu_custom_call.1} parent=35 // pred_fallthru
            _
          %295 = vnop
        $region36: #{tpu_custom_call.1} parent=31 // pred_fallthru
          _
        // Predicated region
        $region71: #{tpu_custom_call.1} parent=31 // pred_check
          %p296 = pneg %p62
        $region72: #{tpu_custom_call.1} parent=31 // pred_check_branch
          %298 = sbr.rel (%p296) target = $region74
        $region73: #{tpu_custom_call.1} parent=31 // pred_region
          %p299 = scmp.lt.s32.totalorder %s16, 1
          %s300 = scalar_select %p299, %s16, 1
          %s301 = smul.addr %s300, 8
          %s302 = scalar_lea.vmem %s1, %s301
        $region74: #{tpu_custom_call.1} parent=31 // pred_fallthru
          _
      $region32: #{tpu_custom_call.1} parent=5 // pred_fallthru
        _
      %p303 = scmp.le.s32.totalorder 1, %s16
      %p304 = scmp.lt.s32.totalorder %s16, 3
      %p305 = pnand %p303, %p304
      %p306 = pneg %p305
      // Predicated region
      $region75: #{tpu_custom_call.1} parent=5 // pred_check
        _
      $region76: #{tpu_custom_call.1} parent=5 // pred_check_branch
        %308 = sbr.rel (%p305) target = $region78
      $region77: #{tpu_custom_call.1} parent=5 // pred_region
        %s309 = ssub.s32 %s16, 1
        %s310 = sand.u32 %s29, 1
        %s311 = sand.u32 %s29, 1
        %s312 = smul.addr %s311, 80
        %s313 = scalar_lea.vmem [#allocation3], %s312
        // Predicated region
        $region79: #{tpu_custom_call.1} parent=77 // pred_check
          %p314 = pneg %p42
        $region80: #{tpu_custom_call.1} parent=77 // pred_check_branch
          %316 = sbr.rel (%p314) target = $region82
        $region81: #{tpu_custom_call.1} parent=77 // pred_region
          _
        $region82: #{tpu_custom_call.1} parent=77 // pred_fallthru
          _
        // Predicated region
        $region83: #{tpu_custom_call.1} parent=77 // pred_check
          %p317 = pneg %p110
        $region84: #{tpu_custom_call.1} parent=77 // pred_check_branch
          %319 = sbr.rel (%p317) target = $region86
        $region85: #{tpu_custom_call.1} parent=77 // pred_region
          %320 = dma.done [#allocation5], 1792
        $region86: #{tpu_custom_call.1} parent=77 // pred_fallthru
          _
        %s321 = sand.u32 %s29, 1
        %s322 = sand.u32 %s29, 1
        %s323 = smul.addr %s322, 80
        %s324 = scalar_lea.vmem [#allocation3], %s323
        %p325 = pneg %p42
        %p326 = pneg %p39
        %p327 = scmp.lt.s32.totalorder %s21, 1
        %s328 = scalar_select %p327, %s21, 1
        %s329 = smul.addr %s328, 8
        %s330 = scalar_lea.vmem %s1, %s329
        %p331 = pneg %p68
        %p332 = pneg %p65
        %p333 = pneg %p89
        %p334 = pneg %p86
        %p335 = pneg %p110
        %p336 = pneg %p107
        %p337 = pneg %p131
        %p338 = pneg %p128
        %p339 = pneg %p152
        %p340 = pneg %p149
        %p341 = pneg %p178
        %p342 = pneg %p175
        %s343 = sand.u32 %s165, 1
        %s344 = scalar_lea.sflag [#allocation6], %s343
        %s345 = sand.u32 %s165, 1
        %s346 = smul.addr %s345, 16
        %s347 = scalar_lea.vmem [#allocation7], %s346
        %p348 = scmp.lt.s32.totalorder %s21, 1
        %s349 = scalar_select %p348, %s21, 1
        %s350 = smul.addr %s349, 8
        %s351 = scalar_lea.vmem %s1, %s350
        %v353 = vld [vmem:[%s313] sm:$0xff]
        %v354 = vld [vmem:[%s313 + $0x8] sm:$0xff]
        %v355 = vld [vmem:[%s313 + $0x10] sm:$0xff]
        %v356 = vld [vmem:[%s313 + $0x18] sm:$0xff]
        %v357 = vld [vmem:[%s313 + $0x20] sm:$0xff]
        %v358 = vld [vmem:[%s313 + $0x28] sm:$0xff]
        %v359 = vld [vmem:[%s313 + $0x30] sm:$0xff]
        %v360 = vld [vmem:[%s313 + $0x38] sm:$0xff]
        %v361 = vld [vmem:[%s313 + $0x40] sm:$0xff]
        %v362 = vld [vmem:[%s313 + $0x48] sm:$0xff]
        %v363 = vpack.c.bf16 %v354, %v353
        %v364 = vpack.c.bf16 %v356, %v355
        %v365 = vpack.c.bf16 %v358, %v357
        %v366 = vpack.c.bf16 %v360, %v359
        %v367 = vpack.c.bf16 %v362, %v361
        %v368 = vld [vmem:[%s2] sm:$0xff]
        %v369 = vld [vmem:[%s2 + $0x8] sm:$0x77]
        %v370 = vld [vmem:[%s2 + $0x10] sm:$0x11]
        %v371 = vunpack.c.l.bf16 %v370
        %v372 = vunpack.c.h.bf16 %v370
        %v373 = vlaneseq
        %v374 = vshrl.u32 %v373, 7
        %v375 = vsub.s32 0, %v374
        %v376 = vrot.slane %v371, %v375
        %v377 = vlaneseq
        %v378 = vshrl.u32 %v377, 7
        %v379 = vsub.s32 0, %v378
        %v380 = vrot.slane %v372, %v379
        %v383 = vunpack.c.l.b16 %v368
        %v384 = vunpack.c.h.b16 %v368
        %v385 = vunpack.c.l.b16 %v369
        %v386 = vunpack.c.h.b16 %v369
        %v387 = vpack.c.b16 %v385, %v383
        %v388 = vpack.c.b16 %v386, %v384
        %vm389 = vcmask 105472
        %v391 = vsel %vm389, %v363, 0
        %v394 = vsel %vm389, %v364, 0
        %v397 = vsel %vm389, %v365, 0
        %v400 = vsel %vm389, %v366, 0
        %v403 = vsel %vm389, %v367, 0
        %vm405 = vcmask 1045504
        %vm406 = vcmask 1046528
        %v407 = vsel %vm405, 4294967295, 65535
        %v408 = vsel %vm406, %v407, 0
        %v410 = vand.u32 %v387, %v408
        %v413 = vand.u32 %v388, %v408
        %415 = vmatprep.subr.bf16.mxu0 %v413
        %416 = vmatpush1.bf16.msra.mxu0 %v410
        %417 = vmatprep.subr.bf16.mxu0 0
        %418 = vmatpush1.bf16.msra.mxu0 0
        %419 = vmatprep.subr.bf16.mxu0 0
        %420 = vmatpush1.bf16.msra.mxu0 0
        %421 = vmatprep.subr.bf16.mxu0 0
        %422 = vmatpush1.bf16.msra.mxu0 0
        %423 = vmatprep.subr.bf16.mxu0 0
        %424 = vmatpush1.bf16.msra.mxu0 0
        %425 = vmatprep.subr.bf16.mxu0 0
        %426 = vmatpush1.bf16.msra.mxu0 0
        %427 = vmatprep.subr.bf16.mxu0 0
        %428 = vmatpush1.bf16.msra.mxu0 0
        %429 = vmatprep.subr.bf16.mxu0 0
        %430 = vmatpush1.bf16.msra.mxu0 0
        %431 = vmatprep.subr.bf16.mxu0 0
        %432 = vmatpush1.bf16.msra.mxu0 0
        %433 = vmatprep.subr.bf16.mxu0 0
        %434 = vmatpush1.bf16.msra.mxu0 0
        %435 = vmatprep.subr.bf16.mxu0 0
        %436 = vmatpush1.bf16.msra.mxu0 0
        %437 = vmatprep.subr.bf16.mxu0 0
        %438 = vmatpush1.bf16.msra.mxu0 0
        %439 = vmatprep.subr.bf16.mxu0 0
        %440 = vmatpush1.bf16.msra.mxu0 0
        %441 = vmatprep.subr.bf16.mxu0 0
        %442 = vmatpush1.bf16.msra.mxu0 0
        %443 = vmatprep.subr.bf16.mxu0 0
        %444 = vmatpush1.bf16.msra.mxu0 0
        %445 = vmatprep.subr.bf16.mxu0 0
        %446 = vmatpush1.bf16.msra.mxu0 0
        %447 = vmatprep.mubr.bf16.mxu0 0
        %448 = vmatmul.mubr.bf16.gmra.mrb[0].mxu0 %v391
        %v449 = vpop.f32.mrb[0].mxu0
        %v450 = vadd.f32 %v376, %v449
        %v451 = vpop.f32.mrb[0].mxu0
        %v452 = vadd.f32 %v380, %v451
        %v453 = vpop.f32.mrb[0].mxu0
        %v454 = vadd.f32 %v376, %v453
        %v455 = vpop.f32.mrb[0].mxu0
        %v456 = vadd.f32 %v380, %v455
        %457 = vmatprep.mubr.bf16.mxu0 0
        %458 = vmatmul.mubr.bf16.gmra.mrb[0].mxu0 %v394
        %v459 = vpop.f32.mrb[0].mxu0
        %v460 = vadd.f32 %v376, %v459
        %v461 = vpop.f32.mrb[0].mxu0
        %v462 = vadd.f32 %v380, %v461
        %v463 = vpop.f32.mrb[0].mxu0
        %v464 = vadd.f32 %v376, %v463
        %v465 = vpop.f32.mrb[0].mxu0
        %v466 = vadd.f32 %v380, %v465
        %467 = vmatprep.mubr.bf16.mxu0 0
        %468 = vmatmul.mubr.bf16.gmra.mrb[0].mxu0 %v397
        %v469 = vpop.f32.mrb[0].mxu0
        %v470 = vadd.f32 %v376, %v469
        %v471 = vpop.f32.mrb[0].mxu0
        %v472 = vadd.f32 %v380, %v471
        %v473 = vpop.f32.mrb[0].mxu0
        %v474 = vadd.f32 %v376, %v473
        %v475 = vpop.f32.mrb[0].mxu0
        %v476 = vadd.f32 %v380, %v475
        %477 = vmatprep.mubr.bf16.mxu0 0
        %478 = vmatmul.mubr.bf16.gmra.mrb[0].mxu0 %v400
        %v479 = vpop.f32.mrb[0].mxu0
        %v480 = vadd.f32 %v376, %v479
        %v481 = vpop.f32.mrb[0].mxu0
        %v482 = vadd.f32 %v380, %v481
        %v483 = vpop.f32.mrb[0].mxu0
        %v484 = vadd.f32 %v376, %v483
        %v485 = vpop.f32.mrb[0].mxu0
        %v486 = vadd.f32 %v380, %v485
        %487 = vmatprep.mubr.bf16.mxu0 0
        %488 = vmatmul.mubr.bf16.gmra.mrb[0].mxu0 %v403
        %v489 = vpop.f32.mrb[0].mxu0
        %v490 = vadd.f32 %v376, %v489
        %v491 = vpop.f32.mrb[0].mxu0
        %v492 = vadd.f32 %v380, %v491
        %v493 = vpop.f32.mrb[0].mxu0
        %v494 = vadd.f32 %v376, %v493
        %v495 = vpop.f32.mrb[0].mxu0
        %v496 = vadd.f32 %v380, %v495
        %497 = vdwg.mxu0
        %v498 = vmax.f32 %v450, 0.0
        %v499 = vmax.f32 %v452, 0.0
        %v500 = vmax.f32 %v454, 0.0
        %v501 = vmax.f32 %v456, 0.0
        %v502 = vmax.f32 %v460, 0.0
        %v503 = vmax.f32 %v462, 0.0
        %v504 = vmax.f32 %v464, 0.0
        %v505 = vmax.f32 %v466, 0.0
        %v506 = vmax.f32 %v470, 0.0
        %v507 = vmax.f32 %v472, 0.0
        %v508 = vmax.f32 %v474, 0.0
        %v509 = vmax.f32 %v476, 0.0
        %v510 = vmax.f32 %v480, 0.0
        %v511 = vmax.f32 %v482, 0.0
        %v512 = vmax.f32 %v484, 0.0
        %v513 = vmax.f32 %v486, 0.0
        %v514 = vmax.f32 %v490, 0.0
        %v515 = vmax.f32 %v492, 0.0
        %v516 = vmax.f32 %v494, 0.0
        %v517 = vmax.f32 %v496, 0.0
        %v518 = vpack.c.bf16 %v500, %v498
        %v519 = vpack.c.bf16 %v501, %v499
        %v520 = vpack.c.bf16 %v504, %v502
        %v521 = vpack.c.bf16 %v505, %v503
        %v522 = vpack.c.bf16 %v508, %v506
        %v523 = vpack.c.bf16 %v509, %v507
        %v524 = vpack.c.bf16 %v512, %v510
        %v525 = vpack.c.bf16 %v513, %v511
        %v526 = vpack.c.bf16 %v516, %v514
        %v527 = vpack.c.bf16 %v517, %v515
        %v528 = vld [vmem:[%s2 + $0x20] sm:$0xf]
        %v529 = vld [vmem:[%s2 + $0x28] sm:$0xf]
        %v530 = vld [vmem:[%s2 + $0x30] sm:$0xf]
        %v531 = vld [vmem:[%s2 + $0x38] sm:$0xf]
        %v532 = vld [vmem:[%s2 + $0x40] sm:$0xf]
        %v533 = vld [vmem:[%s2 + $0x48] sm:$0xf]
        %v534 = vld [vmem:[%s2 + $0x50] sm:$0xf]
        %v535 = vld [vmem:[%s2 + $0x58] sm:$0xf]
        %v536 = vld [vmem:[%s2 + $0x60] sm:$0xf]
        %v537 = vld [vmem:[%s2 + $0x68] sm:$0xf]
        %v538 = vld [vmem:[%s2 + $0x70] sm:$0xf]
        %v539 = vld [vmem:[%s2 + $0x78] sm:$0xf]
        %v540 = vld [vmem:[%s2 + $0x80] sm:$0xf]
        %v541 = vld [vmem:[%s2 + $0x88] sm:$0xf]
        %v542 = vld [vmem:[%s2 + $0x90] sm:$0xf]
        %v543 = vld [vmem:[%s2 + $0x98] sm:$0xf]
        %v544 = vld [vmem:[%s2 + $0xa0] sm:$0xf]
        %v545 = vld [vmem:[%s2 + $0xa8] sm:$0xf]
        %v546 = vld [vmem:[%s2 + $0xb0] sm:$0x7]
        %v547 = vld [vmem:[%s2 + $0xc0] sm:$0x1]
        %v548 = vunpack.c.l.bf16 %v547
        %v549 = vlaneseq
        %v550 = vshrl.u32 %v549, 7
        %v551 = vsub.s32 0, %v550
        %v552 = vrot.slane %v548, %v551
        %v572 = vunpack.c.l.b16 %v528
        %v573 = vunpack.c.l.b16 %v529
        %v574 = vunpack.c.l.b16 %v530
        %v575 = vunpack.c.l.b16 %v531
        %v576 = vunpack.c.l.b16 %v532
        %v577 = vunpack.c.l.b16 %v533
        %v578 = vunpack.c.l.b16 %v534
        %v579 = vunpack.c.l.b16 %v535
        %v580 = vunpack.c.l.b16 %v536
        %v581 = vunpack.c.l.b16 %v537
        %v582 = vunpack.c.l.b16 %v538
        %v583 = vunpack.c.l.b16 %v539
        %v584 = vunpack.c.l.b16 %v540
        %v585 = vunpack.c.l.b16 %v541
        %v586 = vunpack.c.l.b16 %v542
        %v587 = vunpack.c.l.b16 %v543
        %v588 = vunpack.c.l.b16 %v544
        %v589 = vunpack.c.l.b16 %v545
        %v590 = vunpack.c.l.b16 %v546
        %v591 = vpack.c.b16 %v573, %v572
        %v592 = vpack.c.b16 %v575, %v574
        %v593 = vpack.c.b16 %v577, %v576
        %v594 = vpack.c.b16 %v579, %v578
        %v595 = vpack.c.b16 %v581, %v580
        %v596 = vpack.c.b16 %v583, %v582
        %v597 = vpack.c.b16 %v585, %v584
        %v598 = vpack.c.b16 %v587, %v586
        %v599 = vpack.c.b16 %v589, %v588
        %v600 = vpack.c.b16 %v590, %v590
        %vm610 = vcmask 179200
        %v612 = vsel %vm610, %v519, 0
        %v615 = vsel %vm610, %v521, 0
        %v618 = vsel %vm610, %v523, 0
        %v621 = vsel %vm610, %v525, 0
        %v624 = vsel %vm610, %v527, 0
        %vm626 = vcmask 1042432
        %v628 = vsel %vm626, %v600, 0
        %630 = vmatprep.subr.bf16.mxu0 0
        %631 = vmatpush1.bf16.msra.mxu0 %v591
        %632 = vmatprep.subr.bf16.mxu0 0
        %633 = vmatpush1.bf16.msra.mxu0 %v592
        %634 = vmatprep.subr.bf16.mxu0 0
        %635 = vmatpush1.bf16.msra.mxu0 %v593
        %636 = vmatprep.subr.bf16.mxu0 0
        %637 = vmatpush1.bf16.msra.mxu0 %v594
        %638 = vmatprep.subr.bf16.mxu0 0
        %639 = vmatpush1.bf16.msra.mxu0 %v595
        %640 = vmatprep.subr.bf16.mxu0 0
        %641 = vmatpush1.bf16.msra.mxu0 %v596
        %642 = vmatprep.subr.bf16.mxu0 0
        %643 = vmatpush1.bf16.msra.mxu0 %v597
        %644 = vmatprep.subr.bf16.mxu0 0
        %645 = vmatpush1.bf16.msra.mxu0 %v598
        %646 = vmatprep.subr.bf16.mxu0 0
        %647 = vmatpush1.bf16.msra.mxu0 %v599
        %648 = vmatprep.subr.bf16.mxu0 0
        %649 = vmatpush1.bf16.msra.mxu0 %v628
        %650 = vmatprep.subr.bf16.mxu0 0
        %651 = vmatpush1.bf16.msra.mxu0 0
        %652 = vmatprep.subr.bf16.mxu0 0
        %653 = vmatpush1.bf16.msra.mxu0 0
        %654 = vmatprep.subr.bf16.mxu0 0
        %655 = vmatpush1.bf16.msra.mxu0 0
        %656 = vmatprep.subr.bf16.mxu0 0
        %657 = vmatpush1.bf16.msra.mxu0 0
        %658 = vmatprep.subr.bf16.mxu0 0
        %659 = vmatpush1.bf16.msra.mxu0 0
        %660 = vmatprep.subr.bf16.mxu0 0
        %661 = vmatpush1.bf16.msra.mxu0 0
        %662 = vmatprep.mubr.bf16.mxu0 %v612
        %663 = vmatmul.mubr.bf16.gmra.mrb[0].mxu0 %v518
        %v664 = vpop.f32.mrb[0].mxu0
        %v665 = vadd.f32 %v552, %v664
        %v666 = vpop.f32.mrb[0].mxu0
        %v667 = vpop.f32.mrb[0].mxu0
        %v668 = vadd.f32 %v552, %v667
        %v669 = vpop.f32.mrb[0].mxu0
        %670 = vmatprep.mubr.bf16.mxu0 %v615
        %671 = vmatmul.mubr.bf16.gmra.mrb[0].mxu0 %v520
        %v672 = vpop.f32.mrb[0].mxu0
        %v673 = vadd.f32 %v552, %v672
        %v674 = vpop.f32.mrb[0].mxu0
        %v675 = vpop.f32.mrb[0].mxu0
        %v676 = vadd.f32 %v552, %v675
        %v677 = vpop.f32.mrb[0].mxu0
        %678 = vmatprep.mubr.bf16.mxu0 %v618
        %679 = vmatmul.mubr.bf16.gmra.mrb[0].mxu0 %v522
        %v680 = vpop.f32.mrb[0].mxu0
        %v681 = vadd.f32 %v552, %v680
        %v682 = vpop.f32.mrb[0].mxu0
        %v683 = vpop.f32.mrb[0].mxu0
        %v684 = vadd.f32 %v552, %v683
        %v685 = vpop.f32.mrb[0].mxu0
        %686 = vmatprep.mubr.bf16.mxu0 %v621
        %687 = vmatmul.mubr.bf16.gmra.mrb[0].mxu0 %v524
        %v688 = vpop.f32.mrb[0].mxu0
        %v689 = vadd.f32 %v552, %v688
        %v690 = vpop.f32.mrb[0].mxu0
        %v691 = vpop.f32.mrb[0].mxu0
        %v692 = vadd.f32 %v552, %v691
        %v693 = vpop.f32.mrb[0].mxu0
        %694 = vmatprep.mubr.bf16.mxu0 %v624
        %695 = vmatmul.mubr.bf16.gmra.mrb[0].mxu0 %v526
        %v696 = vpop.f32.mrb[0].mxu0
        %v697 = vadd.f32 %v552, %v696
        %v698 = vpop.f32.mrb[0].mxu0
        %v699 = vpop.f32.mrb[0].mxu0
        %v700 = vadd.f32 %v552, %v699
        %v701 = vpop.f32.mrb[0].mxu0
        %702 = vdwg.mxu0
        %v703 = vmax.f32 %v665, 0.0
        %v704 = vmax.f32 %v668, 0.0
        %v705 = vmax.f32 %v673, 0.0
        %v706 = vmax.f32 %v676, 0.0
        %v707 = vmax.f32 %v681, 0.0
        %v708 = vmax.f32 %v684, 0.0
        %v709 = vmax.f32 %v689, 0.0
        %v710 = vmax.f32 %v692, 0.0
        %v711 = vmax.f32 %v697, 0.0
        %v712 = vmax.f32 %v700, 0.0
        %v713 = vpack.c.bf16 %v704, %v703
        %v714 = vpack.c.bf16 %v706, %v705
        %v715 = vpack.c.bf16 %v708, %v707
        %v716 = vpack.c.bf16 %v710, %v709
        %v717 = vpack.c.bf16 %v712, %v711
        %v718 = vld [vmem:[%s2 + $0xd0] sm:$0xf]
        %v719 = vld [vmem:[%s2 + $0xd8] sm:$0xf]
        %v720 = vld [vmem:[%s2 + $0xe0] sm:$0xf]
        %v721 = vld [vmem:[%s2 + $0xe8] sm:$0xf]
        %v722 = vld [vmem:[%s2 + $0xf0] sm:$0xf]
        %v723 = vld [vmem:[%s2 + $0xf8] sm:$0xf]
        %v724 = vld [vmem:[%s2 + $0x100] sm:$0xf]
        %v725 = vld [vmem:[%s2 + $0x108] sm:$0xf]
        %v726 = vld [vmem:[%s2 + $0x110] sm:$0xf]
        %v727 = vld [vmem:[%s2 + $0x118] sm:$0xf]
        %v728 = vld [vmem:[%s2 + $0x120] sm:$0xf]
        %v729 = vld [vmem:[%s2 + $0x128] sm:$0xf]
        %v730 = vld [vmem:[%s2 + $0x130] sm:$0x3]
        %v731 = vld [vmem:[%s2 + $0x140] sm:$0x1]
        %v732 = vunpack.c.l.bf16 %v731
        %v733 = vlaneseq
        %v734 = vshrl.u32 %v733, 7
        %v735 = vsub.s32 0, %v734
        %v736 = vrot.slane %v732, %v735
        %v750 = vunpack.c.l.b16 %v718
        %v751 = vunpack.c.l.b16 %v719
        %v752 = vunpack.c.l.b16 %v720
        %v753 = vunpack.c.l.b16 %v721
        %v754 = vunpack.c.l.b16 %v722
        %v755 = vunpack.c.l.b16 %v723
        %v756 = vunpack.c.l.b16 %v724
        %v757 = vunpack.c.l.b16 %v725
        %v758 = vunpack.c.l.b16 %v726
        %v759 = vunpack.c.l.b16 %v727
        %v760 = vunpack.c.l.b16 %v728
        %v761 = vunpack.c.l.b16 %v729
        %v762 = vunpack.c.l.b16 %v730
        %v763 = vpack.c.b16 %v751, %v750
        %v764 = vpack.c.b16 %v753, %v752
        %v765 = vpack.c.b16 %v755, %v754
        %v766 = vpack.c.b16 %v757, %v756
        %v767 = vpack.c.b16 %v759, %v758
        %v768 = vpack.c.b16 %v761, %v760
        %v769 = vpack.c.b16 %v762, %v762
        %vm776 = vcmask 818176
        %v778 = vsel %vm776, %v713, 0
        %v781 = vsel %vm776, %v714, 0
        %v784 = vsel %vm776, %v715, 0
        %v787 = vsel %vm776, %v716, 0
        %v790 = vsel %vm776, %v717, 0
        %vm792 = vcmask 1041408
        %v794 = vsel %vm792, %v769, 0
        %796 = vmatprep.subr.bf16.mxu0 0
        %797 = vmatpush1.bf16.msra.mxu0 %v763
        %798 = vmatprep.subr.bf16.mxu0 0
        %799 = vmatpush1.bf16.msra.mxu0 %v764
        %800 = vmatprep.subr.bf16.mxu0 0
        %801 = vmatpush1.bf16.msra.mxu0 %v765
        %802 = vmatprep.subr.bf16.mxu0 0
        %803 = vmatpush1.bf16.msra.mxu0 %v766
        %804 = vmatprep.subr.bf16.mxu0 0
        %805 = vmatpush1.bf16.msra.mxu0 %v767
        %806 = vmatprep.subr.bf16.mxu0 0
        %807 = vmatpush1.bf16.msra.mxu0 %v768
        %808 = vmatprep.subr.bf16.mxu0 0
        %809 = vmatpush1.bf16.msra.mxu0 %v794
        %810 = vmatprep.subr.bf16.mxu0 0
        %811 = vmatpush1.bf16.msra.mxu0 0
        %812 = vmatprep.subr.bf16.mxu0 0
        %813 = vmatpush1.bf16.msra.mxu0 0
        %814 = vmatprep.subr.bf16.mxu0 0
        %815 = vmatpush1.bf16.msra.mxu0 0
        %816 = vmatprep.subr.bf16.mxu0 0
        %817 = vmatpush1.bf16.msra.mxu0 0
        %818 = vmatprep.subr.bf16.mxu0 0
        %819 = vmatpush1.bf16.msra.mxu0 0
        %820 = vmatprep.subr.bf16.mxu0 0
        %821 = vmatpush1.bf16.msra.mxu0 0
        %822 = vmatprep.subr.bf16.mxu0 0
        %823 = vmatpush1.bf16.msra.mxu0 0
        %824 = vmatprep.subr.bf16.mxu0 0
        %825 = vmatpush1.bf16.msra.mxu0 0
        %826 = vmatprep.subr.bf16.mxu0 0
        %827 = vmatpush1.bf16.msra.mxu0 0
        %828 = vmatprep.mubr.bf16.mxu0 0
        %829 = vmatmul.mubr.bf16.gmra.mrb[0].mxu0 %v778
        %v830 = vpop.f32.mrb[0].mxu0
        %v831 = vadd.f32 %v736, %v830
        %v832 = vpop.f32.mrb[0].mxu0
        %v833 = vpop.f32.mrb[0].mxu0
        %v834 = vadd.f32 %v736, %v833
        %v835 = vpop.f32.mrb[0].mxu0
        %836 = vmatprep.mubr.bf16.mxu0 0
        %837 = vmatmul.mubr.bf16.gmra.mrb[0].mxu0 %v781
        %v838 = vpop.f32.mrb[0].mxu0
        %v839 = vadd.f32 %v736, %v838
        %v840 = vpop.f32.mrb[0].mxu0
        %v841 = vpop.f32.mrb[0].mxu0
        %v842 = vadd.f32 %v736, %v841
        %v843 = vpop.f32.mrb[0].mxu0
        %844 = vmatprep.mubr.bf16.mxu0 0
        %845 = vmatmul.mubr.bf16.gmra.mrb[0].mxu0 %v784
        %v846 = vpop.f32.mrb[0].mxu0
        %v847 = vadd.f32 %v736, %v846
        %v848 = vpop.f32.mrb[0].mxu0
        %v849 = vpop.f32.mrb[0].mxu0
        %v850 = vadd.f32 %v736, %v849
        %v851 = vpop.f32.mrb[0].mxu0
        %852 = vmatprep.mubr.bf16.mxu0 0
        %853 = vmatmul.mubr.bf16.gmra.mrb[0].mxu0 %v787
        %v854 = vpop.f32.mrb[0].mxu0
        %v855 = vadd.f32 %v736, %v854
        %v856 = vpop.f32.mrb[0].mxu0
        %v857 = vpop.f32.mrb[0].mxu0
        %v858 = vadd.f32 %v736, %v857
        %v859 = vpop.f32.mrb[0].mxu0
        %860 = vmatprep.mubr.bf16.mxu0 0
        %861 = vmatmul.mubr.bf16.gmra.mrb[0].mxu0 %v790
        %v862 = vpop.f32.mrb[0].mxu0
        %v863 = vadd.f32 %v736, %v862
        %v864 = vpop.f32.mrb[0].mxu0
        %v865 = vpop.f32.mrb[0].mxu0
        %v866 = vadd.f32 %v736, %v865
        %v867 = vpop.f32.mrb[0].mxu0
        %868 = vdwg.mxu0
        %v869 = vpack.c.bf16 %v834, %v831
        %v870 = vpack.c.bf16 %v842, %v839
        %v871 = vpack.c.bf16 %v850, %v847
        %v872 = vpack.c.bf16 %v858, %v855
        %v873 = vpack.c.bf16 %v866, %v863
        %v874 = vld [vmem:[#allocation4] sm:$0xff]
        %v875 = vld [vmem:[#allocation4 + $0x8] sm:$0xff]
        %v876 = vld [vmem:[#allocation4 + $0x10] sm:$0xff]
        %v877 = vld [vmem:[#allocation4 + $0x18] sm:$0xff]
        %v878 = vld [vmem:[#allocation4 + $0x20] sm:$0xff]
        %v879 = vld [vmem:[#allocation4 + $0x28] sm:$0xff]
        %v880 = vld [vmem:[#allocation4 + $0x30] sm:$0xff]
        %v881 = vld [vmem:[#allocation4 + $0x38] sm:$0xff]
        %v882 = vld [vmem:[#allocation4 + $0x40] sm:$0xff]
        %v883 = vld [vmem:[#allocation4 + $0x48] sm:$0xff]
        %v884 = vld [vmem:[#allocation4 + $0x50] sm:$0xff]
        %v885 = vld [vmem:[#allocation4 + $0x58] sm:$0xff]
        %v886 = vld [vmem:[#allocation4 + $0x60] sm:$0x11]
        %v887 = vld [vmem:[#allocation4 + $0x68] sm:$0x11]
        %s888 = scalar_lea.vmem %s4, 224
        %v889 = vld [vmem:[%s888] ss:$8 sm:$0xf]
        %v891 = vlaneseq
        %v892 = vshrl.u32 %v891, 7
        %v893 = vsub.s32 0, %v892
        %v894 = vrot.slane %v889, %v893
        %v895 = vlaneseq
        %v896 = vshrl.u32 %v895, 7
        %v897 = vsub.s32 1, %v896
        %v898 = vrot.slane %v889, %v897
        %v899 = vlaneseq
        %v900 = vshrl.u32 %v899, 7
        %v901 = vsub.s32 2, %v900
        %v902 = vrot.slane %v889, %v901
        %v903 = vlaneseq
        %v904 = vshrl.u32 %v903, 7
        %v905 = vsub.s32 3, %v904
        %v906 = vrot.slane %v889, %v905
        %v925 = vunpack.c.l.b16 %v874
        %v926 = vunpack.c.h.b16 %v874
        %v927 = vunpack.c.l.b16 %v875
        %v928 = vunpack.c.h.b16 %v875
        %v929 = vunpack.c.l.b16 %v876
        %v930 = vunpack.c.h.b16 %v876
        %v931 = vunpack.c.l.b16 %v877
        %v932 = vunpack.c.h.b16 %v877
        %v933 = vunpack.c.l.b16 %v878
        %v934 = vunpack.c.h.b16 %v878
        %v935 = vunpack.c.l.b16 %v879
        %v936 = vunpack.c.h.b16 %v879
        %v937 = vunpack.c.l.b16 %v880
        %v938 = vunpack.c.h.b16 %v880
        %v939 = vunpack.c.l.b16 %v881
        %v940 = vunpack.c.h.b16 %v881
        %v941 = vunpack.c.l.b16 %v882
        %v942 = vunpack.c.h.b16 %v882
        %v943 = vunpack.c.l.b16 %v883
        %v944 = vunpack.c.h.b16 %v883
        %v945 = vunpack.c.l.b16 %v884
        %v946 = vunpack.c.h.b16 %v884
        %v947 = vunpack.c.l.b16 %v885
        %v948 = vunpack.c.h.b16 %v885
        %v949 = vunpack.c.l.b16 %v886
        %v950 = vunpack.c.h.b16 %v886
        %v951 = vunpack.c.l.b16 %v887
        %v952 = vunpack.c.h.b16 %v887
        %v953 = vpack.c.b16 %v929, %v925
        %v954 = vpack.c.b16 %v930, %v926
        %v955 = vpack.c.b16 %v931, %v927
        %v956 = vpack.c.b16 %v932, %v928
        %v957 = vpack.c.b16 %v937, %v933
        %v958 = vpack.c.b16 %v938, %v934
        %v959 = vpack.c.b16 %v939, %v935
        %v960 = vpack.c.b16 %v940, %v936
        %v961 = vpack.c.b16 %v945, %v941
        %v962 = vpack.c.b16 %v946, %v942
        %v963 = vpack.c.b16 %v947, %v943
        %v964 = vpack.c.b16 %v948, %v944
        %v965 = vpack.c.b16 %v949, %v949
        %v966 = vpack.c.b16 %v950, %v950
        %v967 = vpack.c.b16 %v951, %v951
        %v968 = vpack.c.b16 %v952, %v952
        %vm981 = vcmask 408576
        %v983 = vsel %vm981, %v869, 0
        %v986 = vsel %vm981, %v870, 0
        %v989 = vsel %vm981, %v871, 0
        %v992 = vsel %vm981, %v872, 0
        %v995 = vsel %vm981, %v873, 0
        %vm997 = vcmask 1040384
        %v999 = vsel %vm997, %v965, 0
        %v1002 = vsel %vm997, %v966, 0
        %v1005 = vsel %vm997, %v967, 0
        %v1008 = vsel %vm997, %v968, 0
        %1010 = vmatprep.subr.bf16.mxu0 %v954
        %1011 = vmatpush1.bf16.msra.mxu0 %v953
        %1012 = vmatprep.subr.bf16.mxu0 %v958
        %1013 = vmatpush1.bf16.msra.mxu0 %v957
        %1014 = vmatprep.subr.bf16.mxu0 %v962
        %1015 = vmatpush1.bf16.msra.mxu0 %v961
        %1016 = vmatprep.subr.bf16.mxu0 %v1002
        %1017 = vmatpush1.bf16.msra.mxu0 %v999
        %1018 = vmatprep.subr.bf16.mxu0 0
        %1019 = vmatpush1.bf16.msra.mxu0 0
        %1020 = vmatprep.subr.bf16.mxu0 0
        %1021 = vmatpush1.bf16.msra.mxu0 0
        %1022 = vmatprep.subr.bf16.mxu0 0
        %1023 = vmatpush1.bf16.msra.mxu0 0
        %1024 = vmatprep.subr.bf16.mxu0 0
        %1025 = vmatpush1.bf16.msra.mxu0 0
        %1026 = vmatprep.subr.bf16.mxu0 0
        %1027 = vmatpush1.bf16.msra.mxu0 0
        %1028 = vmatprep.subr.bf16.mxu0 0
        %1029 = vmatpush1.bf16.msra.mxu0 0
        %1030 = vmatprep.subr.bf16.mxu0 0
        %1031 = vmatpush1.bf16.msra.mxu0 0
        %1032 = vmatprep.subr.bf16.mxu0 0
        %1033 = vmatpush1.bf16.msra.mxu0 0
        %1034 = vmatprep.subr.bf16.mxu0 0
        %1035 = vmatpush1.bf16.msra.mxu0 0
        %1036 = vmatprep.subr.bf16.mxu0 0
        %1037 = vmatpush1.bf16.msra.mxu0 0
        %1038 = vmatprep.subr.bf16.mxu0 0
        %1039 = vmatpush1.bf16.msra.mxu0 0
        %1040 = vmatprep.subr.bf16.mxu0 0
        %1041 = vmatpush1.bf16.msra.mxu0 0
        %1042 = vmatprep.mubr.bf16.mxu0 0
        %1043 = vmatmul.mubr.bf16.gmra.mrb[0].mxu0 %v983
        %v1044 = vpop.f32.mrb[0].mxu0
        %v1045 = vadd.f32 %v894, %v1044
        %v1046 = vpop.f32.mrb[0].mxu0
        %v1047 = vadd.f32 %v898, %v1046
        %v1048 = vpop.f32.mrb[0].mxu0
        %v1049 = vadd.f32 %v894, %v1048
        %v1050 = vpop.f32.mrb[0].mxu0
        %v1051 = vadd.f32 %v898, %v1050
        %1052 = vmatprep.mubr.bf16.mxu0 0
        %1053 = vmatmul.mubr.bf16.gmra.mrb[0].mxu0 %v986
        %v1054 = vpop.f32.mrb[0].mxu0
        %v1055 = vadd.f32 %v894, %v1054
        %v1056 = vpop.f32.mrb[0].mxu0
        %v1057 = vadd.f32 %v898, %v1056
        %v1058 = vpop.f32.mrb[0].mxu0
        %v1059 = vadd.f32 %v894, %v1058
        %v1060 = vpop.f32.mrb[0].mxu0
        %v1061 = vadd.f32 %v898, %v1060
        %1062 = vmatprep.mubr.bf16.mxu0 0
        %1063 = vmatmul.mubr.bf16.gmra.mrb[0].mxu0 %v989
        %v1064 = vpop.f32.mrb[0].mxu0
        %v1065 = vadd.f32 %v894, %v1064
        %v1066 = vpop.f32.mrb[0].mxu0
        %v1067 = vadd.f32 %v898, %v1066
        %v1068 = vpop.f32.mrb[0].mxu0
        %v1069 = vadd.f32 %v894, %v1068
        %v1070 = vpop.f32.mrb[0].mxu0
        %v1071 = vadd.f32 %v898, %v1070
        %1072 = vmatprep.mubr.bf16.mxu0 0
        %1073 = vmatmul.mubr.bf16.gmra.mrb[0].mxu0 %v992
        %v1074 = vpop.f32.mrb[0].mxu0
        %v1075 = vadd.f32 %v894, %v1074
        %v1076 = vpop.f32.mrb[0].mxu0
        %v1077 = vadd.f32 %v898, %v1076
        %v1078 = vpop.f32.mrb[0].mxu0
        %v1079 = vadd.f32 %v894, %v1078
        %v1080 = vpop.f32.mrb[0].mxu0
        %v1081 = vadd.f32 %v898, %v1080
        %1082 = vmatprep.mubr.bf16.mxu0 0
        %1083 = vmatmul.mubr.bf16.gmra.mrb[0].mxu0 %v995
        %v1084 = vpop.f32.mrb[0].mxu0
        %v1085 = vadd.f32 %v894, %v1084
        %v1086 = vpop.f32.mrb[0].mxu0
        %v1087 = vadd.f32 %v898, %v1086
        %v1088 = vpop.f32.mrb[0].mxu0
        %v1089 = vadd.f32 %v894, %v1088
        %v1090 = vpop.f32.mrb[0].mxu0
        %v1091 = vadd.f32 %v898, %v1090
        %1092 = vdwg.mxu0
        %1093 = vmatprep.subr.bf16.mxu0 %v956
        %1094 = vmatpush1.bf16.msra.mxu0 %v955
        %1095 = vmatprep.subr.bf16.mxu0 %v960
        %1096 = vmatpush1.bf16.msra.mxu0 %v959
        %1097 = vmatprep.subr.bf16.mxu0 %v964
        %1098 = vmatpush1.bf16.msra.mxu0 %v963
        %1099 = vmatprep.subr.bf16.mxu0 %v1008
        %1100 = vmatpush1.bf16.msra.mxu0 %v1005
        %1101 = vmatprep.subr.bf16.mxu0 0
        %1102 = vmatpush1.bf16.msra.mxu0 0
        %1103 = vmatprep.subr.bf16.mxu0 0
        %1104 = vmatpush1.bf16.msra.mxu0 0
        %1105 = vmatprep.subr.bf16.mxu0 0
        %1106 = vmatpush1.bf16.msra.mxu0 0
        %1107 = vmatprep.subr.bf16.mxu0 0
        %1108 = vmatpush1.bf16.msra.mxu0 0
        %1109 = vmatprep.subr.bf16.mxu0 0
        %1110 = vmatpush1.bf16.msra.mxu0 0
        %1111 = vmatprep.subr.bf16.mxu0 0
        %1112 = vmatpush1.bf16.msra.mxu0 0
        %1113 = vmatprep.subr.bf16.mxu0 0
        %1114 = vmatpush1.bf16.msra.mxu0 0
        %1115 = vmatprep.subr.bf16.mxu0 0
        %1116 = vmatpush1.bf16.msra.mxu0 0
        %1117 = vmatprep.subr.bf16.mxu0 0
        %1118 = vmatpush1.bf16.msra.mxu0 0
        %1119 = vmatprep.subr.bf16.mxu0 0
        %1120 = vmatpush1.bf16.msra.mxu0 0
        %1121 = vmatprep.subr.bf16.mxu0 0
        %1122 = vmatpush1.bf16.msra.mxu0 0
        %1123 = vmatprep.subr.bf16.mxu0 0
        %1124 = vmatpush1.bf16.msra.mxu0 0
        %1125 = vmatprep.mubr.bf16.mxu0 0
        %1126 = vmatmul.mubr.bf16.gmra.mrb[0].mxu0 %v983
        %v1127 = vpop.f32.mrb[0].mxu0
        %v1128 = vadd.f32 %v902, %v1127
        %v1129 = vpop.f32.mrb[0].mxu0
        %v1130 = vadd.f32 %v906, %v1129
        %v1131 = vpop.f32.mrb[0].mxu0
        %v1132 = vadd.f32 %v902, %v1131
        %v1133 = vpop.f32.mrb[0].mxu0
        %v1134 = vadd.f32 %v906, %v1133
        %1135 = vmatprep.mubr.bf16.mxu0 0
        %1136 = vmatmul.mubr.bf16.gmra.mrb[0].mxu0 %v986
        %v1137 = vpop.f32.mrb[0].mxu0
        %v1138 = vadd.f32 %v902, %v1137
        %v1139 = vpop.f32.mrb[0].mxu0
        %v1140 = vadd.f32 %v906, %v1139
        %v1141 = vpop.f32.mrb[0].mxu0
        %v1142 = vadd.f32 %v902, %v1141
        %v1143 = vpop.f32.mrb[0].mxu0
        %v1144 = vadd.f32 %v906, %v1143
        %1145 = vmatprep.mubr.bf16.mxu0 0
        %1146 = vmatmul.mubr.bf16.gmra.mrb[0].mxu0 %v989
        %v1147 = vpop.f32.mrb[0].mxu0
        %v1148 = vadd.f32 %v902, %v1147
        %v1149 = vpop.f32.mrb[0].mxu0
        %v1150 = vadd.f32 %v906, %v1149
        %v1151 = vpop.f32.mrb[0].mxu0
        %v1152 = vadd.f32 %v902, %v1151
        %v1153 = vpop.f32.mrb[0].mxu0
        %v1154 = vadd.f32 %v906, %v1153
        %1155 = vmatprep.mubr.bf16.mxu0 0
        %1156 = vmatmul.mubr.bf16.gmra.mrb[0].mxu0 %v992
        %v1157 = vpop.f32.mrb[0].mxu0
        %v1158 = vadd.f32 %v902, %v1157
        %v1159 = vpop.f32.mrb[0].mxu0
        %v1160 = vadd.f32 %v906, %v1159
        %v1161 = vpop.f32.mrb[0].mxu0
        %v1162 = vadd.f32 %v902, %v1161
        %v1163 = vpop.f32.mrb[0].mxu0
        %v1164 = vadd.f32 %v906, %v1163
        %1165 = vmatprep.mubr.bf16.mxu0 0
        %1166 = vmatmul.mubr.bf16.gmra.mrb[0].mxu0 %v995
        %v1167 = vpop.f32.mrb[0].mxu0
        %v1168 = vadd.f32 %v902, %v1167
        %v1169 = vpop.f32.mrb[0].mxu0
        %v1170 = vadd.f32 %v906, %v1169
        %v1171 = vpop.f32.mrb[0].mxu0
        %v1172 = vadd.f32 %v902, %v1171
        %v1173 = vpop.f32.mrb[0].mxu0
        %v1174 = vadd.f32 %v906, %v1173
        %1175 = vdwg.mxu0
        %1176 = vst [vmem:[#allocation2] sm:$0xff] %v1045
        %1177 = vst [vmem:[#allocation2 + $0x8] sm:$0xff] %v1047
        %1178 = vst [vmem:[#allocation2 + $0x10] sm:$0xff] %v1128
        %1179 = vst [vmem:[#allocation2 + $0x18] sm:$0xff] %v1130
        %1180 = vst [vmem:[#allocation2 + $0x20] sm:$0xff] %v1049
        %1181 = vst [vmem:[#allocation2 + $0x28] sm:$0xff] %v1051
        %1182 = vst [vmem:[#allocation2 + $0x30] sm:$0xff] %v1132
        %1183 = vst [vmem:[#allocation2 + $0x38] sm:$0xff] %v1134
        %1184 = vst [vmem:[#allocation2 + $0x40] sm:$0xff] %v1055
        %1185 = vst [vmem:[#allocation2 + $0x48] sm:$0xff] %v1057
        %1186 = vst [vmem:[#allocation2 + $0x50] sm:$0xff] %v1138
        %1187 = vst [vmem:[#allocation2 + $0x58] sm:$0xff] %v1140
        %1188 = vst [vmem:[#allocation2 + $0x60] sm:$0xff] %v1059
        %1189 = vst [vmem:[#allocation2 + $0x68] sm:$0xff] %v1061
        %1190 = vst [vmem:[#allocation2 + $0x70] sm:$0xff] %v1142
        %1191 = vst [vmem:[#allocation2 + $0x78] sm:$0xff] %v1144
        %1192 = vst [vmem:[#allocation2 + $0x80] sm:$0xff] %v1065
        %1193 = vst [vmem:[#allocation2 + $0x88] sm:$0xff] %v1067
        %1194 = vst [vmem:[#allocation2 + $0x90] sm:$0xff] %v1148
        %1195 = vst [vmem:[#allocation2 + $0x98] sm:$0xff] %v1150
        %1196 = vst [vmem:[#allocation2 + $0xa0] sm:$0xff] %v1069
        %1197 = vst [vmem:[#allocation2 + $0xa8] sm:$0xff] %v1071
        %1198 = vst [vmem:[#allocation2 + $0xb0] sm:$0xff] %v1152
        %1199 = vst [vmem:[#allocation2 + $0xb8] sm:$0xff] %v1154
        %1200 = vst [vmem:[#allocation2 + $0xc0] sm:$0xff] %v1075
        %1201 = vst [vmem:[#allocation2 + $0xc8] sm:$0xff] %v1077
        %1202 = vst [vmem:[#allocation2 + $0xd0] sm:$0xff] %v1158
        %1203 = vst [vmem:[#allocation2 + $0xd8] sm:$0xff] %v1160
        %1204 = vst [vmem:[#allocation2 + $0xe0] sm:$0xff] %v1079
        %1205 = vst [vmem:[#allocation2 + $0xe8] sm:$0xff] %v1081
        %1206 = vst [vmem:[#allocation2 + $0xf0] sm:$0xff] %v1162
        %1207 = vst [vmem:[#allocation2 + $0xf8] sm:$0xff] %v1164
        %1208 = vst [vmem:[#allocation2 + $0x100] sm:$0xff] %v1085
        %1209 = vst [vmem:[#allocation2 + $0x108] sm:$0xff] %v1087
        %1210 = vst [vmem:[#allocation2 + $0x110] sm:$0xff] %v1168
        %1211 = vst [vmem:[#allocation2 + $0x118] sm:$0xff] %v1170
        %1212 = vst [vmem:[#allocation2 + $0x120] sm:$0xff] %v1089
        %1213 = vst [vmem:[#allocation2 + $0x128] sm:$0xff] %v1091
        %1214 = vst [vmem:[#allocation2 + $0x130] sm:$0xff] %v1172
        %1215 = vst [vmem:[#allocation2 + $0x138] sm:$0xff] %v1174
        %v1216 = vld [vmem:[%s4] sm:$0xff]
        %v1217 = vld [vmem:[%s4 + $0x8] sm:$0xff]
        %v1218 = vld [vmem:[%s4 + $0x10] sm:$0xff]
        %v1219 = vld [vmem:[%s4 + $0x18] sm:$0xff]
        %v1220 = vld [vmem:[%s4 + $0x20] sm:$0xff]
        %v1221 = vld [vmem:[%s4 + $0x28] sm:$0xff]
        %v1222 = vld [vmem:[%s4 + $0x30] sm:$0xff]
        %v1223 = vld [vmem:[%s4 + $0x38] sm:$0xff]
        %v1224 = vld [vmem:[%s4 + $0x40] sm:$0xff]
        %v1225 = vld [vmem:[%s4 + $0x48] sm:$0xff]
        %v1226 = vld [vmem:[%s4 + $0x50] sm:$0xff]
        %v1227 = vld [vmem:[%s4 + $0x58] sm:$0xff]
        %v1228 = vld [vmem:[%s4 + $0x60] sm:$0xff]
        %v1229 = vld [vmem:[%s4 + $0x68] sm:$0xff]
        %v1230 = vld [vmem:[%s4 + $0x70] sm:$0xff]
        %v1231 = vld [vmem:[%s4 + $0x78] sm:$0xff]
        %v1232 = vld [vmem:[%s4 + $0x80] sm:$0xff]
        %v1233 = vld [vmem:[%s4 + $0x88] sm:$0xff]
        %v1234 = vld [vmem:[%s4 + $0x90] sm:$0xff]
        %v1235 = vld [vmem:[%s4 + $0x98] sm:$0xff]
        %v1236 = vld [vmem:[%s4 + $0xa0] sm:$0xff]
        %v1237 = vld [vmem:[%s4 + $0xa8] sm:$0xff]
        %v1238 = vld [vmem:[%s4 + $0xb0] sm:$0xff]
        %v1239 = vld [vmem:[%s4 + $0xb8] sm:$0xff]
        %v1240 = vld [vmem:[%s4 + $0xc0] sm:$0x3]
        %v1241 = vld [vmem:[%s4 + $0xc8] sm:$0x3]
        %v1242 = vld [vmem:[%s4 + $0xd0] sm:$0x3]
        %v1243 = vld [vmem:[%s4 + $0xd8] sm:$0x3]
        %v1244 = vld [vmem:[#allocation2] sm:$0xff]
        %v1245 = vld [vmem:[#allocation2 + $0x8] sm:$0xff]
        %v1246 = vld [vmem:[#allocation2 + $0x10] sm:$0xff]
        %v1247 = vld [vmem:[#allocation2 + $0x18] sm:$0xff]
        %v1249 = vsel %vm981, 0.0, 0
        %v1252 = vsel %vm792, %v1240, 0
        %v1255 = vsel %vm792, %v1241, 0
        %v1258 = vsel %vm792, %v1242, 0
        %v1261 = vsel %vm792, %v1243, 0
        %1263 = vmatprep.subr.mxu0 %v1217
        %1264 = vmatpush1.msra.mxu0 %v1216
        %1265 = vmatprep.subr.mxu0 %v1221
        %1266 = vmatpush1.msra.mxu0 %v1220
        %1267 = vmatprep.subr.mxu0 %v1225
        %1268 = vmatpush1.msra.mxu0 %v1224
        %1269 = vmatprep.subr.mxu0 %v1229
        %1270 = vmatpush1.msra.mxu0 %v1228
        %1271 = vmatprep.subr.mxu0 %v1233
        %1272 = vmatpush1.msra.mxu0 %v1232
        %1273 = vmatprep.subr.mxu0 %v1237
        %1274 = vmatpush1.msra.mxu0 %v1236
        %1275 = vmatprep.subr.mxu0 %v1255
        %1276 = vmatpush1.msra.mxu0 %v1252
        %1277 = vmatprep.subr.mxu0 0.0
        %1278 = vmatpush1.msra.mxu0 0.0
        %1279 = vmatprep.subr.mxu0 0.0
        %1280 = vmatpush1.msra.mxu0 0.0
        %1281 = vmatprep.subr.mxu0 0.0
        %1282 = vmatpush1.msra.mxu0 0.0
        %1283 = vmatprep.subr.mxu0 0.0
        %1284 = vmatpush1.msra.mxu0 0.0
        %1285 = vmatprep.subr.mxu0 0.0
        %1286 = vmatpush1.msra.mxu0 0.0
        %1287 = vmatprep.subr.mxu0 0.0
        %1288 = vmatpush1.msra.mxu0 0.0
        %1289 = vmatprep.subr.mxu0 0.0
        %1290 = vmatpush1.msra.mxu0 0.0
        %1291 = vmatprep.subr.mxu0 0.0
        %1292 = vmatpush1.msra.mxu0 0.0
        %1293 = vmatprep.subr.mxu0 0.0
        %1294 = vmatpush1.msra.mxu0 0.0
        %1295 = vmatprep.subr.mxu0 0.0
        %1296 = vmatpush1.msra.mxu0 0.0
        %1297 = vmatprep.subr.mxu0 0.0
        %1298 = vmatpush1.msra.mxu0 0.0
        %1299 = vmatprep.subr.mxu0 0.0
        %1300 = vmatpush1.msra.mxu0 0.0
        %1301 = vmatprep.subr.mxu0 0.0
        %1302 = vmatpush1.msra.mxu0 0.0
        %1303 = vmatprep.subr.mxu0 0.0
        %1304 = vmatpush1.msra.mxu0 0.0
        %1305 = vmatprep.subr.mxu0 0.0
        %1306 = vmatpush1.msra.mxu0 0.0
        %1307 = vmatprep.subr.mxu0 0.0
        %1308 = vmatpush1.msra.mxu0 0.0
        %1309 = vmatprep.subr.mxu0 0.0
        %1310 = vmatpush1.msra.mxu0 0.0
        %1311 = vmatprep.subr.mxu0 0.0
        %1312 = vmatpush1.msra.mxu0 0.0
        %1313 = vmatprep.subr.mxu0 0.0
        %1314 = vmatpush1.msra.mxu0 0.0
        %1315 = vmatprep.subr.mxu0 0.0
        %1316 = vmatpush1.msra.mxu0 0.0
        %1317 = vmatprep.subr.mxu0 0.0
        %1318 = vmatpush1.msra.mxu0 0.0
        %1319 = vmatprep.subr.mxu0 0.0
        %1320 = vmatpush1.msra.mxu0 0.0
        %1321 = vmatprep.subr.mxu0 0.0
        %1322 = vmatpush1.msra.mxu0 0.0
        %1323 = vmatprep.subr.mxu0 0.0
        %1324 = vmatpush1.msra.mxu0 0.0
        %1325 = vmatprep.subr.mxu0 0.0
        %1326 = vmatpush1.msra.mxu0 0.0
        %1327 = vmatprep.mubr.f32.mxu0 0.0
        %1328 = vmatmul.mubr.f32.gmra.mrb[0].mxu0 %v1249
        %v1329 = vpop.f32.mrb[0].mxu0
        %v1330 = vadd.f32 %v1244, %v1329
        %v1331 = vpop.f32.mrb[0].mxu0
        %v1332 = vadd.f32 %v1245, %v1331
        %1333 = vdwg.mxu0
        %1334 = vmatprep.subr.mxu0 %v1219
        %1335 = vmatpush1.msra.mxu0 %v1218
        %1336 = vmatprep.subr.mxu0 %v1223
        %1337 = vmatpush1.msra.mxu0 %v1222
        %1338 = vmatprep.subr.mxu0 %v1227
        %1339 = vmatpush1.msra.mxu0 %v1226
        %1340 = vmatprep.subr.mxu0 %v1231
        %1341 = vmatpush1.msra.mxu0 %v1230
        %1342 = vmatprep.subr.mxu0 %v1235
        %1343 = vmatpush1.msra.mxu0 %v1234
        %1344 = vmatprep.subr.mxu0 %v1239
        %1345 = vmatpush1.msra.mxu0 %v1238
        %1346 = vmatprep.subr.mxu0 %v1261
        %1347 = vmatpush1.msra.mxu0 %v1258
        %1348 = vmatprep.subr.mxu0 0.0
        %1349 = vmatpush1.msra.mxu0 0.0
        %1350 = vmatprep.subr.mxu0 0.0
        %1351 = vmatpush1.msra.mxu0 0.0
        %1352 = vmatprep.subr.mxu0 0.0
        %1353 = vmatpush1.msra.mxu0 0.0
        %1354 = vmatprep.subr.mxu0 0.0
        %1355 = vmatpush1.msra.mxu0 0.0
        %1356 = vmatprep.subr.mxu0 0.0
        %1357 = vmatpush1.msra.mxu0 0.0
        %1358 = vmatprep.subr.mxu0 0.0
        %1359 = vmatpush1.msra.mxu0 0.0
        %1360 = vmatprep.subr.mxu0 0.0
        %1361 = vmatpush1.msra.mxu0 0.0
        %1362 = vmatprep.subr.mxu0 0.0
        %1363 = vmatpush1.msra.mxu0 0.0
        %1364 = vmatprep.subr.mxu0 0.0
        %1365 = vmatpush1.msra.mxu0 0.0
        %1366 = vmatprep.subr.mxu0 0.0
        %1367 = vmatpush1.msra.mxu0 0.0
        %1368 = vmatprep.subr.mxu0 0.0
        %1369 = vmatpush1.msra.mxu0 0.0
        %1370 = vmatprep.subr.mxu0 0.0
        %1371 = vmatpush1.msra.mxu0 0.0
        %1372 = vmatprep.subr.mxu0 0.0
        %1373 = vmatpush1.msra.mxu0 0.0
        %1374 = vmatprep.subr.mxu0 0.0
        %1375 = vmatpush1.msra.mxu0 0.0
        %1376 = vmatprep.subr.mxu0 0.0
        %1377 = vmatpush1.msra.mxu0 0.0
        %1378 = vmatprep.subr.mxu0 0.0
        %1379 = vmatpush1.msra.mxu0 0.0
        %1380 = vmatprep.subr.mxu0 0.0
        %1381 = vmatpush1.msra.mxu0 0.0
        %1382 = vmatprep.subr.mxu0 0.0
        %1383 = vmatpush1.msra.mxu0 0.0
        %1384 = vmatprep.subr.mxu0 0.0
        %1385 = vmatpush1.msra.mxu0 0.0
        %1386 = vmatprep.subr.mxu0 0.0
        %1387 = vmatpush1.msra.mxu0 0.0
        %1388 = vmatprep.subr.mxu0 0.0
        %1389 = vmatpush1.msra.mxu0 0.0
        %1390 = vmatprep.subr.mxu0 0.0
        %1391 = vmatpush1.msra.mxu0 0.0
        %1392 = vmatprep.subr.mxu0 0.0
        %1393 = vmatpush1.msra.mxu0 0.0
        %1394 = vmatprep.subr.mxu0 0.0
        %1395 = vmatpush1.msra.mxu0 0.0
        %1396 = vmatprep.subr.mxu0 0.0
        %1397 = vmatpush1.msra.mxu0 0.0
        %1398 = vmatprep.mubr.f32.mxu0 0.0
        %1399 = vmatmul.mubr.f32.gmra.mrb[0].mxu0 %v1249
        %v1400 = vpop.f32.mrb[0].mxu0
        %v1401 = vadd.f32 %v1246, %v1400
        %v1402 = vpop.f32.mrb[0].mxu0
        %v1403 = vadd.f32 %v1247, %v1402
        %1404 = vdwg.mxu0
        %v1405 = vxor.u32 %v1330, 2147483648
        %v1406 = vxor.u32 %v1332, 2147483648
        %v1407 = vxor.u32 %v1401, 2147483648
        %v1408 = vmul.f32 %v1405, 1.442695
        %v1409 = vpow.pop %v1408
        %v1410 = vmul.f32 %v1406, 1.442695
        %v1411 = vpow.pop %v1410
        %v1412 = vmul.f32 %v1407, 1.442695
        %v1413 = vpow.pop %v1412
        %v1414 = vadd.f32 %v1409, 1.0
        %v1415 = vadd.f32 %v1411, 1.0
        %v1416 = vadd.f32 %v1413, 1.0
        %v1417 = vrcp.pop %v1414
        %v1418 = vmul.f32 1.0, %v1417
        %v1419 = vrcp.pop %v1415
        %v1420 = vmul.f32 1.0, %v1419
        %v1421 = vrcp.pop %v1416
        %v1422 = vmul.f32 1.0, %v1421
        %v1423 = vtanh.pop %v1403
        %v1424 = vmul.f32 %v1420, 0.0
        %v1425 = vmul.f32 %v1418, %v1423
        %v1426 = vadd.f32 %v1424, %v1425
        %v1427 = vtanh.pop %v1426
        %v1428 = vmul.f32 %v1422, %v1427
        %v1429 = vld [vmem:[#allocation2 + $0x20] sm:$0xff]
        %v1430 = vld [vmem:[#allocation2 + $0x28] sm:$0xff]
        %v1431 = vld [vmem:[#allocation2 + $0x30] sm:$0xff]
        %v1432 = vld [vmem:[#allocation2 + $0x38] sm:$0xff]
        %v1434 = vsel %vm981, %v1428, 0
        %1436 = vmatprep.subr.mxu0 %v1217
        %1437 = vmatpush1.msra.mxu0 %v1216
        %1438 = vmatprep.subr.mxu0 %v1221
        %1439 = vmatpush1.msra.mxu0 %v1220
        %1440 = vmatprep.subr.mxu0 %v1225
        %1441 = vmatpush1.msra.mxu0 %v1224
        %1442 = vmatprep.subr.mxu0 %v1229
        %1443 = vmatpush1.msra.mxu0 %v1228
        %1444 = vmatprep.subr.mxu0 %v1233
        %1445 = vmatpush1.msra.mxu0 %v1232
        %1446 = vmatprep.subr.mxu0 %v1237
        %1447 = vmatpush1.msra.mxu0 %v1236
        %1448 = vmatprep.subr.mxu0 %v1255
        %1449 = vmatpush1.msra.mxu0 %v1252
        %1450 = vmatprep.subr.mxu0 0.0
        %1451 = vmatpush1.msra.mxu0 0.0
        %1452 = vmatprep.subr.mxu0 0.0
        %1453 = vmatpush1.msra.mxu0 0.0
        %1454 = vmatprep.subr.mxu0 0.0
        %1455 = vmatpush1.msra.mxu0 0.0
        %1456 = vmatprep.subr.mxu0 0.0
        %1457 = vmatpush1.msra.mxu0 0.0
        %1458 = vmatprep.subr.mxu0 0.0
        %1459 = vmatpush1.msra.mxu0 0.0
        %1460 = vmatprep.subr.mxu0 0.0
        %1461 = vmatpush1.msra.mxu0 0.0
        %1462 = vmatprep.subr.mxu0 0.0
        %1463 = vmatpush1.msra.mxu0 0.0
        %1464 = vmatprep.subr.mxu0 0.0
        %1465 = vmatpush1.msra.mxu0 0.0
        %1466 = vmatprep.subr.mxu0 0.0
        %1467 = vmatpush1.msra.mxu0 0.0
        %1468 = vmatprep.subr.mxu0 0.0
        %1469 = vmatpush1.msra.mxu0 0.0
        %1470 = vmatprep.subr.mxu0 0.0
        %1471 = vmatpush1.msra.mxu0 0.0
        %1472 = vmatprep.subr.mxu0 0.0
        %1473 = vmatpush1.msra.mxu0 0.0
        %1474 = vmatprep.subr.mxu0 0.0
        %1475 = vmatpush1.msra.mxu0 0.0
        %1476 = vmatprep.subr.mxu0 0.0
        %1477 = vmatpush1.msra.mxu0 0.0
        %1478 = vmatprep.subr.mxu0 0.0
        %1479 = vmatpush1.msra.mxu0 0.0
        %1480 = vmatprep.subr.mxu0 0.0
        %1481 = vmatpush1.msra.mxu0 0.0
        %1482 = vmatprep.subr.mxu0 0.0
        %1483 = vmatpush1.msra.mxu0 0.0
        %1484 = vmatprep.subr.mxu0 0.0
        %1485 = vmatpush1.msra.mxu0 0.0
        %1486 = vmatprep.subr.mxu0 0.0
        %1487 = vmatpush1.msra.mxu0 0.0
        %1488 = vmatprep.subr.mxu0 0.0
        %1489 = vmatpush1.msra.mxu0 0.0
        %1490 = vmatprep.subr.mxu0 0.0
        %1491 = vmatpush1.msra.mxu0 0.0
        %1492 = vmatprep.subr.mxu0 0.0
        %1493 = vmatpush1.msra.mxu0 0.0
        %1494 = vmatprep.subr.mxu0 0.0
        %1495 = vmatpush1.msra.mxu0 0.0
        %1496 = vmatprep.subr.mxu0 0.0
        %1497 = vmatpush1.msra.mxu0 0.0
        %1498 = vmatprep.subr.mxu0 0.0
        %1499 = vmatpush1.msra.mxu0 0.0
        %1500 = vmatprep.mubr.f32.mxu0 0.0
        %1501 = vmatmul.mubr.f32.gmra.mrb[0].mxu0 %v1434
        %v1502 = vpop.f32.mrb[0].mxu0
        %v1503 = vadd.f32 %v1429, %v1502
        %v1504 = vpop.f32.mrb[0].mxu0
        %v1505 = vadd.f32 %v1430, %v1504
        %1506 = vdwg.mxu0
        %1507 = vmatprep.subr.mxu0 %v1219
        %1508 = vmatpush1.msra.mxu0 %v1218
        %1509 = vmatprep.subr.mxu0 %v1223
        %1510 = vmatpush1.msra.mxu0 %v1222
        %1511 = vmatprep.subr.mxu0 %v1227
        %1512 = vmatpush1.msra.mxu0 %v1226
        %1513 = vmatprep.subr.mxu0 %v1231
        %1514 = vmatpush1.msra.mxu0 %v1230
        %1515 = vmatprep.subr.mxu0 %v1235
        %1516 = vmatpush1.msra.mxu0 %v1234
        %1517 = vmatprep.subr.mxu0 %v1239
        %1518 = vmatpush1.msra.mxu0 %v1238
        %1519 = vmatprep.subr.mxu0 %v1261
        %1520 = vmatpush1.msra.mxu0 %v1258
        %1521 = vmatprep.subr.mxu0 0.0
        %1522 = vmatpush1.msra.mxu0 0.0
        %1523 = vmatprep.subr.mxu0 0.0
        %1524 = vmatpush1.msra.mxu0 0.0
        %1525 = vmatprep.subr.mxu0 0.0
        %1526 = vmatpush1.msra.mxu0 0.0
        %1527 = vmatprep.subr.mxu0 0.0
        %1528 = vmatpush1.msra.mxu0 0.0
        %1529 = vmatprep.subr.mxu0 0.0
        %1530 = vmatpush1.msra.mxu0 0.0
        %1531 = vmatprep.subr.mxu0 0.0
        %1532 = vmatpush1.msra.mxu0 0.0
        %1533 = vmatprep.subr.mxu0 0.0
        %1534 = vmatpush1.msra.mxu0 0.0
        %1535 = vmatprep.subr.mxu0 0.0
        %1536 = vmatpush1.msra.mxu0 0.0
        %1537 = vmatprep.subr.mxu0 0.0
        %1538 = vmatpush1.msra.mxu0 0.0
        %1539 = vmatprep.subr.mxu0 0.0
        %1540 = vmatpush1.msra.mxu0 0.0
        %1541 = vmatprep.subr.mxu0 0.0
        %1542 = vmatpush1.msra.mxu0 0.0
        %1543 = vmatprep.subr.mxu0 0.0
        %1544 = vmatpush1.msra.mxu0 0.0
        %1545 = vmatprep.subr.mxu0 0.0
        %1546 = vmatpush1.msra.mxu0 0.0
        %1547 = vmatprep.subr.mxu0 0.0
        %1548 = vmatpush1.msra.mxu0 0.0
        %1549 = vmatprep.subr.mxu0 0.0
        %1550 = vmatpush1.msra.mxu0 0.0
        %1551 = vmatprep.subr.mxu0 0.0
        %1552 = vmatpush1.msra.mxu0 0.0
        %1553 = vmatprep.subr.mxu0 0.0
        %1554 = vmatpush1.msra.mxu0 0.0
        %1555 = vmatprep.subr.mxu0 0.0
        %1556 = vmatpush1.msra.mxu0 0.0
        %1557 = vmatprep.subr.mxu0 0.0
        %1558 = vmatpush1.msra.mxu0 0.0
        %1559 = vmatprep.subr.mxu0 0.0
        %1560 = vmatpush1.msra.mxu0 0.0
        %1561 = vmatprep.subr.mxu0 0.0
        %1562 = vmatpush1.msra.mxu0 0.0
        %1563 = vmatprep.subr.mxu0 0.0
        %1564 = vmatpush1.msra.mxu0 0.0
        %1565 = vmatprep.subr.mxu0 0.0
        %1566 = vmatpush1.msra.mxu0 0.0
        %1567 = vmatprep.subr.mxu0 0.0
        %1568 = vmatpush1.msra.mxu0 0.0
        %1569 = vmatprep.subr.mxu0 0.0
        %1570 = vmatpush1.msra.mxu0 0.0
        %1571 = vmatprep.mubr.f32.mxu0 0.0
        %1572 = vmatmul.mubr.f32.gmra.mrb[0].mxu0 %v1434
        %v1573 = vpop.f32.mrb[0].mxu0
        %v1574 = vadd.f32 %v1431, %v1573
        %v1575 = vpop.f32.mrb[0].mxu0
        %v1576 = vadd.f32 %v1432, %v1575
        %1577 = vdwg.mxu0
        %v1578 = vxor.u32 %v1503, 2147483648
        %v1579 = vxor.u32 %v1505, 2147483648
        %v1580 = vxor.u32 %v1574, 2147483648
        %v1581 = vmul.f32 %v1578, 1.442695
        %v1582 = vpow.pop %v1581
        %v1583 = vmul.f32 %v1579, 1.442695
        %v1584 = vpow.pop %v1583
        %v1585 = vmul.f32 %v1580, 1.442695
        %v1586 = vpow.pop %v1585
        %v1587 = vadd.f32 %v1582, 1.0
        %v1588 = vadd.f32 %v1584, 1.0
        %v1589 = vadd.f32 %v1586, 1.0
        %v1590 = vrcp.pop %v1587
        %v1591 = vmul.f32 1.0, %v1590
        %v1592 = vrcp.pop %v1588
        %v1593 = vmul.f32 1.0, %v1592
        %v1594 = vrcp.pop %v1589
        %v1595 = vmul.f32 1.0, %v1594
        %v1596 = vtanh.pop %v1576
        %v1597 = vmul.f32 %v1593, %v1426
        %v1598 = vmul.f32 %v1591, %v1596
        %v1599 = vadd.f32 %v1597, %v1598
        %v1600 = vtanh.pop %v1599
        %v1601 = vmul.f32 %v1595, %v1600
        %v1602 = vld [vmem:[#allocation2 + $0x40] sm:$0xff]
        %v1603 = vld [vmem:[#allocation2 + $0x48] sm:$0xff]
        %v1604 = vld [vmem:[#allocation2 + $0x50] sm:$0xff]
        %v1605 = vld [vmem:[#allocation2 + $0x58] sm:$0xff]
        %v1607 = vsel %vm981, %v1601, 0
        %1609 = vmatprep.subr.mxu0 %v1217
        %1610 = vmatpush1.msra.mxu0 %v1216
        %1611 = vmatprep.subr.mxu0 %v1221
        %1612 = vmatpush1.msra.mxu0 %v1220
        %1613 = vmatprep.subr.mxu0 %v1225
        %1614 = vmatpush1.msra.mxu0 %v1224
        %1615 = vmatprep.subr.mxu0 %v1229
        %1616 = vmatpush1.msra.mxu0 %v1228
        %1617 = vmatprep.subr.mxu0 %v1233
        %1618 = vmatpush1.msra.mxu0 %v1232
        %1619 = vmatprep.subr.mxu0 %v1237
        %1620 = vmatpush1.msra.mxu0 %v1236
        %1621 = vmatprep.subr.mxu0 %v1255
        %1622 = vmatpush1.msra.mxu0 %v1252
        %1623 = vmatprep.subr.mxu0 0.0
        %1624 = vmatpush1.msra.mxu0 0.0
        %1625 = vmatprep.subr.mxu0 0.0
        %1626 = vmatpush1.msra.mxu0 0.0
        %1627 = vmatprep.subr.mxu0 0.0
        %1628 = vmatpush1.msra.mxu0 0.0
        %1629 = vmatprep.subr.mxu0 0.0
        %1630 = vmatpush1.msra.mxu0 0.0
        %1631 = vmatprep.subr.mxu0 0.0
        %1632 = vmatpush1.msra.mxu0 0.0
        %1633 = vmatprep.subr.mxu0 0.0
        %1634 = vmatpush1.msra.mxu0 0.0
        %1635 = vmatprep.subr.mxu0 0.0
        %1636 = vmatpush1.msra.mxu0 0.0
        %1637 = vmatprep.subr.mxu0 0.0
        %1638 = vmatpush1.msra.mxu0 0.0
        %1639 = vmatprep.subr.mxu0 0.0
        %1640 = vmatpush1.msra.mxu0 0.0
        %1641 = vmatprep.subr.mxu0 0.0
        %1642 = vmatpush1.msra.mxu0 0.0
        %1643 = vmatprep.subr.mxu0 0.0
        %1644 = vmatpush1.msra.mxu0 0.0
        %1645 = vmatprep.subr.mxu0 0.0
        %1646 = vmatpush1.msra.mxu0 0.0
        %1647 = vmatprep.subr.mxu0 0.0
        %1648 = vmatpush1.msra.mxu0 0.0
        %1649 = vmatprep.subr.mxu0 0.0
        %1650 = vmatpush1.msra.mxu0 0.0
        %1651 = vmatprep.subr.mxu0 0.0
        %1652 = vmatpush1.msra.mxu0 0.0
        %1653 = vmatprep.subr.mxu0 0.0
        %1654 = vmatpush1.msra.mxu0 0.0
        %1655 = vmatprep.subr.mxu0 0.0
        %1656 = vmatpush1.msra.mxu0 0.0
        %1657 = vmatprep.subr.mxu0 0.0
        %1658 = vmatpush1.msra.mxu0 0.0
        %1659 = vmatprep.subr.mxu0 0.0
        %1660 = vmatpush1.msra.mxu0 0.0
        %1661 = vmatprep.subr.mxu0 0.0
        %1662 = vmatpush1.msra.mxu0 0.0
        %1663 = vmatprep.subr.mxu0 0.0
        %1664 = vmatpush1.msra.mxu0 0.0
        %1665 = vmatprep.subr.mxu0 0.0
        %1666 = vmatpush1.msra.mxu0 0.0
        %1667 = vmatprep.subr.mxu0 0.0
        %1668 = vmatpush1.msra.mxu0 0.0
        %1669 = vmatprep.subr.mxu0 0.0
        %1670 = vmatpush1.msra.mxu0 0.0
        %1671 = vmatprep.subr.mxu0 0.0
        %1672 = vmatpush1.msra.mxu0 0.0
        %1673 = vmatprep.mubr.f32.mxu0 0.0
        %1674 = vmatmul.mubr.f32.gmra.mrb[0].mxu0 %v1607
        %v1675 = vpop.f32.mrb[0].mxu0
        %v1676 = vadd.f32 %v1602, %v1675
        %v1677 = vpop.f32.mrb[0].mxu0
        %v1678 = vadd.f32 %v1603, %v1677
        %1679 = vdwg.mxu0
        %1680 = vmatprep.subr.mxu0 %v1219
        %1681 = vmatpush1.msra.mxu0 %v1218
        %1682 = vmatprep.subr.mxu0 %v1223
        %1683 = vmatpush1.msra.mxu0 %v1222
        %1684 = vmatprep.subr.mxu0 %v1227
        %1685 = vmatpush1.msra.mxu0 %v1226
        %1686 = vmatprep.subr.mxu0 %v1231
        %1687 = vmatpush1.msra.mxu0 %v1230
        %1688 = vmatprep.subr.mxu0 %v1235
        %1689 = vmatpush1.msra.mxu0 %v1234
        %1690 = vmatprep.subr.mxu0 %v1239
        %1691 = vmatpush1.msra.mxu0 %v1238
        %1692 = vmatprep.subr.mxu0 %v1261
        %1693 = vmatpush1.msra.mxu0 %v1258
        %1694 = vmatprep.subr.mxu0 0.0
        %1695 = vmatpush1.msra.mxu0 0.0
        %1696 = vmatprep.subr.mxu0 0.0
        %1697 = vmatpush1.msra.mxu0 0.0
        %1698 = vmatprep.subr.mxu0 0.0
        %1699 = vmatpush1.msra.mxu0 0.0
        %1700 = vmatprep.subr.mxu0 0.0
        %1701 = vmatpush1.msra.mxu0 0.0
        %1702 = vmatprep.subr.mxu0 0.0
        %1703 = vmatpush1.msra.mxu0 0.0
        %1704 = vmatprep.subr.mxu0 0.0
        %1705 = vmatpush1.msra.mxu0 0.0
        %1706 = vmatprep.subr.mxu0 0.0
        %1707 = vmatpush1.msra.mxu0 0.0
        %1708 = vmatprep.subr.mxu0 0.0
        %1709 = vmatpush1.msra.mxu0 0.0
        %1710 = vmatprep.subr.mxu0 0.0
        %1711 = vmatpush1.msra.mxu0 0.0
        %1712 = vmatprep.subr.mxu0 0.0
        %1713 = vmatpush1.msra.mxu0 0.0
        %1714 = vmatprep.subr.mxu0 0.0
        %1715 = vmatpush1.msra.mxu0 0.0
        %1716 = vmatprep.subr.mxu0 0.0
        %1717 = vmatpush1.msra.mxu0 0.0
        %1718 = vmatprep.subr.mxu0 0.0
        %1719 = vmatpush1.msra.mxu0 0.0
        %1720 = vmatprep.subr.mxu0 0.0
        %1721 = vmatpush1.msra.mxu0 0.0
        %1722 = vmatprep.subr.mxu0 0.0
        %1723 = vmatpush1.msra.mxu0 0.0
        %1724 = vmatprep.subr.mxu0 0.0
        %1725 = vmatpush1.msra.mxu0 0.0
        %1726 = vmatprep.subr.mxu0 0.0
        %1727 = vmatpush1.msra.mxu0 0.0
        %1728 = vmatprep.subr.mxu0 0.0
        %1729 = vmatpush1.msra.mxu0 0.0
        %1730 = vmatprep.subr.mxu0 0.0
        %1731 = vmatpush1.msra.mxu0 0.0
        %1732 = vmatprep.subr.mxu0 0.0
        %1733 = vmatpush1.msra.mxu0 0.0
        %1734 = vmatprep.subr.mxu0 0.0
        %1735 = vmatpush1.msra.mxu0 0.0
        %1736 = vmatprep.subr.mxu0 0.0
        %1737 = vmatpush1.msra.mxu0 0.0
        %1738 = vmatprep.subr.mxu0 0.0
        %1739 = vmatpush1.msra.mxu0 0.0
        %1740 = vmatprep.subr.mxu0 0.0
        %1741 = vmatpush1.msra.mxu0 0.0
        %1742 = vmatprep.subr.mxu0 0.0
        %1743 = vmatpush1.msra.mxu0 0.0
        %1744 = vmatprep.mubr.f32.mxu0 0.0
        %1745 = vmatmul.mubr.f32.gmra.mrb[0].mxu0 %v1607
        %v1746 = vpop.f32.mrb[0].mxu0
        %v1747 = vadd.f32 %v1604, %v1746
        %v1748 = vpop.f32.mrb[0].mxu0
        %v1749 = vadd.f32 %v1605, %v1748
        %1750 = vdwg.mxu0
        %v1751 = vxor.u32 %v1676, 2147483648
        %v1752 = vxor.u32 %v1678, 2147483648
        %v1753 = vxor.u32 %v1747, 2147483648
        %v1754 = vmul.f32 %v1751, 1.442695
        %v1755 = vpow.pop %v1754
        %v1756 = vmul.f32 %v1752, 1.442695
        %v1757 = vpow.pop %v1756
        %v1758 = vmul.f32 %v1753, 1.442695
        %v1759 = vpow.pop %v1758
        %v1760 = vadd.f32 %v1755, 1.0
        %v1761 = vadd.f32 %v1757, 1.0
        %v1762 = vadd.f32 %v1759, 1.0
        %v1763 = vrcp.pop %v1760
        %v1764 = vmul.f32 1.0, %v1763
        %v1765 = vrcp.pop %v1761
        %v1766 = vmul.f32 1.0, %v1765
        %v1767 = vrcp.pop %v1762
        %v1768 = vmul.f32 1.0, %v1767
        %v1769 = vtanh.pop %v1749
        %v1770 = vmul.f32 %v1766, %v1599
        %v1771 = vmul.f32 %v1764, %v1769
        %v1772 = vadd.f32 %v1770, %v1771
        %v1773 = vtanh.pop %v1772
        %v1774 = vmul.f32 %v1768, %v1773
        %v1775 = vld [vmem:[#allocation2 + $0x60] sm:$0xff]
        %v1776 = vld [vmem:[#allocation2 + $0x68] sm:$0xff]
        %v1777 = vld [vmem:[#allocation2 + $0x70] sm:$0xff]
        %v1778 = vld [vmem:[#allocation2 + $0x78] sm:$0xff]
        %v1780 = vsel %vm981, %v1774, 0
        %1782 = vmatprep.subr.mxu0 %v1217
        %1783 = vmatpush1.msra.mxu0 %v1216
        %1784 = vmatprep.subr.mxu0 %v1221
        %1785 = vmatpush1.msra.mxu0 %v1220
        %1786 = vmatprep.subr.mxu0 %v1225
        %1787 = vmatpush1.msra.mxu0 %v1224
        %1788 = vmatprep.subr.mxu0 %v1229
        %1789 = vmatpush1.msra.mxu0 %v1228
        %1790 = vmatprep.subr.mxu0 %v1233
        %1791 = vmatpush1.msra.mxu0 %v1232
        %1792 = vmatprep.subr.mxu0 %v1237
        %1793 = vmatpush1.msra.mxu0 %v1236
        %1794 = vmatprep.subr.mxu0 %v1255
        %1795 = vmatpush1.msra.mxu0 %v1252
        %1796 = vmatprep.subr.mxu0 0.0
        %1797 = vmatpush1.msra.mxu0 0.0
        %1798 = vmatprep.subr.mxu0 0.0
        %1799 = vmatpush1.msra.mxu0 0.0
        %1800 = vmatprep.subr.mxu0 0.0
        %1801 = vmatpush1.msra.mxu0 0.0
        %1802 = vmatprep.subr.mxu0 0.0
        %1803 = vmatpush1.msra.mxu0 0.0
        %1804 = vmatprep.subr.mxu0 0.0
        %1805 = vmatpush1.msra.mxu0 0.0
        %1806 = vmatprep.subr.mxu0 0.0
        %1807 = vmatpush1.msra.mxu0 0.0
        %1808 = vmatprep.subr.mxu0 0.0
        %1809 = vmatpush1.msra.mxu0 0.0
        %1810 = vmatprep.subr.mxu0 0.0
        %1811 = vmatpush1.msra.mxu0 0.0
        %1812 = vmatprep.subr.mxu0 0.0
        %1813 = vmatpush1.msra.mxu0 0.0
        %1814 = vmatprep.subr.mxu0 0.0
        %1815 = vmatpush1.msra.mxu0 0.0
        %1816 = vmatprep.subr.mxu0 0.0
        %1817 = vmatpush1.msra.mxu0 0.0
        %1818 = vmatprep.subr.mxu0 0.0
        %1819 = vmatpush1.msra.mxu0 0.0
        %1820 = vmatprep.subr.mxu0 0.0
        %1821 = vmatpush1.msra.mxu0 0.0
        %1822 = vmatprep.subr.mxu0 0.0
        %1823 = vmatpush1.msra.mxu0 0.0
        %1824 = vmatprep.subr.mxu0 0.0
        %1825 = vmatpush1.msra.mxu0 0.0
        %1826 = vmatprep.subr.mxu0 0.0
        %1827 = vmatpush1.msra.mxu0 0.0
        %1828 = vmatprep.subr.mxu0 0.0
        %1829 = vmatpush1.msra.mxu0 0.0
        %1830 = vmatprep.subr.mxu0 0.0
        %1831 = vmatpush1.msra.mxu0 0.0
        %1832 = vmatprep.subr.mxu0 0.0
        %1833 = vmatpush1.msra.mxu0 0.0
        %1834 = vmatprep.subr.mxu0 0.0
        %1835 = vmatpush1.msra.mxu0 0.0
        %1836 = vmatprep.subr.mxu0 0.0
        %1837 = vmatpush1.msra.mxu0 0.0
        %1838 = vmatprep.subr.mxu0 0.0
        %1839 = vmatpush1.msra.mxu0 0.0
        %1840 = vmatprep.subr.mxu0 0.0
        %1841 = vmatpush1.msra.mxu0 0.0
        %1842 = vmatprep.subr.mxu0 0.0
        %1843 = vmatpush1.msra.mxu0 0.0
        %1844 = vmatprep.subr.mxu0 0.0
        %1845 = vmatpush1.msra.mxu0 0.0
        %1846 = vmatprep.mubr.f32.mxu0 0.0
        %1847 = vmatmul.mubr.f32.gmra.mrb[0].mxu0 %v1780
        %v1848 = vpop.f32.mrb[0].mxu0
        %v1849 = vadd.f32 %v1775, %v1848
        %v1850 = vpop.f32.mrb[0].mxu0
        %v1851 = vadd.f32 %v1776, %v1850
        %1852 = vdwg.mxu0
        %1853 = vmatprep.subr.mxu0 %v1219
        %1854 = vmatpush1.msra.mxu0 %v1218
        %1855 = vmatprep.subr.mxu0 %v1223
        %1856 = vmatpush1.msra.mxu0 %v1222
        %1857 = vmatprep.subr.mxu0 %v1227
        %1858 = vmatpush1.msra.mxu0 %v1226
        %1859 = vmatprep.subr.mxu0 %v1231
        %1860 = vmatpush1.msra.mxu0 %v1230
        %1861 = vmatprep.subr.mxu0 %v1235
        %1862 = vmatpush1.msra.mxu0 %v1234
        %1863 = vmatprep.subr.mxu0 %v1239
        %1864 = vmatpush1.msra.mxu0 %v1238
        %1865 = vmatprep.subr.mxu0 %v1261
        %1866 = vmatpush1.msra.mxu0 %v1258
        %1867 = vmatprep.subr.mxu0 0.0
        %1868 = vmatpush1.msra.mxu0 0.0
        %1869 = vmatprep.subr.mxu0 0.0
        %1870 = vmatpush1.msra.mxu0 0.0
        %1871 = vmatprep.subr.mxu0 0.0
        %1872 = vmatpush1.msra.mxu0 0.0
        %1873 = vmatprep.subr.mxu0 0.0
        %1874 = vmatpush1.msra.mxu0 0.0
        %1875 = vmatprep.subr.mxu0 0.0
        %1876 = vmatpush1.msra.mxu0 0.0
        %1877 = vmatprep.subr.mxu0 0.0
        %1878 = vmatpush1.msra.mxu0 0.0
        %1879 = vmatprep.subr.mxu0 0.0
        %1880 = vmatpush1.msra.mxu0 0.0
        %1881 = vmatprep.subr.mxu0 0.0
        %1882 = vmatpush1.msra.mxu0 0.0
        %1883 = vmatprep.subr.mxu0 0.0
        %1884 = vmatpush1.msra.mxu0 0.0
        %1885 = vmatprep.subr.mxu0 0.0
        %1886 = vmatpush1.msra.mxu0 0.0
        %1887 = vmatprep.subr.mxu0 0.0
        %1888 = vmatpush1.msra.mxu0 0.0
        %1889 = vmatprep.subr.mxu0 0.0
        %1890 = vmatpush1.msra.mxu0 0.0
        %1891 = vmatprep.subr.mxu0 0.0
        %1892 = vmatpush1.msra.mxu0 0.0
        %1893 = vmatprep.subr.mxu0 0.0
        %1894 = vmatpush1.msra.mxu0 0.0
        %1895 = vmatprep.subr.mxu0 0.0
        %1896 = vmatpush1.msra.mxu0 0.0
        %1897 = vmatprep.subr.mxu0 0.0
        %1898 = vmatpush1.msra.mxu0 0.0
        %1899 = vmatprep.subr.mxu0 0.0
        %1900 = vmatpush1.msra.mxu0 0.0
        %1901 = vmatprep.subr.mxu0 0.0
        %1902 = vmatpush1.msra.mxu0 0.0
        %1903 = vmatprep.subr.mxu0 0.0
        %1904 = vmatpush1.msra.mxu0 0.0
        %1905 = vmatprep.subr.mxu0 0.0
        %1906 = vmatpush1.msra.mxu0 0.0
        %1907 = vmatprep.subr.mxu0 0.0
        %1908 = vmatpush1.msra.mxu0 0.0
        %1909 = vmatprep.subr.mxu0 0.0
        %1910 = vmatpush1.msra.mxu0 0.0
        %1911 = vmatprep.subr.mxu0 0.0
        %1912 = vmatpush1.msra.mxu0 0.0
        %1913 = vmatprep.subr.mxu0 0.0
        %1914 = vmatpush1.msra.mxu0 0.0
        %1915 = vmatprep.subr.mxu0 0.0
        %1916 = vmatpush1.msra.mxu0 0.0
        %1917 = vmatprep.mubr.f32.mxu0 0.0
        %1918 = vmatmul.mubr.f32.gmra.mrb[0].mxu0 %v1780
        %v1919 = vpop.f32.mrb[0].mxu0
        %v1920 = vadd.f32 %v1777, %v1919
        %v1921 = vpop.f32.mrb[0].mxu0
        %v1922 = vadd.f32 %v1778, %v1921
        %1923 = vdwg.mxu0
        %v1924 = vxor.u32 %v1849, 2147483648
        %v1925 = vxor.u32 %v1851, 2147483648
        %v1926 = vxor.u32 %v1920, 2147483648
        %v1927 = vmul.f32 %v1924, 1.442695
        %v1928 = vpow.pop %v1927
        %v1929 = vmul.f32 %v1925, 1.442695
        %v1930 = vpow.pop %v1929
        %v1931 = vmul.f32 %v1926, 1.442695
        %v1932 = vpow.pop %v1931
        %v1933 = vadd.f32 %v1928, 1.0
        %v1934 = vadd.f32 %v1930, 1.0
        %v1935 = vadd.f32 %v1932, 1.0
        %v1936 = vrcp.pop %v1933
        %v1937 = vmul.f32 1.0, %v1936
        %v1938 = vrcp.pop %v1934
        %v1939 = vmul.f32 1.0, %v1938
        %v1940 = vrcp.pop %v1935
        %v1941 = vmul.f32 1.0, %v1940
        %v1942 = vtanh.pop %v1922
        %v1943 = vmul.f32 %v1939, %v1772
        %v1944 = vmul.f32 %v1937, %v1942
        %v1945 = vadd.f32 %v1943, %v1944
        %v1946 = vtanh.pop %v1945
        %v1947 = vmul.f32 %v1941, %v1946
        %v1948 = vld [vmem:[#allocation2 + $0x80] sm:$0xff]
        %v1949 = vld [vmem:[#allocation2 + $0x88] sm:$0xff]
        %v1950 = vld [vmem:[#allocation2 + $0x90] sm:$0xff]
        %v1951 = vld [vmem:[#allocation2 + $0x98] sm:$0xff]
        %v1953 = vsel %vm981, %v1947, 0
        %1955 = vmatprep.subr.mxu0 %v1217
        %1956 = vmatpush1.msra.mxu0 %v1216
        %1957 = vmatprep.subr.mxu0 %v1221
        %1958 = vmatpush1.msra.mxu0 %v1220
        %1959 = vmatprep.subr.mxu0 %v1225
        %1960 = vmatpush1.msra.mxu0 %v1224
        %1961 = vmatprep.subr.mxu0 %v1229
        %1962 = vmatpush1.msra.mxu0 %v1228
        %1963 = vmatprep.subr.mxu0 %v1233
        %1964 = vmatpush1.msra.mxu0 %v1232
        %1965 = vmatprep.subr.mxu0 %v1237
        %1966 = vmatpush1.msra.mxu0 %v1236
        %1967 = vmatprep.subr.mxu0 %v1255
        %1968 = vmatpush1.msra.mxu0 %v1252
        %1969 = vmatprep.subr.mxu0 0.0
        %1970 = vmatpush1.msra.mxu0 0.0
        %1971 = vmatprep.subr.mxu0 0.0
        %1972 = vmatpush1.msra.mxu0 0.0
        %1973 = vmatprep.subr.mxu0 0.0
        %1974 = vmatpush1.msra.mxu0 0.0
        %1975 = vmatprep.subr.mxu0 0.0
        %1976 = vmatpush1.msra.mxu0 0.0
        %1977 = vmatprep.subr.mxu0 0.0
        %1978 = vmatpush1.msra.mxu0 0.0
        %1979 = vmatprep.subr.mxu0 0.0
        %1980 = vmatpush1.msra.mxu0 0.0
        %1981 = vmatprep.subr.mxu0 0.0
        %1982 = vmatpush1.msra.mxu0 0.0
        %1983 = vmatprep.subr.mxu0 0.0
        %1984 = vmatpush1.msra.mxu0 0.0
        %1985 = vmatprep.subr.mxu0 0.0
        %1986 = vmatpush1.msra.mxu0 0.0
        %1987 = vmatprep.subr.mxu0 0.0
        %1988 = vmatpush1.msra.mxu0 0.0
        %1989 = vmatprep.subr.mxu0 0.0
        %1990 = vmatpush1.msra.mxu0 0.0
        %1991 = vmatprep.subr.mxu0 0.0
        %1992 = vmatpush1.msra.mxu0 0.0
        %1993 = vmatprep.subr.mxu0 0.0
        %1994 = vmatpush1.msra.mxu0 0.0
        %1995 = vmatprep.subr.mxu0 0.0
        %1996 = vmatpush1.msra.mxu0 0.0
        %1997 = vmatprep.subr.mxu0 0.0
        %1998 = vmatpush1.msra.mxu0 0.0
        %1999 = vmatprep.subr.mxu0 0.0
        %2000 = vmatpush1.msra.mxu0 0.0
        %2001 = vmatprep.subr.mxu0 0.0
        %2002 = vmatpush1.msra.mxu0 0.0
        %2003 = vmatprep.subr.mxu0 0.0
        %2004 = vmatpush1.msra.mxu0 0.0
        %2005 = vmatprep.subr.mxu0 0.0
        %2006 = vmatpush1.msra.mxu0 0.0
        %2007 = vmatprep.subr.mxu0 0.0
        %2008 = vmatpush1.msra.mxu0 0.0
        %2009 = vmatprep.subr.mxu0 0.0
        %2010 = vmatpush1.msra.mxu0 0.0
        %2011 = vmatprep.subr.mxu0 0.0
        %2012 = vmatpush1.msra.mxu0 0.0
        %2013 = vmatprep.subr.mxu0 0.0
        %2014 = vmatpush1.msra.mxu0 0.0
        %2015 = vmatprep.subr.mxu0 0.0
        %2016 = vmatpush1.msra.mxu0 0.0
        %2017 = vmatprep.subr.mxu0 0.0
        %2018 = vmatpush1.msra.mxu0 0.0
        %2019 = vmatprep.mubr.f32.mxu0 0.0
        %2020 = vmatmul.mubr.f32.gmra.mrb[0].mxu0 %v1953
        %v2021 = vpop.f32.mrb[0].mxu0
        %v2022 = vadd.f32 %v1948, %v2021
        %v2023 = vpop.f32.mrb[0].mxu0
        %v2024 = vadd.f32 %v1949, %v2023
        %2025 = vdwg.mxu0
        %2026 = vmatprep.subr.mxu0 %v1219
        %2027 = vmatpush1.msra.mxu0 %v1218
        %2028 = vmatprep.subr.mxu0 %v1223
        %2029 = vmatpush1.msra.mxu0 %v1222
        %2030 = vmatprep.subr.mxu0 %v1227
        %2031 = vmatpush1.msra.mxu0 %v1226
        %2032 = vmatprep.subr.mxu0 %v1231
        %2033 = vmatpush1.msra.mxu0 %v1230
        %2034 = vmatprep.subr.mxu0 %v1235
        %2035 = vmatpush1.msra.mxu0 %v1234
        %2036 = vmatprep.subr.mxu0 %v1239
        %2037 = vmatpush1.msra.mxu0 %v1238
        %2038 = vmatprep.subr.mxu0 %v1261
        %2039 = vmatpush1.msra.mxu0 %v1258
        %2040 = vmatprep.subr.mxu0 0.0
        %2041 = vmatpush1.msra.mxu0 0.0
        %2042 = vmatprep.subr.mxu0 0.0
        %2043 = vmatpush1.msra.mxu0 0.0
        %2044 = vmatprep.subr.mxu0 0.0
        %2045 = vmatpush1.msra.mxu0 0.0
        %2046 = vmatprep.subr.mxu0 0.0
        %2047 = vmatpush1.msra.mxu0 0.0
        %2048 = vmatprep.subr.mxu0 0.0
        %2049 = vmatpush1.msra.mxu0 0.0
        %2050 = vmatprep.subr.mxu0 0.0
        %2051 = vmatpush1.msra.mxu0 0.0
        %2052 = vmatprep.subr.mxu0 0.0
        %2053 = vmatpush1.msra.mxu0 0.0
        %2054 = vmatprep.subr.mxu0 0.0
        %2055 = vmatpush1.msra.mxu0 0.0
        %2056 = vmatprep.subr.mxu0 0.0
        %2057 = vmatpush1.msra.mxu0 0.0
        %2058 = vmatprep.subr.mxu0 0.0
        %2059 = vmatpush1.msra.mxu0 0.0
        %2060 = vmatprep.subr.mxu0 0.0
        %2061 = vmatpush1.msra.mxu0 0.0
        %2062 = vmatprep.subr.mxu0 0.0
        %2063 = vmatpush1.msra.mxu0 0.0
        %2064 = vmatprep.subr.mxu0 0.0
        %2065 = vmatpush1.msra.mxu0 0.0
        %2066 = vmatprep.subr.mxu0 0.0
        %2067 = vmatpush1.msra.mxu0 0.0
        %2068 = vmatprep.subr.mxu0 0.0
        %2069 = vmatpush1.msra.mxu0 0.0
        %2070 = vmatprep.subr.mxu0 0.0
        %2071 = vmatpush1.msra.mxu0 0.0
        %2072 = vmatprep.subr.mxu0 0.0
        %2073 = vmatpush1.msra.mxu0 0.0
        %2074 = vmatprep.subr.mxu0 0.0
        %2075 = vmatpush1.msra.mxu0 0.0
        %2076 = vmatprep.subr.mxu0 0.0
        %2077 = vmatpush1.msra.mxu0 0.0
        %2078 = vmatprep.subr.mxu0 0.0
        %2079 = vmatpush1.msra.mxu0 0.0
        %2080 = vmatprep.subr.mxu0 0.0
        %2081 = vmatpush1.msra.mxu0 0.0
        %2082 = vmatprep.subr.mxu0 0.0
        %2083 = vmatpush1.msra.mxu0 0.0
        %2084 = vmatprep.subr.mxu0 0.0
        %2085 = vmatpush1.msra.mxu0 0.0
        %2086 = vmatprep.subr.mxu0 0.0
        %2087 = vmatpush1.msra.mxu0 0.0
        %2088 = vmatprep.subr.mxu0 0.0
        %2089 = vmatpush1.msra.mxu0 0.0
        %2090 = vmatprep.mubr.f32.mxu0 0.0
        %2091 = vmatmul.mubr.f32.gmra.mrb[0].mxu0 %v1953
        %v2092 = vpop.f32.mrb[0].mxu0
        %v2093 = vadd.f32 %v1950, %v2092
        %v2094 = vpop.f32.mrb[0].mxu0
        %v2095 = vadd.f32 %v1951, %v2094
        %2096 = vdwg.mxu0
        %v2097 = vxor.u32 %v2022, 2147483648
        %v2098 = vxor.u32 %v2024, 2147483648
        %v2099 = vxor.u32 %v2093, 2147483648
        %v2100 = vmul.f32 %v2097, 1.442695
        %v2101 = vpow.pop %v2100
        %v2102 = vmul.f32 %v2098, 1.442695
        %v2103 = vpow.pop %v2102
        %v2104 = vmul.f32 %v2099, 1.442695
        %v2105 = vpow.pop %v2104
        %v2106 = vadd.f32 %v2101, 1.0
        %v2107 = vadd.f32 %v2103, 1.0
        %v2108 = vadd.f32 %v2105, 1.0
        %v2109 = vrcp.pop %v2106
        %v2110 = vmul.f32 1.0, %v2109
        %v2111 = vrcp.pop %v2107
        %v2112 = vmul.f32 1.0, %v2111
        %v2113 = vrcp.pop %v2108
        %v2114 = vmul.f32 1.0, %v2113
        %v2115 = vtanh.pop %v2095
        %v2116 = vmul.f32 %v2112, %v1945
        %v2117 = vmul.f32 %v2110, %v2115
        %v2118 = vadd.f32 %v2116, %v2117
        %v2119 = vtanh.pop %v2118
        %v2120 = vmul.f32 %v2114, %v2119
        %v2121 = vld [vmem:[#allocation2 + $0xa0] sm:$0xff]
        %v2122 = vld [vmem:[#allocation2 + $0xa8] sm:$0xff]
        %v2123 = vld [vmem:[#allocation2 + $0xb0] sm:$0xff]
        %v2124 = vld [vmem:[#allocation2 + $0xb8] sm:$0xff]
        %v2126 = vsel %vm981, %v2120, 0
        %2128 = vmatprep.subr.mxu0 %v1217
        %2129 = vmatpush1.msra.mxu0 %v1216
        %2130 = vmatprep.subr.mxu0 %v1221
        %2131 = vmatpush1.msra.mxu0 %v1220
        %2132 = vmatprep.subr.mxu0 %v1225
        %2133 = vmatpush1.msra.mxu0 %v1224
        %2134 = vmatprep.subr.mxu0 %v1229
        %2135 = vmatpush1.msra.mxu0 %v1228
        %2136 = vmatprep.subr.mxu0 %v1233
        %2137 = vmatpush1.msra.mxu0 %v1232
        %2138 = vmatprep.subr.mxu0 %v1237
        %2139 = vmatpush1.msra.mxu0 %v1236
        %2140 = vmatprep.subr.mxu0 %v1255
        %2141 = vmatpush1.msra.mxu0 %v1252
        %2142 = vmatprep.subr.mxu0 0.0
        %2143 = vmatpush1.msra.mxu0 0.0
        %2144 = vmatprep.subr.mxu0 0.0
        %2145 = vmatpush1.msra.mxu0 0.0
        %2146 = vmatprep.subr.mxu0 0.0
        %2147 = vmatpush1.msra.mxu0 0.0
        %2148 = vmatprep.subr.mxu0 0.0
        %2149 = vmatpush1.msra.mxu0 0.0
        %2150 = vmatprep.subr.mxu0 0.0
        %2151 = vmatpush1.msra.mxu0 0.0
        %2152 = vmatprep.subr.mxu0 0.0
        %2153 = vmatpush1.msra.mxu0 0.0
        %2154 = vmatprep.subr.mxu0 0.0
        %2155 = vmatpush1.msra.mxu0 0.0
        %2156 = vmatprep.subr.mxu0 0.0
        %2157 = vmatpush1.msra.mxu0 0.0
        %2158 = vmatprep.subr.mxu0 0.0
        %2159 = vmatpush1.msra.mxu0 0.0
        %2160 = vmatprep.subr.mxu0 0.0
        %2161 = vmatpush1.msra.mxu0 0.0
        %2162 = vmatprep.subr.mxu0 0.0
        %2163 = vmatpush1.msra.mxu0 0.0
        %2164 = vmatprep.subr.mxu0 0.0
        %2165 = vmatpush1.msra.mxu0 0.0
        %2166 = vmatprep.subr.mxu0 0.0
        %2167 = vmatpush1.msra.mxu0 0.0
        %2168 = vmatprep.subr.mxu0 0.0
        %2169 = vmatpush1.msra.mxu0 0.0
        %2170 = vmatprep.subr.mxu0 0.0
        %2171 = vmatpush1.msra.mxu0 0.0
        %2172 = vmatprep.subr.mxu0 0.0
        %2173 = vmatpush1.msra.mxu0 0.0
        %2174 = vmatprep.subr.mxu0 0.0
        %2175 = vmatpush1.msra.mxu0 0.0
        %2176 = vmatprep.subr.mxu0 0.0
        %2177 = vmatpush1.msra.mxu0 0.0
        %2178 = vmatprep.subr.mxu0 0.0
        %2179 = vmatpush1.msra.mxu0 0.0
        %2180 = vmatprep.subr.mxu0 0.0
        %2181 = vmatpush1.msra.mxu0 0.0
        %2182 = vmatprep.subr.mxu0 0.0
        %2183 = vmatpush1.msra.mxu0 0.0
        %2184 = vmatprep.subr.mxu0 0.0
        %2185 = vmatpush1.msra.mxu0 0.0
        %2186 = vmatprep.subr.mxu0 0.0
        %2187 = vmatpush1.msra.mxu0 0.0
        %2188 = vmatprep.subr.mxu0 0.0
        %2189 = vmatpush1.msra.mxu0 0.0
        %2190 = vmatprep.subr.mxu0 0.0
        %2191 = vmatpush1.msra.mxu0 0.0
        %2192 = vmatprep.mubr.f32.mxu0 0.0
        %2193 = vmatmul.mubr.f32.gmra.mrb[0].mxu0 %v2126
        %v2194 = vpop.f32.mrb[0].mxu0
        %v2195 = vadd.f32 %v2121, %v2194
        %v2196 = vpop.f32.mrb[0].mxu0
        %v2197 = vadd.f32 %v2122, %v2196
        %2198 = vdwg.mxu0
        %2199 = vmatprep.subr.mxu0 %v1219
        %2200 = vmatpush1.msra.mxu0 %v1218
        %2201 = vmatprep.subr.mxu0 %v1223
        %2202 = vmatpush1.msra.mxu0 %v1222
        %2203 = vmatprep.subr.mxu0 %v1227
        %2204 = vmatpush1.msra.mxu0 %v1226
        %2205 = vmatprep.subr.mxu0 %v1231
        %2206 = vmatpush1.msra.mxu0 %v1230
        %2207 = vmatprep.subr.mxu0 %v1235
        %2208 = vmatpush1.msra.mxu0 %v1234
        %2209 = vmatprep.subr.mxu0 %v1239
        %2210 = vmatpush1.msra.mxu0 %v1238
        %2211 = vmatprep.subr.mxu0 %v1261
        %2212 = vmatpush1.msra.mxu0 %v1258
        %2213 = vmatprep.subr.mxu0 0.0
        %2214 = vmatpush1.msra.mxu0 0.0
        %2215 = vmatprep.subr.mxu0 0.0
        %2216 = vmatpush1.msra.mxu0 0.0
        %2217 = vmatprep.subr.mxu0 0.0
        %2218 = vmatpush1.msra.mxu0 0.0
        %2219 = vmatprep.subr.mxu0 0.0
        %2220 = vmatpush1.msra.mxu0 0.0
        %2221 = vmatprep.subr.mxu0 0.0
        %2222 = vmatpush1.msra.mxu0 0.0
        %2223 = vmatprep.subr.mxu0 0.0
        %2224 = vmatpush1.msra.mxu0 0.0
        %2225 = vmatprep.subr.mxu0 0.0
        %2226 = vmatpush1.msra.mxu0 0.0
        %2227 = vmatprep.subr.mxu0 0.0
        %2228 = vmatpush1.msra.mxu0 0.0
        %2229 = vmatprep.subr.mxu0 0.0
        %2230 = vmatpush1.msra.mxu0 0.0
        %2231 = vmatprep.subr.mxu0 0.0
        %2232 = vmatpush1.msra.mxu0 0.0
        %2233 = vmatprep.subr.mxu0 0.0
        %2234 = vmatpush1.msra.mxu0 0.0
        %2235 = vmatprep.subr.mxu0 0.0
        %2236 = vmatpush1.msra.mxu0 0.0
        %2237 = vmatprep.subr.mxu0 0.0
        %2238 = vmatpush1.msra.mxu0 0.0
        %2239 = vmatprep.subr.mxu0 0.0
        %2240 = vmatpush1.msra.mxu0 0.0
        %2241 = vmatprep.subr.mxu0 0.0
        %2242 = vmatpush1.msra.mxu0 0.0
        %2243 = vmatprep.subr.mxu0 0.0
        %2244 = vmatpush1.msra.mxu0 0.0
        %2245 = vmatprep.subr.mxu0 0.0
        %2246 = vmatpush1.msra.mxu0 0.0
        %2247 = vmatprep.subr.mxu0 0.0
        %2248 = vmatpush1.msra.mxu0 0.0
        %2249 = vmatprep.subr.mxu0 0.0
        %2250 = vmatpush1.msra.mxu0 0.0
        %2251 = vmatprep.subr.mxu0 0.0
        %2252 = vmatpush1.msra.mxu0 0.0
        %2253 = vmatprep.subr.mxu0 0.0
        %2254 = vmatpush1.msra.mxu0 0.0
        %2255 = vmatprep.subr.mxu0 0.0
        %2256 = vmatpush1.msra.mxu0 0.0
        %2257 = vmatprep.subr.mxu0 0.0
        %2258 = vmatpush1.msra.mxu0 0.0
        %2259 = vmatprep.subr.mxu0 0.0
        %2260 = vmatpush1.msra.mxu0 0.0
        %2261 = vmatprep.subr.mxu0 0.0
        %2262 = vmatpush1.msra.mxu0 0.0
        %2263 = vmatprep.mubr.f32.mxu0 0.0
        %2264 = vmatmul.mubr.f32.gmra.mrb[0].mxu0 %v2126
        %v2265 = vpop.f32.mrb[0].mxu0
        %v2266 = vadd.f32 %v2123, %v2265
        %v2267 = vpop.f32.mrb[0].mxu0
        %v2268 = vadd.f32 %v2124, %v2267
        %2269 = vdwg.mxu0
        %v2270 = vxor.u32 %v2195, 2147483648
        %v2271 = vxor.u32 %v2197, 2147483648
        %v2272 = vxor.u32 %v2266, 2147483648
        %v2273 = vmul.f32 %v2270, 1.442695
        %v2274 = vpow.pop %v2273
        %v2275 = vmul.f32 %v2271, 1.442695
        %v2276 = vpow.pop %v2275
        %v2277 = vmul.f32 %v2272, 1.442695
        %v2278 = vpow.pop %v2277
        %v2279 = vadd.f32 %v2274, 1.0
        %v2280 = vadd.f32 %v2276, 1.0
        %v2281 = vadd.f32 %v2278, 1.0
        %v2282 = vrcp.pop %v2279
        %v2283 = vmul.f32 1.0, %v2282
        %v2284 = vrcp.pop %v2280
        %v2285 = vmul.f32 1.0, %v2284
        %v2286 = vrcp.pop %v2281
        %v2287 = vmul.f32 1.0, %v2286
        %v2288 = vtanh.pop %v2268
        %v2289 = vmul.f32 %v2285, %v2118
        %v2290 = vmul.f32 %v2283, %v2288
        %v2291 = vadd.f32 %v2289, %v2290
        %v2292 = vtanh.pop %v2291
        %v2293 = vmul.f32 %v2287, %v2292
        %v2294 = vld [vmem:[#allocation2 + $0xc0] sm:$0xff]
        %v2295 = vld [vmem:[#allocation2 + $0xc8] sm:$0xff]
        %v2296 = vld [vmem:[#allocation2 + $0xd0] sm:$0xff]
        %v2297 = vld [vmem:[#allocation2 + $0xd8] sm:$0xff]
        %v2299 = vsel %vm981, %v2293, 0
        %2301 = vmatprep.subr.mxu0 %v1217
        %2302 = vmatpush1.msra.mxu0 %v1216
        %2303 = vmatprep.subr.mxu0 %v1221
        %2304 = vmatpush1.msra.mxu0 %v1220
        %2305 = vmatprep.subr.mxu0 %v1225
        %2306 = vmatpush1.msra.mxu0 %v1224
        %2307 = vmatprep.subr.mxu0 %v1229
        %2308 = vmatpush1.msra.mxu0 %v1228
        %2309 = vmatprep.subr.mxu0 %v1233
        %2310 = vmatpush1.msra.mxu0 %v1232
        %2311 = vmatprep.subr.mxu0 %v1237
        %2312 = vmatpush1.msra.mxu0 %v1236
        %2313 = vmatprep.subr.mxu0 %v1255
        %2314 = vmatpush1.msra.mxu0 %v1252
        %2315 = vmatprep.subr.mxu0 0.0
        %2316 = vmatpush1.msra.mxu0 0.0
        %2317 = vmatprep.subr.mxu0 0.0
        %2318 = vmatpush1.msra.mxu0 0.0
        %2319 = vmatprep.subr.mxu0 0.0
        %2320 = vmatpush1.msra.mxu0 0.0
        %2321 = vmatprep.subr.mxu0 0.0
        %2322 = vmatpush1.msra.mxu0 0.0
        %2323 = vmatprep.subr.mxu0 0.0
        %2324 = vmatpush1.msra.mxu0 0.0
        %2325 = vmatprep.subr.mxu0 0.0
        %2326 = vmatpush1.msra.mxu0 0.0
        %2327 = vmatprep.subr.mxu0 0.0
        %2328 = vmatpush1.msra.mxu0 0.0
        %2329 = vmatprep.subr.mxu0 0.0
        %2330 = vmatpush1.msra.mxu0 0.0
        %2331 = vmatprep.subr.mxu0 0.0
        %2332 = vmatpush1.msra.mxu0 0.0
        %2333 = vmatprep.subr.mxu0 0.0
        %2334 = vmatpush1.msra.mxu0 0.0
        %2335 = vmatprep.subr.mxu0 0.0
        %2336 = vmatpush1.msra.mxu0 0.0
        %2337 = vmatprep.subr.mxu0 0.0
        %2338 = vmatpush1.msra.mxu0 0.0
        %2339 = vmatprep.subr.mxu0 0.0
        %2340 = vmatpush1.msra.mxu0 0.0
        %2341 = vmatprep.subr.mxu0 0.0
        %2342 = vmatpush1.msra.mxu0 0.0
        %2343 = vmatprep.subr.mxu0 0.0
        %2344 = vmatpush1.msra.mxu0 0.0
        %2345 = vmatprep.subr.mxu0 0.0
        %2346 = vmatpush1.msra.mxu0 0.0
        %2347 = vmatprep.subr.mxu0 0.0
        %2348 = vmatpush1.msra.mxu0 0.0
        %2349 = vmatprep.subr.mxu0 0.0
        %2350 = vmatpush1.msra.mxu0 0.0
        %2351 = vmatprep.subr.mxu0 0.0
        %2352 = vmatpush1.msra.mxu0 0.0
        %2353 = vmatprep.subr.mxu0 0.0
        %2354 = vmatpush1.msra.mxu0 0.0
        %2355 = vmatprep.subr.mxu0 0.0
        %2356 = vmatpush1.msra.mxu0 0.0
        %2357 = vmatprep.subr.mxu0 0.0
        %2358 = vmatpush1.msra.mxu0 0.0
        %2359 = vmatprep.subr.mxu0 0.0
        %2360 = vmatpush1.msra.mxu0 0.0
        %2361 = vmatprep.subr.mxu0 0.0
        %2362 = vmatpush1.msra.mxu0 0.0
        %2363 = vmatprep.subr.mxu0 0.0
        %2364 = vmatpush1.msra.mxu0 0.0
        %2365 = vmatprep.mubr.f32.mxu0 0.0
        %2366 = vmatmul.mubr.f32.gmra.mrb[0].mxu0 %v2299
        %v2367 = vpop.f32.mrb[0].mxu0
        %v2368 = vadd.f32 %v2294, %v2367
        %v2369 = vpop.f32.mrb[0].mxu0
        %v2370 = vadd.f32 %v2295, %v2369
        %2371 = vdwg.mxu0
        %2372 = vmatprep.subr.mxu0 %v1219
        %2373 = vmatpush1.msra.mxu0 %v1218
        %2374 = vmatprep.subr.mxu0 %v1223
        %2375 = vmatpush1.msra.mxu0 %v1222
        %2376 = vmatprep.subr.mxu0 %v1227
        %2377 = vmatpush1.msra.mxu0 %v1226
        %2378 = vmatprep.subr.mxu0 %v1231
        %2379 = vmatpush1.msra.mxu0 %v1230
        %2380 = vmatprep.subr.mxu0 %v1235
        %2381 = vmatpush1.msra.mxu0 %v1234
        %2382 = vmatprep.subr.mxu0 %v1239
        %2383 = vmatpush1.msra.mxu0 %v1238
        %2384 = vmatprep.subr.mxu0 %v1261
        %2385 = vmatpush1.msra.mxu0 %v1258
        %2386 = vmatprep.subr.mxu0 0.0
        %2387 = vmatpush1.msra.mxu0 0.0
        %2388 = vmatprep.subr.mxu0 0.0
        %2389 = vmatpush1.msra.mxu0 0.0
        %2390 = vmatprep.subr.mxu0 0.0
        %2391 = vmatpush1.msra.mxu0 0.0
        %2392 = vmatprep.subr.mxu0 0.0
        %2393 = vmatpush1.msra.mxu0 0.0
        %2394 = vmatprep.subr.mxu0 0.0
        %2395 = vmatpush1.msra.mxu0 0.0
        %2396 = vmatprep.subr.mxu0 0.0
        %2397 = vmatpush1.msra.mxu0 0.0
        %2398 = vmatprep.subr.mxu0 0.0
        %2399 = vmatpush1.msra.mxu0 0.0
        %2400 = vmatprep.subr.mxu0 0.0
        %2401 = vmatpush1.msra.mxu0 0.0
        %2402 = vmatprep.subr.mxu0 0.0
        %2403 = vmatpush1.msra.mxu0 0.0
        %2404 = vmatprep.subr.mxu0 0.0
        %2405 = vmatpush1.msra.mxu0 0.0
        %2406 = vmatprep.subr.mxu0 0.0
        %2407 = vmatpush1.msra.mxu0 0.0
        %2408 = vmatprep.subr.mxu0 0.0
        %2409 = vmatpush1.msra.mxu0 0.0
        %2410 = vmatprep.subr.mxu0 0.0
        %2411 = vmatpush1.msra.mxu0 0.0
        %2412 = vmatprep.subr.mxu0 0.0
        %2413 = vmatpush1.msra.mxu0 0.0
        %2414 = vmatprep.subr.mxu0 0.0
        %2415 = vmatpush1.msra.mxu0 0.0
        %2416 = vmatprep.subr.mxu0 0.0
        %2417 = vmatpush1.msra.mxu0 0.0
        %2418 = vmatprep.subr.mxu0 0.0
        %2419 = vmatpush1.msra.mxu0 0.0
        %2420 = vmatprep.subr.mxu0 0.0
        %2421 = vmatpush1.msra.mxu0 0.0
        %2422 = vmatprep.subr.mxu0 0.0
        %2423 = vmatpush1.msra.mxu0 0.0
        %2424 = vmatprep.subr.mxu0 0.0
        %2425 = vmatpush1.msra.mxu0 0.0
        %2426 = vmatprep.subr.mxu0 0.0
        %2427 = vmatpush1.msra.mxu0 0.0
        %2428 = vmatprep.subr.mxu0 0.0
        %2429 = vmatpush1.msra.mxu0 0.0
        %2430 = vmatprep.subr.mxu0 0.0
        %2431 = vmatpush1.msra.mxu0 0.0
        %2432 = vmatprep.subr.mxu0 0.0
        %2433 = vmatpush1.msra.mxu0 0.0
        %2434 = vmatprep.subr.mxu0 0.0
        %2435 = vmatpush1.msra.mxu0 0.0
        %2436 = vmatprep.mubr.f32.mxu0 0.0
        %2437 = vmatmul.mubr.f32.gmra.mrb[0].mxu0 %v2299
        %v2438 = vpop.f32.mrb[0].mxu0
        %v2439 = vadd.f32 %v2296, %v2438
        %v2440 = vpop.f32.mrb[0].mxu0
        %v2441 = vadd.f32 %v2297, %v2440
        %2442 = vdwg.mxu0
        %v2443 = vxor.u32 %v2368, 2147483648
        %v2444 = vxor.u32 %v2370, 2147483648
        %v2445 = vxor.u32 %v2439, 2147483648
        %v2446 = vmul.f32 %v2443, 1.442695
        %v2447 = vpow.pop %v2446
        %v2448 = vmul.f32 %v2444, 1.442695
        %v2449 = vpow.pop %v2448
        %v2450 = vmul.f32 %v2445, 1.442695
        %v2451 = vpow.pop %v2450
        %v2452 = vadd.f32 %v2447, 1.0
        %v2453 = vadd.f32 %v2449, 1.0
        %v2454 = vadd.f32 %v2451, 1.0
        %v2455 = vrcp.pop %v2452
        %v2456 = vmul.f32 1.0, %v2455
        %v2457 = vrcp.pop %v2453
        %v2458 = vmul.f32 1.0, %v2457
        %v2459 = vrcp.pop %v2454
        %v2460 = vmul.f32 1.0, %v2459
        %v2461 = vtanh.pop %v2441
        %v2462 = vmul.f32 %v2458, %v2291
        %v2463 = vmul.f32 %v2456, %v2461
        %v2464 = vadd.f32 %v2462, %v2463
        %v2465 = vtanh.pop %v2464
        %v2466 = vmul.f32 %v2460, %v2465
        %v2467 = vld [vmem:[#allocation2 + $0xe0] sm:$0xff]
        %v2468 = vld [vmem:[#allocation2 + $0xe8] sm:$0xff]
        %v2469 = vld [vmem:[#allocation2 + $0xf0] sm:$0xff]
        %v2470 = vld [vmem:[#allocation2 + $0xf8] sm:$0xff]
        %v2472 = vsel %vm981, %v2466, 0
        %2474 = vmatprep.subr.mxu0 %v1217
        %2475 = vmatpush1.msra.mxu0 %v1216
        %2476 = vmatprep.subr.mxu0 %v1221
        %2477 = vmatpush1.msra.mxu0 %v1220
        %2478 = vmatprep.subr.mxu0 %v1225
        %2479 = vmatpush1.msra.mxu0 %v1224
        %2480 = vmatprep.subr.mxu0 %v1229
        %2481 = vmatpush1.msra.mxu0 %v1228
        %2482 = vmatprep.subr.mxu0 %v1233
        %2483 = vmatpush1.msra.mxu0 %v1232
        %2484 = vmatprep.subr.mxu0 %v1237
        %2485 = vmatpush1.msra.mxu0 %v1236
        %2486 = vmatprep.subr.mxu0 %v1255
        %2487 = vmatpush1.msra.mxu0 %v1252
        %2488 = vmatprep.subr.mxu0 0.0
        %2489 = vmatpush1.msra.mxu0 0.0
        %2490 = vmatprep.subr.mxu0 0.0
        %2491 = vmatpush1.msra.mxu0 0.0
        %2492 = vmatprep.subr.mxu0 0.0
        %2493 = vmatpush1.msra.mxu0 0.0
        %2494 = vmatprep.subr.mxu0 0.0
        %2495 = vmatpush1.msra.mxu0 0.0
        %2496 = vmatprep.subr.mxu0 0.0
        %2497 = vmatpush1.msra.mxu0 0.0
        %2498 = vmatprep.subr.mxu0 0.0
        %2499 = vmatpush1.msra.mxu0 0.0
        %2500 = vmatprep.subr.mxu0 0.0
        %2501 = vmatpush1.msra.mxu0 0.0
        %2502 = vmatprep.subr.mxu0 0.0
        %2503 = vmatpush1.msra.mxu0 0.0
        %2504 = vmatprep.subr.mxu0 0.0
        %2505 = vmatpush1.msra.mxu0 0.0
        %2506 = vmatprep.subr.mxu0 0.0
        %2507 = vmatpush1.msra.mxu0 0.0
        %2508 = vmatprep.subr.mxu0 0.0
        %2509 = vmatpush1.msra.mxu0 0.0
        %2510 = vmatprep.subr.mxu0 0.0
        %2511 = vmatpush1.msra.mxu0 0.0
        %2512 = vmatprep.subr.mxu0 0.0
        %2513 = vmatpush1.msra.mxu0 0.0
        %2514 = vmatprep.subr.mxu0 0.0
        %2515 = vmatpush1.msra.mxu0 0.0
        %2516 = vmatprep.subr.mxu0 0.0
        %2517 = vmatpush1.msra.mxu0 0.0
        %2518 = vmatprep.subr.mxu0 0.0
        %2519 = vmatpush1.msra.mxu0 0.0
        %2520 = vmatprep.subr.mxu0 0.0
        %2521 = vmatpush1.msra.mxu0 0.0
        %2522 = vmatprep.subr.mxu0 0.0
        %2523 = vmatpush1.msra.mxu0 0.0
        %2524 = vmatprep.subr.mxu0 0.0
        %2525 = vmatpush1.msra.mxu0 0.0
        %2526 = vmatprep.subr.mxu0 0.0
        %2527 = vmatpush1.msra.mxu0 0.0
        %2528 = vmatprep.subr.mxu0 0.0
        %2529 = vmatpush1.msra.mxu0 0.0
        %2530 = vmatprep.subr.mxu0 0.0
        %2531 = vmatpush1.msra.mxu0 0.0
        %2532 = vmatprep.subr.mxu0 0.0
        %2533 = vmatpush1.msra.mxu0 0.0
        %2534 = vmatprep.subr.mxu0 0.0
        %2535 = vmatpush1.msra.mxu0 0.0
        %2536 = vmatprep.subr.mxu0 0.0
        %2537 = vmatpush1.msra.mxu0 0.0
        %2538 = vmatprep.mubr.f32.mxu0 0.0
        %2539 = vmatmul.mubr.f32.gmra.mrb[0].mxu0 %v2472
        %v2540 = vpop.f32.mrb[0].mxu0
        %v2541 = vadd.f32 %v2467, %v2540
        %v2542 = vpop.f32.mrb[0].mxu0
        %v2543 = vadd.f32 %v2468, %v2542
        %2544 = vdwg.mxu0
        %2545 = vmatprep.subr.mxu0 %v1219
        %2546 = vmatpush1.msra.mxu0 %v1218
        %2547 = vmatprep.subr.mxu0 %v1223
        %2548 = vmatpush1.msra.mxu0 %v1222
        %2549 = vmatprep.subr.mxu0 %v1227
        %2550 = vmatpush1.msra.mxu0 %v1226
        %2551 = vmatprep.subr.mxu0 %v1231
        %2552 = vmatpush1.msra.mxu0 %v1230
        %2553 = vmatprep.subr.mxu0 %v1235
        %2554 = vmatpush1.msra.mxu0 %v1234
        %2555 = vmatprep.subr.mxu0 %v1239
        %2556 = vmatpush1.msra.mxu0 %v1238
        %2557 = vmatprep.subr.mxu0 %v1261
        %2558 = vmatpush1.msra.mxu0 %v1258
        %2559 = vmatprep.subr.mxu0 0.0
        %2560 = vmatpush1.msra.mxu0 0.0
        %2561 = vmatprep.subr.mxu0 0.0
        %2562 = vmatpush1.msra.mxu0 0.0
        %2563 = vmatprep.subr.mxu0 0.0
        %2564 = vmatpush1.msra.mxu0 0.0
        %2565 = vmatprep.subr.mxu0 0.0
        %2566 = vmatpush1.msra.mxu0 0.0
        %2567 = vmatprep.subr.mxu0 0.0
        %2568 = vmatpush1.msra.mxu0 0.0
        %2569 = vmatprep.subr.mxu0 0.0
        %2570 = vmatpush1.msra.mxu0 0.0
        %2571 = vmatprep.subr.mxu0 0.0
        %2572 = vmatpush1.msra.mxu0 0.0
        %2573 = vmatprep.subr.mxu0 0.0
        %2574 = vmatpush1.msra.mxu0 0.0
        %2575 = vmatprep.subr.mxu0 0.0
        %2576 = vmatpush1.msra.mxu0 0.0
        %2577 = vmatprep.subr.mxu0 0.0
        %2578 = vmatpush1.msra.mxu0 0.0
        %2579 = vmatprep.subr.mxu0 0.0
        %2580 = vmatpush1.msra.mxu0 0.0
        %2581 = vmatprep.subr.mxu0 0.0
        %2582 = vmatpush1.msra.mxu0 0.0
        %2583 = vmatprep.subr.mxu0 0.0
        %2584 = vmatpush1.msra.mxu0 0.0
        %2585 = vmatprep.subr.mxu0 0.0
        %2586 = vmatpush1.msra.mxu0 0.0
        %2587 = vmatprep.subr.mxu0 0.0
        %2588 = vmatpush1.msra.mxu0 0.0
        %2589 = vmatprep.subr.mxu0 0.0
        %2590 = vmatpush1.msra.mxu0 0.0
        %2591 = vmatprep.subr.mxu0 0.0
        %2592 = vmatpush1.msra.mxu0 0.0
        %2593 = vmatprep.subr.mxu0 0.0
        %2594 = vmatpush1.msra.mxu0 0.0
        %2595 = vmatprep.subr.mxu0 0.0
        %2596 = vmatpush1.msra.mxu0 0.0
        %2597 = vmatprep.subr.mxu0 0.0
        %2598 = vmatpush1.msra.mxu0 0.0
        %2599 = vmatprep.subr.mxu0 0.0
        %2600 = vmatpush1.msra.mxu0 0.0
        %2601 = vmatprep.subr.mxu0 0.0
        %2602 = vmatpush1.msra.mxu0 0.0
        %2603 = vmatprep.subr.mxu0 0.0
        %2604 = vmatpush1.msra.mxu0 0.0
        %2605 = vmatprep.subr.mxu0 0.0
        %2606 = vmatpush1.msra.mxu0 0.0
        %2607 = vmatprep.subr.mxu0 0.0
        %2608 = vmatpush1.msra.mxu0 0.0
        %2609 = vmatprep.mubr.f32.mxu0 0.0
        %2610 = vmatmul.mubr.f32.gmra.mrb[0].mxu0 %v2472
        %v2611 = vpop.f32.mrb[0].mxu0
        %v2612 = vadd.f32 %v2469, %v2611
        %v2613 = vpop.f32.mrb[0].mxu0
        %v2614 = vadd.f32 %v2470, %v2613
        %2615 = vdwg.mxu0
        %v2616 = vxor.u32 %v2541, 2147483648
        %v2617 = vxor.u32 %v2543, 2147483648
        %v2618 = vxor.u32 %v2612, 2147483648
        %v2619 = vmul.f32 %v2616, 1.442695
        %v2620 = vpow.pop %v2619
        %v2621 = vmul.f32 %v2617, 1.442695
        %v2622 = vpow.pop %v2621
        %v2623 = vmul.f32 %v2618, 1.442695
        %v2624 = vpow.pop %v2623
        %v2625 = vadd.f32 %v2620, 1.0
        %v2626 = vadd.f32 %v2622, 1.0
        %v2627 = vadd.f32 %v2624, 1.0
        %v2628 = vrcp.pop %v2625
        %v2629 = vmul.f32 1.0, %v2628
        %v2630 = vrcp.pop %v2626
        %v2631 = vmul.f32 1.0, %v2630
        %v2632 = vrcp.pop %v2627
        %v2633 = vmul.f32 1.0, %v2632
        %v2634 = vtanh.pop %v2614
        %v2635 = vmul.f32 %v2631, %v2464
        %v2636 = vmul.f32 %v2629, %v2634
        %v2637 = vadd.f32 %v2635, %v2636
        %v2638 = vtanh.pop %v2637
        %v2639 = vmul.f32 %v2633, %v2638
        %v2640 = vld [vmem:[#allocation2 + $0x100] sm:$0xff]
        %v2641 = vld [vmem:[#allocation2 + $0x108] sm:$0xff]
        %v2642 = vld [vmem:[#allocation2 + $0x110] sm:$0xff]
        %v2643 = vld [vmem:[#allocation2 + $0x118] sm:$0xff]
        %v2645 = vsel %vm981, %v2639, 0
        %2647 = vmatprep.subr.mxu0 %v1217
        %2648 = vmatpush1.msra.mxu0 %v1216
        %2649 = vmatprep.subr.mxu0 %v1221
        %2650 = vmatpush1.msra.mxu0 %v1220
        %2651 = vmatprep.subr.mxu0 %v1225
        %2652 = vmatpush1.msra.mxu0 %v1224
        %2653 = vmatprep.subr.mxu0 %v1229
        %2654 = vmatpush1.msra.mxu0 %v1228
        %2655 = vmatprep.subr.mxu0 %v1233
        %2656 = vmatpush1.msra.mxu0 %v1232
        %2657 = vmatprep.subr.mxu0 %v1237
        %2658 = vmatpush1.msra.mxu0 %v1236
        %2659 = vmatprep.subr.mxu0 %v1255
        %2660 = vmatpush1.msra.mxu0 %v1252
        %2661 = vmatprep.subr.mxu0 0.0
        %2662 = vmatpush1.msra.mxu0 0.0
        %2663 = vmatprep.subr.mxu0 0.0
        %2664 = vmatpush1.msra.mxu0 0.0
        %2665 = vmatprep.subr.mxu0 0.0
        %2666 = vmatpush1.msra.mxu0 0.0
        %2667 = vmatprep.subr.mxu0 0.0
        %2668 = vmatpush1.msra.mxu0 0.0
        %2669 = vmatprep.subr.mxu0 0.0
        %2670 = vmatpush1.msra.mxu0 0.0
        %2671 = vmatprep.subr.mxu0 0.0
        %2672 = vmatpush1.msra.mxu0 0.0
        %2673 = vmatprep.subr.mxu0 0.0
        %2674 = vmatpush1.msra.mxu0 0.0
        %2675 = vmatprep.subr.mxu0 0.0
        %2676 = vmatpush1.msra.mxu0 0.0
        %2677 = vmatprep.subr.mxu0 0.0
        %2678 = vmatpush1.msra.mxu0 0.0
        %2679 = vmatprep.subr.mxu0 0.0
        %2680 = vmatpush1.msra.mxu0 0.0
        %2681 = vmatprep.subr.mxu0 0.0
        %2682 = vmatpush1.msra.mxu0 0.0
        %2683 = vmatprep.subr.mxu0 0.0
        %2684 = vmatpush1.msra.mxu0 0.0
        %2685 = vmatprep.subr.mxu0 0.0
        %2686 = vmatpush1.msra.mxu0 0.0
        %2687 = vmatprep.subr.mxu0 0.0
        %2688 = vmatpush1.msra.mxu0 0.0
        %2689 = vmatprep.subr.mxu0 0.0
        %2690 = vmatpush1.msra.mxu0 0.0
        %2691 = vmatprep.subr.mxu0 0.0
        %2692 = vmatpush1.msra.mxu0 0.0
        %2693 = vmatprep.subr.mxu0 0.0
        %2694 = vmatpush1.msra.mxu0 0.0
        %2695 = vmatprep.subr.mxu0 0.0
        %2696 = vmatpush1.msra.mxu0 0.0
        %2697 = vmatprep.subr.mxu0 0.0
        %2698 = vmatpush1.msra.mxu0 0.0
        %2699 = vmatprep.subr.mxu0 0.0
        %2700 = vmatpush1.msra.mxu0 0.0
        %2701 = vmatprep.subr.mxu0 0.0
        %2702 = vmatpush1.msra.mxu0 0.0
        %2703 = vmatprep.subr.mxu0 0.0
        %2704 = vmatpush1.msra.mxu0 0.0
        %2705 = vmatprep.subr.mxu0 0.0
        %2706 = vmatpush1.msra.mxu0 0.0
        %2707 = vmatprep.subr.mxu0 0.0
        %2708 = vmatpush1.msra.mxu0 0.0
        %2709 = vmatprep.subr.mxu0 0.0
        %2710 = vmatpush1.msra.mxu0 0.0
        %2711 = vmatprep.mubr.f32.mxu0 0.0
        %2712 = vmatmul.mubr.f32.gmra.mrb[0].mxu0 %v2645
        %v2713 = vpop.f32.mrb[0].mxu0
        %v2714 = vadd.f32 %v2640, %v2713
        %v2715 = vpop.f32.mrb[0].mxu0
        %v2716 = vadd.f32 %v2641, %v2715
        %2717 = vdwg.mxu0
        %2718 = vmatprep.subr.mxu0 %v1219
        %2719 = vmatpush1.msra.mxu0 %v1218
        %2720 = vmatprep.subr.mxu0 %v1223
        %2721 = vmatpush1.msra.mxu0 %v1222
        %2722 = vmatprep.subr.mxu0 %v1227
        %2723 = vmatpush1.msra.mxu0 %v1226
        %2724 = vmatprep.subr.mxu0 %v1231
        %2725 = vmatpush1.msra.mxu0 %v1230
        %2726 = vmatprep.subr.mxu0 %v1235
        %2727 = vmatpush1.msra.mxu0 %v1234
        %2728 = vmatprep.subr.mxu0 %v1239
        %2729 = vmatpush1.msra.mxu0 %v1238
        %2730 = vmatprep.subr.mxu0 %v1261
        %2731 = vmatpush1.msra.mxu0 %v1258
        %2732 = vmatprep.subr.mxu0 0.0
        %2733 = vmatpush1.msra.mxu0 0.0
        %2734 = vmatprep.subr.mxu0 0.0
        %2735 = vmatpush1.msra.mxu0 0.0
        %2736 = vmatprep.subr.mxu0 0.0
        %2737 = vmatpush1.msra.mxu0 0.0
        %2738 = vmatprep.subr.mxu0 0.0
        %2739 = vmatpush1.msra.mxu0 0.0
        %2740 = vmatprep.subr.mxu0 0.0
        %2741 = vmatpush1.msra.mxu0 0.0
        %2742 = vmatprep.subr.mxu0 0.0
        %2743 = vmatpush1.msra.mxu0 0.0
        %2744 = vmatprep.subr.mxu0 0.0
        %2745 = vmatpush1.msra.mxu0 0.0
        %2746 = vmatprep.subr.mxu0 0.0
        %2747 = vmatpush1.msra.mxu0 0.0
        %2748 = vmatprep.subr.mxu0 0.0
        %2749 = vmatpush1.msra.mxu0 0.0
        %2750 = vmatprep.subr.mxu0 0.0
        %2751 = vmatpush1.msra.mxu0 0.0
        %2752 = vmatprep.subr.mxu0 0.0
        %2753 = vmatpush1.msra.mxu0 0.0
        %2754 = vmatprep.subr.mxu0 0.0
        %2755 = vmatpush1.msra.mxu0 0.0
        %2756 = vmatprep.subr.mxu0 0.0
        %2757 = vmatpush1.msra.mxu0 0.0
        %2758 = vmatprep.subr.mxu0 0.0
        %2759 = vmatpush1.msra.mxu0 0.0
        %2760 = vmatprep.subr.mxu0 0.0
        %2761 = vmatpush1.msra.mxu0 0.0
        %2762 = vmatprep.subr.mxu0 0.0
        %2763 = vmatpush1.msra.mxu0 0.0
        %2764 = vmatprep.subr.mxu0 0.0
        %2765 = vmatpush1.msra.mxu0 0.0
        %2766 = vmatprep.subr.mxu0 0.0
        %2767 = vmatpush1.msra.mxu0 0.0
        %2768 = vmatprep.subr.mxu0 0.0
        %2769 = vmatpush1.msra.mxu0 0.0
        %2770 = vmatprep.subr.mxu0 0.0
        %2771 = vmatpush1.msra.mxu0 0.0
        %2772 = vmatprep.subr.mxu0 0.0
        %2773 = vmatpush1.msra.mxu0 0.0
        %2774 = vmatprep.subr.mxu0 0.0
        %2775 = vmatpush1.msra.mxu0 0.0
        %2776 = vmatprep.subr.mxu0 0.0
        %2777 = vmatpush1.msra.mxu0 0.0
        %2778 = vmatprep.subr.mxu0 0.0
        %2779 = vmatpush1.msra.mxu0 0.0
        %2780 = vmatprep.subr.mxu0 0.0
        %2781 = vmatpush1.msra.mxu0 0.0
        %2782 = vmatprep.mubr.f32.mxu0 0.0
        %2783 = vmatmul.mubr.f32.gmra.mrb[0].mxu0 %v2645
        %v2784 = vpop.f32.mrb[0].mxu0
        %v2785 = vadd.f32 %v2642, %v2784
        %v2786 = vpop.f32.mrb[0].mxu0
        %v2787 = vadd.f32 %v2643, %v2786
        %2788 = vdwg.mxu0
        %v2789 = vxor.u32 %v2714, 2147483648
        %v2790 = vxor.u32 %v2716, 2147483648
        %v2791 = vxor.u32 %v2785, 2147483648
        %v2792 = vmul.f32 %v2789, 1.442695
        %v2793 = vpow.pop %v2792
        %v2794 = vmul.f32 %v2790, 1.442695
        %v2795 = vpow.pop %v2794
        %v2796 = vmul.f32 %v2791, 1.442695
        %v2797 = vpow.pop %v2796
        %v2798 = vadd.f32 %v2793, 1.0
        %v2799 = vadd.f32 %v2795, 1.0
        %v2800 = vadd.f32 %v2797, 1.0
        %v2801 = vrcp.pop %v2798
        %v2802 = vmul.f32 1.0, %v2801
        %v2803 = vrcp.pop %v2799
        %v2804 = vmul.f32 1.0, %v2803
        %v2805 = vrcp.pop %v2800
        %v2806 = vmul.f32 1.0, %v2805
        %v2807 = vtanh.pop %v2787
        %v2808 = vmul.f32 %v2804, %v2637
        %v2809 = vmul.f32 %v2802, %v2807
        %v2810 = vadd.f32 %v2808, %v2809
        %v2811 = vtanh.pop %v2810
        %v2812 = vmul.f32 %v2806, %v2811
        %v2813 = vld [vmem:[#allocation2 + $0x120] sm:$0xff]
        %v2814 = vld [vmem:[#allocation2 + $0x128] sm:$0xff]
        %v2815 = vld [vmem:[#allocation2 + $0x130] sm:$0xff]
        %v2816 = vld [vmem:[#allocation2 + $0x138] sm:$0xff]
        %v2818 = vsel %vm981, %v2812, 0
        %2820 = vmatprep.subr.mxu0 %v1217
        %2821 = vmatpush1.msra.mxu0 %v1216
        %2822 = vmatprep.subr.mxu0 %v1221
        %2823 = vmatpush1.msra.mxu0 %v1220
        %2824 = vmatprep.subr.mxu0 %v1225
        %2825 = vmatpush1.msra.mxu0 %v1224
        %2826 = vmatprep.subr.mxu0 %v1229
        %2827 = vmatpush1.msra.mxu0 %v1228
        %2828 = vmatprep.subr.mxu0 %v1233
        %2829 = vmatpush1.msra.mxu0 %v1232
        %2830 = vmatprep.subr.mxu0 %v1237
        %2831 = vmatpush1.msra.mxu0 %v1236
        %2832 = vmatprep.subr.mxu0 %v1255
        %2833 = vmatpush1.msra.mxu0 %v1252
        %2834 = vmatprep.subr.mxu0 0.0
        %2835 = vmatpush1.msra.mxu0 0.0
        %2836 = vmatprep.subr.mxu0 0.0
        %2837 = vmatpush1.msra.mxu0 0.0
        %2838 = vmatprep.subr.mxu0 0.0
        %2839 = vmatpush1.msra.mxu0 0.0
        %2840 = vmatprep.subr.mxu0 0.0
        %2841 = vmatpush1.msra.mxu0 0.0
        %2842 = vmatprep.subr.mxu0 0.0
        %2843 = vmatpush1.msra.mxu0 0.0
        %2844 = vmatprep.subr.mxu0 0.0
        %2845 = vmatpush1.msra.mxu0 0.0
        %2846 = vmatprep.subr.mxu0 0.0
        %2847 = vmatpush1.msra.mxu0 0.0
        %2848 = vmatprep.subr.mxu0 0.0
        %2849 = vmatpush1.msra.mxu0 0.0
        %2850 = vmatprep.subr.mxu0 0.0
        %2851 = vmatpush1.msra.mxu0 0.0
        %2852 = vmatprep.subr.mxu0 0.0
        %2853 = vmatpush1.msra.mxu0 0.0
        %2854 = vmatprep.subr.mxu0 0.0
        %2855 = vmatpush1.msra.mxu0 0.0
        %2856 = vmatprep.subr.mxu0 0.0
        %2857 = vmatpush1.msra.mxu0 0.0
        %2858 = vmatprep.subr.mxu0 0.0
        %2859 = vmatpush1.msra.mxu0 0.0
        %2860 = vmatprep.subr.mxu0 0.0
        %2861 = vmatpush1.msra.mxu0 0.0
        %2862 = vmatprep.subr.mxu0 0.0
        %2863 = vmatpush1.msra.mxu0 0.0
        %2864 = vmatprep.subr.mxu0 0.0
        %2865 = vmatpush1.msra.mxu0 0.0
        %2866 = vmatprep.subr.mxu0 0.0
        %2867 = vmatpush1.msra.mxu0 0.0
        %2868 = vmatprep.subr.mxu0 0.0
        %2869 = vmatpush1.msra.mxu0 0.0
        %2870 = vmatprep.subr.mxu0 0.0
        %2871 = vmatpush1.msra.mxu0 0.0
        %2872 = vmatprep.subr.mxu0 0.0
        %2873 = vmatpush1.msra.mxu0 0.0
        %2874 = vmatprep.subr.mxu0 0.0
        %2875 = vmatpush1.msra.mxu0 0.0
        %2876 = vmatprep.subr.mxu0 0.0
        %2877 = vmatpush1.msra.mxu0 0.0
        %2878 = vmatprep.subr.mxu0 0.0
        %2879 = vmatpush1.msra.mxu0 0.0
        %2880 = vmatprep.subr.mxu0 0.0
        %2881 = vmatpush1.msra.mxu0 0.0
        %2882 = vmatprep.subr.mxu0 0.0
        %2883 = vmatpush1.msra.mxu0 0.0
        %2884 = vmatprep.mubr.f32.mxu0 0.0
        %2885 = vmatmul.mubr.f32.gmra.mrb[0].mxu0 %v2818
        %v2886 = vpop.f32.mrb[0].mxu0
        %v2887 = vadd.f32 %v2813, %v2886
        %v2888 = vpop.f32.mrb[0].mxu0
        %v2889 = vadd.f32 %v2814, %v2888
        %2890 = vdwg.mxu0
        %2891 = vmatprep.subr.mxu0 %v1219
        %2892 = vmatpush1.msra.mxu0 %v1218
        %2893 = vmatprep.subr.mxu0 %v1223
        %2894 = vmatpush1.msra.mxu0 %v1222
        %2895 = vmatprep.subr.mxu0 %v1227
        %2896 = vmatpush1.msra.mxu0 %v1226
        %2897 = vmatprep.subr.mxu0 %v1231
        %2898 = vmatpush1.msra.mxu0 %v1230
        %2899 = vmatprep.subr.mxu0 %v1235
        %2900 = vmatpush1.msra.mxu0 %v1234
        %2901 = vmatprep.subr.mxu0 %v1239
        %2902 = vmatpush1.msra.mxu0 %v1238
        %2903 = vmatprep.subr.mxu0 %v1261
        %2904 = vmatpush1.msra.mxu0 %v1258
        %2905 = vmatprep.subr.mxu0 0.0
        %2906 = vmatpush1.msra.mxu0 0.0
        %2907 = vmatprep.subr.mxu0 0.0
        %2908 = vmatpush1.msra.mxu0 0.0
        %2909 = vmatprep.subr.mxu0 0.0
        %2910 = vmatpush1.msra.mxu0 0.0
        %2911 = vmatprep.subr.mxu0 0.0
        %2912 = vmatpush1.msra.mxu0 0.0
        %2913 = vmatprep.subr.mxu0 0.0
        %2914 = vmatpush1.msra.mxu0 0.0
        %2915 = vmatprep.subr.mxu0 0.0
        %2916 = vmatpush1.msra.mxu0 0.0
        %2917 = vmatprep.subr.mxu0 0.0
        %2918 = vmatpush1.msra.mxu0 0.0
        %2919 = vmatprep.subr.mxu0 0.0
        %2920 = vmatpush1.msra.mxu0 0.0
        %2921 = vmatprep.subr.mxu0 0.0
        %2922 = vmatpush1.msra.mxu0 0.0
        %2923 = vmatprep.subr.mxu0 0.0
        %2924 = vmatpush1.msra.mxu0 0.0
        %2925 = vmatprep.subr.mxu0 0.0
        %2926 = vmatpush1.msra.mxu0 0.0
        %2927 = vmatprep.subr.mxu0 0.0
        %2928 = vmatpush1.msra.mxu0 0.0
        %2929 = vmatprep.subr.mxu0 0.0
        %2930 = vmatpush1.msra.mxu0 0.0
        %2931 = vmatprep.subr.mxu0 0.0
        %2932 = vmatpush1.msra.mxu0 0.0
        %2933 = vmatprep.subr.mxu0 0.0
        %2934 = vmatpush1.msra.mxu0 0.0
        %2935 = vmatprep.subr.mxu0 0.0
        %2936 = vmatpush1.msra.mxu0 0.0
        %2937 = vmatprep.subr.mxu0 0.0
        %2938 = vmatpush1.msra.mxu0 0.0
        %2939 = vmatprep.subr.mxu0 0.0
        %2940 = vmatpush1.msra.mxu0 0.0
        %2941 = vmatprep.subr.mxu0 0.0
        %2942 = vmatpush1.msra.mxu0 0.0
        %2943 = vmatprep.subr.mxu0 0.0
        %2944 = vmatpush1.msra.mxu0 0.0
        %2945 = vmatprep.subr.mxu0 0.0
        %2946 = vmatpush1.msra.mxu0 0.0
        %2947 = vmatprep.subr.mxu0 0.0
        %2948 = vmatpush1.msra.mxu0 0.0
        %2949 = vmatprep.subr.mxu0 0.0
        %2950 = vmatpush1.msra.mxu0 0.0
        %2951 = vmatprep.subr.mxu0 0.0
        %2952 = vmatpush1.msra.mxu0 0.0
        %2953 = vmatprep.subr.mxu0 0.0
        %2954 = vmatpush1.msra.mxu0 0.0
        %2955 = vmatprep.mubr.f32.mxu0 0.0
        %2956 = vmatmul.mubr.f32.gmra.mrb[0].mxu0 %v2818
        %v2957 = vpop.f32.mrb[0].mxu0
        %v2958 = vadd.f32 %v2815, %v2957
        %v2959 = vpop.f32.mrb[0].mxu0
        %v2960 = vadd.f32 %v2816, %v2959
        %2961 = vdwg.mxu0
        %v2962 = vxor.u32 %v2887, 2147483648
        %v2963 = vxor.u32 %v2889, 2147483648
        %v2964 = vxor.u32 %v2958, 2147483648
        %v2965 = vmul.f32 %v2962, 1.442695
        %v2966 = vpow.pop %v2965
        %v2967 = vmul.f32 %v2963, 1.442695
        %v2968 = vpow.pop %v2967
        %v2969 = vmul.f32 %v2964, 1.442695
        %v2970 = vpow.pop %v2969
        %v2971 = vadd.f32 %v2966, 1.0
        %v2972 = vadd.f32 %v2968, 1.0
        %v2973 = vadd.f32 %v2970, 1.0
        %v2974 = vrcp.pop %v2971
        %v2975 = vmul.f32 1.0, %v2974
        %v2976 = vrcp.pop %v2972
        %v2977 = vmul.f32 1.0, %v2976
        %v2978 = vrcp.pop %v2973
        %v2979 = vmul.f32 1.0, %v2978
        %v2980 = vtanh.pop %v2960
        %v2981 = vmul.f32 %v2977, %v2810
        %v2982 = vmul.f32 %v2975, %v2980
        %v2983 = vadd.f32 %v2981, %v2982
        %v2984 = vtanh.pop %v2983
        %v2985 = vmul.f32 %v2979, %v2984
        %v2986 = vld [vmem:[%s351] sm:$0xff]
        %v2987 = vld [vmem:[%s5] sm:$0x3f]
        %v2988 = vld [vmem:[%s5 + $0x8] sm:$0x3f]
        %v2989 = vld [vmem:[%s5 + $0x20] sm:$0xff]
        %v2990 = vld [vmem:[%s5 + $0x28] sm:$0xff]
        %v2991 = vld [vmem:[%s5 + $0x30] sm:$0xff]
        %v2992 = vld [vmem:[%s5 + $0x38] sm:$0xff]
        %v2993 = vld [vmem:[%s5 + $0x40] sm:$0xff]
        %v2994 = vld [vmem:[%s5 + $0x48] sm:$0xff]
        %v2995 = vld [vmem:[%s5 + $0x50] sm:$0xff]
        %v2996 = vld [vmem:[%s5 + $0x58] sm:$0xff]
        %v2997 = vld [vmem:[%s5 + $0x60] sm:$0xff]
        %v2998 = vld [vmem:[%s5 + $0x68] sm:$0xff]
        %v2999 = vld [vmem:[%s5 + $0x70] sm:$0xff]
        %v3000 = vld [vmem:[%s5 + $0x78] sm:$0xff]
        %v3001 = vld [vmem:[%s5 + $0x80] sm:$0x3]
        %v3002 = vld [vmem:[%s5 + $0x88] sm:$0x3]
        %v3004 = vsel %vm981, %v2985, 0
        %v3007 = vsel %vm792, %v3001, 0
        %v3010 = vsel %vm792, %v3002, 0
        %3012 = vmatprep.subr.mxu0 %v2990
        %3013 = vmatpush1.msra.mxu0 %v2989
        %3014 = vmatprep.subr.mxu0 %v2992
        %3015 = vmatpush1.msra.mxu0 %v2991
        %3016 = vmatprep.subr.mxu0 %v2994
        %3017 = vmatpush1.msra.mxu0 %v2993
        %3018 = vmatprep.subr.mxu0 %v2996
        %3019 = vmatpush1.msra.mxu0 %v2995
        %3020 = vmatprep.subr.mxu0 %v2998
        %3021 = vmatpush1.msra.mxu0 %v2997
        %3022 = vmatprep.subr.mxu0 %v3000
        %3023 = vmatpush1.msra.mxu0 %v2999
        %3024 = vmatprep.subr.mxu0 %v3010
        %3025 = vmatpush1.msra.mxu0 %v3007
        %3026 = vmatprep.subr.mxu0 0.0
        %3027 = vmatpush1.msra.mxu0 0.0
        %3028 = vmatprep.subr.mxu0 0.0
        %3029 = vmatpush1.msra.mxu0 0.0
        %3030 = vmatprep.subr.mxu0 0.0
        %3031 = vmatpush1.msra.mxu0 0.0
        %3032 = vmatprep.subr.mxu0 0.0
        %3033 = vmatpush1.msra.mxu0 0.0
        %3034 = vmatprep.subr.mxu0 0.0
        %3035 = vmatpush1.msra.mxu0 0.0
        %3036 = vmatprep.subr.mxu0 0.0
        %3037 = vmatpush1.msra.mxu0 0.0
        %3038 = vmatprep.subr.mxu0 0.0
        %3039 = vmatpush1.msra.mxu0 0.0
        %3040 = vmatprep.subr.mxu0 0.0
        %3041 = vmatpush1.msra.mxu0 0.0
        %3042 = vmatprep.subr.mxu0 0.0
        %3043 = vmatpush1.msra.mxu0 0.0
        %3044 = vmatprep.subr.mxu0 0.0
        %3045 = vmatpush1.msra.mxu0 0.0
        %3046 = vmatprep.subr.mxu0 0.0
        %3047 = vmatpush1.msra.mxu0 0.0
        %3048 = vmatprep.subr.mxu0 0.0
        %3049 = vmatpush1.msra.mxu0 0.0
        %3050 = vmatprep.subr.mxu0 0.0
        %3051 = vmatpush1.msra.mxu0 0.0
        %3052 = vmatprep.subr.mxu0 0.0
        %3053 = vmatpush1.msra.mxu0 0.0
        %3054 = vmatprep.subr.mxu0 0.0
        %3055 = vmatpush1.msra.mxu0 0.0
        %3056 = vmatprep.subr.mxu0 0.0
        %3057 = vmatpush1.msra.mxu0 0.0
        %3058 = vmatprep.subr.mxu0 0.0
        %3059 = vmatpush1.msra.mxu0 0.0
        %3060 = vmatprep.subr.mxu0 0.0
        %3061 = vmatpush1.msra.mxu0 0.0
        %3062 = vmatprep.subr.mxu0 0.0
        %3063 = vmatpush1.msra.mxu0 0.0
        %3064 = vmatprep.subr.mxu0 0.0
        %3065 = vmatpush1.msra.mxu0 0.0
        %3066 = vmatprep.subr.mxu0 0.0
        %3067 = vmatpush1.msra.mxu0 0.0
        %3068 = vmatprep.subr.mxu0 0.0
        %3069 = vmatpush1.msra.mxu0 0.0
        %3070 = vmatprep.subr.mxu0 0.0
        %3071 = vmatpush1.msra.mxu0 0.0
        %3072 = vmatprep.subr.mxu0 0.0
        %3073 = vmatpush1.msra.mxu0 0.0
        %3074 = vmatprep.subr.mxu0 0.0
        %3075 = vmatpush1.msra.mxu0 0.0
        %3076 = vmatprep.mubr.f32.mxu0 0.0
        %3077 = vmatmul.mubr.f32.gmra.mrb[0].mxu0 %v3004
        %v3078 = vpop.f32.mrb[0].mxu0
        %v3079 = vadd.f32 0.0, %v3078
        %v3080 = vpop.f32.mrb[0].mxu0
        %v3081 = vadd.f32 0.0, %v3080
        %3082 = vdwg.mxu0
        %vm3083 = vcmask 48128
        %v3085 = vsel %vm3083, %v2986, 0
        %v3088 = vsel %vm405, %v2987, 0
        %v3091 = vsel %vm405, %v2988, 0
        %3093 = vmatprep.subr.mxu0 %v3091
        %3094 = vmatpush1.msra.mxu0 %v3088
        %3095 = vmatprep.subr.mxu0 0.0
        %3096 = vmatpush1.msra.mxu0 0.0
        %3097 = vmatprep.subr.mxu0 0.0
        %3098 = vmatpush1.msra.mxu0 0.0
        %3099 = vmatprep.subr.mxu0 0.0
        %3100 = vmatpush1.msra.mxu0 0.0
        %3101 = vmatprep.subr.mxu0 0.0
        %3102 = vmatpush1.msra.mxu0 0.0
        %3103 = vmatprep.subr.mxu0 0.0
        %3104 = vmatpush1.msra.mxu0 0.0
        %3105 = vmatprep.subr.mxu0 0.0
        %3106 = vmatpush1.msra.mxu0 0.0
        %3107 = vmatprep.subr.mxu0 0.0
        %3108 = vmatpush1.msra.mxu0 0.0
        %3109 = vmatprep.subr.mxu0 0.0
        %3110 = vmatpush1.msra.mxu0 0.0
        %3111 = vmatprep.subr.mxu0 0.0
        %3112 = vmatpush1.msra.mxu0 0.0
        %3113 = vmatprep.subr.mxu0 0.0
        %3114 = vmatpush1.msra.mxu0 0.0
        %3115 = vmatprep.subr.mxu0 0.0
        %3116 = vmatpush1.msra.mxu0 0.0
        %3117 = vmatprep.subr.mxu0 0.0
        %3118 = vmatpush1.msra.mxu0 0.0
        %3119 = vmatprep.subr.mxu0 0.0
        %3120 = vmatpush1.msra.mxu0 0.0
        %3121 = vmatprep.subr.mxu0 0.0
        %3122 = vmatpush1.msra.mxu0 0.0
        %3123 = vmatprep.subr.mxu0 0.0
        %3124 = vmatpush1.msra.mxu0 0.0
        %3125 = vmatprep.subr.mxu0 0.0
        %3126 = vmatpush1.msra.mxu0 0.0
        %3127 = vmatprep.subr.mxu0 0.0
        %3128 = vmatpush1.msra.mxu0 0.0
        %3129 = vmatprep.subr.mxu0 0.0
        %3130 = vmatpush1.msra.mxu0 0.0
        %3131 = vmatprep.subr.mxu0 0.0
        %3132 = vmatpush1.msra.mxu0 0.0
        %3133 = vmatprep.subr.mxu0 0.0
        %3134 = vmatpush1.msra.mxu0 0.0
        %3135 = vmatprep.subr.mxu0 0.0
        %3136 = vmatpush1.msra.mxu0 0.0
        %3137 = vmatprep.subr.mxu0 0.0
        %3138 = vmatpush1.msra.mxu0 0.0
        %3139 = vmatprep.subr.mxu0 0.0
        %3140 = vmatpush1.msra.mxu0 0.0
        %3141 = vmatprep.subr.mxu0 0.0
        %3142 = vmatpush1.msra.mxu0 0.0
        %3143 = vmatprep.subr.mxu0 0.0
        %3144 = vmatpush1.msra.mxu0 0.0
        %3145 = vmatprep.subr.mxu0 0.0
        %3146 = vmatpush1.msra.mxu0 0.0
        %3147 = vmatprep.subr.mxu0 0.0
        %3148 = vmatpush1.msra.mxu0 0.0
        %3149 = vmatprep.subr.mxu0 0.0
        %3150 = vmatpush1.msra.mxu0 0.0
        %3151 = vmatprep.subr.mxu0 0.0
        %3152 = vmatpush1.msra.mxu0 0.0
        %3153 = vmatprep.subr.mxu0 0.0
        %3154 = vmatpush1.msra.mxu0 0.0
        %3155 = vmatprep.subr.mxu0 0.0
        %3156 = vmatpush1.msra.mxu0 0.0
        %3157 = vmatprep.mubr.f32.mxu0 0.0
        %3158 = vmatmul.mubr.f32.gmra.mrb[0].mxu0 %v3085
        %v3159 = vpop.f32.mrb[0].mxu0
        %v3160 = vadd.f32 %v3079, %v3159
        %v3161 = vpop.f32.mrb[0].mxu0
        %v3162 = vadd.f32 %v3081, %v3161
        %3163 = vdwg.mxu0
        %s3164 = scalar_lea.vmem %s5, 16
        %v3165 = vld [vmem:[%s3164] ss:$8 sm:$0x3]
        %v3167 = vlaneseq
        %v3168 = vshrl.u32 %v3167, 7
        %v3169 = vsub.s32 0, %v3168
        %v3170 = vrot.slane %v3165, %v3169
        %v3171 = vlaneseq
        %v3172 = vshrl.u32 %v3171, 7
        %v3173 = vsub.s32 1, %v3172
        %v3174 = vrot.slane %v3165, %v3173
        %v3177 = vadd.f32 %v3160, %v3170
        %v3178 = vadd.f32 %v3162, %v3174
        %v3179 = vmax.f32 %v3177, 0.0
        %v3180 = vmax.f32 %v3178, 0.0
        %3181 = vst [vmem:[%s347] sm:$0xff] %v3179
        %3182 = vst [vmem:[%s347 + $0x8] sm:$0xff] %v3180
        %s3183 = sand.u32 %s165, 1
        %s3184 = scalar_lea.sflag [#allocation6], %s3183
        %s3185 = sand.u32 %s165, 1
        %s3186 = smul.addr %s3185, 16
        %s3187 = scalar_lea.vmem [#allocation7], %s3186
        // Predicated region
        $region87: #{tpu_custom_call.1} parent=77 // pred_check
          %p3188 = pneg %p175
        $region88: #{tpu_custom_call.1} parent=77 // pred_check_branch
          %3190 = sbr.rel (%p3188) target = $region90
        $region89: #{tpu_custom_call.1} parent=77 // pred_region
          %s3192 = ssub.s32 256, 256
          %3193 = vsyncadd %s3184, %s3192
          %s3194 = smul.addr %s21, 2
          %s3195 = smul.addr %s3194, 128
          %s3196 = scalar_lea.hbm %s6, %s3195
          %s3198 = sshll.u32 %s3187, 4
          %s3199 = int_to_ptr.vmem [resolvable:$true] %s3198
          %3201 = dma.vmem_to_hbm [thread:$0]  %s3199, 256, %s3196, %s3184
        $region90: #{tpu_custom_call.1} parent=77 // pred_fallthru
          _
      $region78: #{tpu_custom_call.1} parent=5 // pred_fallthru
        _
      %p3202 = scmp.le.s32.totalorder 2, %s16
      // Predicated region
      $region91: #{tpu_custom_call.1} parent=5 // pred_check
        %p3203 = pneg %p3202
      $region92: #{tpu_custom_call.1} parent=5 // pred_check_branch
        %3205 = sbr.rel (%p3203) target = $region94
      $region93: #{tpu_custom_call.1} parent=5 // pred_region
        %s3206 = ssub.s32 %s16, 2
        // Predicated region
        $region95: #{tpu_custom_call.1} parent=93 // pred_check
          %p3207 = pneg %p181
        $region96: #{tpu_custom_call.1} parent=93 // pred_check_branch
          %3209 = sbr.rel (%p3207) target = $region98
        $region97: #{tpu_custom_call.1} parent=93 // pred_region
          %s3210 = sand.u32 %s166, 1
          %s3211 = scalar_lea.sflag [#allocation6], %s3210
          %s3212 = sand.u32 %s166, 1
          %s3213 = smul.addr %s3212, 16
          %s3214 = scalar_lea.vmem [#allocation7], %s3213
          %3215 = dma.done %s3211, 256
        $region98: #{tpu_custom_call.1} parent=93 // pred_fallthru
          _
      $region94: #{tpu_custom_call.1} parent=5 // pred_fallthru
        _
    $region6: #{tpu_custom_call.1} parent=1 // loop_footer
      %s20 = sadd.s32 1, %s16
    $region7: #{tpu_custom_call.1} parent=1 // loop_footer_branch
      %15 = sbr.rel target = $region3
    $region8: #{tpu_custom_call.1} parent=1 // loop_exit
      _
    %3216 = vsyncpa [#allocation5], 1
    %s3217 = scalar_lea.sflag [#allocation5], 1
    %3218 = vsyncpa %s3217, 1
    %3219 = vsyncpa [#allocation6], 1
    %s3220 = scalar_lea.sflag [#allocation6], 1
    %3221 = vsyncpa %s3220, 1

</llo_original>
